<compile_context>
chip_gen: v7x
topology: tpu7x:2x2x1
jax: 0.10.0
libtpu: 0.0.40
codegen_flags: <defaults>
</compile_context>

<pallas_src>
import functools
import math

import jax
import jax.numpy as jnp
from jax.experimental import pallas as pl
from jax.experimental.pallas import tpu as pltpu

LN_EPS = 1e-6  # nn.LayerNorm(eps=1e-06) in the module


def _round_up(x, m):
    return (x + m - 1) // m * m


def _pad_rows(a, n_to):
    n = a.shape[0]
    if n == n_to:
        return a
    pad = [(0, n_to - n)] + [(0, 0)] * (a.ndim - 1)
    return jnp.pad(a, pad)


# ---------------------------------------------------------------------------
# Kernel 1: fused Q/K/V projection  y = x @ Wqkv   ([rows, D] x [D, 3D])
# ---------------------------------------------------------------------------
def qkv_kernel(x_ref, w_ref, o_ref):
    x = x_ref[...].astype(w_ref.dtype)
    o_ref[...] = jnp.dot(
        x, w_ref[...], preferred_element_type=jnp.float32
    ).astype(o_ref.dtype)


# ---------------------------------------------------------------------------
# Kernel 2: the module's (nonstandard) scaled-dot-product attention.
# q/k/v arrive pre-split per (batch, seq) row as [rows, depth, H];
# logits[n,p,q] = sum_h q[n,p,h]*k[n,q,h]  (contraction over heads, as in torch)
# ---------------------------------------------------------------------------
def attn_kernel(q_ref, k_ref, v_ref, o_ref, *, scale):
    q = q_ref[...].astype(jnp.float32)
    k = k_ref[...].astype(jnp.float32)
    v = v_ref[...].astype(jnp.float32)
    logits = jnp.einsum(
        "nph,nqh->npq", q, k, preferred_element_type=jnp.float32
    ) * scale
    m = jnp.max(logits, axis=-1, keepdims=True)
    e = jnp.exp(logits - m)
    p = e / jnp.sum(e, axis=-1, keepdims=True)
    out = jnp.einsum("npq,nqh->nph", p, v, preferred_element_type=jnp.float32)
    o_ref[...] = out.astype(o_ref.dtype)


# ---------------------------------------------------------------------------
# Kernel 3: dense proj + residual + LayerNorm1 + FFN + residual + LayerNorm2
# ---------------------------------------------------------------------------
def _layernorm(h, gamma, beta):
    # One-pass reduction (fewer XLU passes); f32 math; clamp for safety.
    mu = jnp.mean(h, axis=-1, keepdims=True)
    m2 = jnp.mean(h * h, axis=-1, keepdims=True)
    var = jnp.maximum(m2 - mu * mu, 0.0)
    return (h - mu) * jax.lax.rsqrt(var + LN_EPS) * gamma + beta


def encoder_tail_kernel(cat_ref, x_ref,
                        wd_ref, bd_ref, g1_ref, be1_ref,
                        w1_ref, b1_ref, w2_ref, b2_ref,
                        g2_ref, be2_ref, o_ref):
    cdt = wd_ref.dtype  # matmul operand dtype (bf16 weights halve MXU/DMA cost)
    x = x_ref[...].astype(jnp.float32)

    att = jnp.dot(cat_ref[...].astype(cdt), wd_ref[...],
                  preferred_element_type=jnp.float32) + bd_ref[...].astype(jnp.float32)
    o1 = _layernorm(x + att,
                    g1_ref[...].astype(jnp.float32), be1_ref[...].astype(jnp.float32))

    h = jnp.dot(o1.astype(cdt), w1_ref[...],
                preferred_element_type=jnp.float32) + b1_ref[...].astype(jnp.float32)
    h = jnp.dot(h.astype(cdt), w2_ref[...],
                preferred_element_type=jnp.float32) + b2_ref[...].astype(jnp.float32)
    ffn = jnp.maximum(h, 0.0)  # FFN: ReLU applied AFTER layer2 (per module)

    out = _layernorm(o1 + ffn,
                     g2_ref[...].astype(jnp.float32), be2_ref[...].astype(jnp.float32))
    o_ref[...] = out.astype(o_ref.dtype)


# ---------------------------------------------------------------------------
# Wrapper
# ---------------------------------------------------------------------------
@functools.partial(jax.jit, static_argnames=("num_heads", "block_rows"))
def encoder_layer_forward(x, params, *, num_heads, block_rows=256):
    """x: [B, S, d_model] float32.  params: dict from init_params."""
    B, S, D = x.shape
    H = num_heads
    depth = D // H
    dff = params["w1"].shape[1]
    N = B * S

    bm = _round_up(min(block_rows, _round_up(N, 8)), 8)
    Npad = _round_up(N, bm)
    grid = (Npad // bm,)
    parallel = pltpu.CompilerParams(dimension_semantics=("parallel",))

    x2 = x.reshape(N, D).astype(jnp.float32)
    x2p = _pad_rows(x2, Npad)

    # ---- Kernel 1: QKV projection --------------------------------------
    qkv = pl.pallas_call(
        qkv_kernel,
        out_shape=jax.ShapeDtypeStruct((Npad, 3 * D), jnp.float32),
        grid_spec=pltpu.PrefetchScalarGridSpec(
            num_scalar_prefetch=0,
            grid=grid,
            in_specs=[pl.BlockSpec((bm, D), lambda i: (i, 0)),
                      pl.BlockSpec((D, 3 * D), lambda i: (0, 0))],
            out_specs=pl.BlockSpec((bm, 3 * D), lambda i: (i, 0)),
        ),
        compiler_params=parallel,
        cost_estimate=pl.CostEstimate(
            flops=2 * Npad * D * 3 * D,
            transcendentals=0,
            bytes_accessed=4 * (Npad * D + D * 3 * D + Npad * 3 * D)),
    )(x2p, params["wqkv"])

    qkv = qkv[:N]
    q2, k2, v2 = qkv[:, :D], qkv[:, D:2 * D], qkv[:, 2 * D:]

    # split_heads: [N, D] -> [N, H, depth] -> transpose(-1,-2) -> [N, depth, H]
    # (pure layout plumbing, done in the wrapper with plain jnp ops)
    def split(t):
        return t.reshape(N, H, depth).transpose(0, 2, 1)

    qh = _pad_rows(split(q2), Npad)
    kh = _pad_rows(split(k2), Npad)
    vh = _pad_rows(split(v2), Npad)

    # ---- Kernel 2: per-position head-contraction attention -------------
    scale = 1.0 / math.sqrt(depth)
    attn = pl.pallas_call(
        functools.partial(attn_kernel, scale=scale),
        out_shape=jax.ShapeDtypeStruct((Npad, depth, H), jnp.float32),
        grid_spec=pltpu.PrefetchScalarGridSpec(
            num_scalar_prefetch=0,
            grid=grid,
            in_specs=[pl.BlockSpec((bm, depth, H), lambda i: (i, 0, 0))] * 3,
            out_specs=pl.BlockSpec((bm, depth, H), lambda i: (i, 0, 0)),
        ),
        compiler_params=parallel,
        cost_estimate=pl.CostEstimate(
            flops=4 * Npad * depth * depth * H,
            transcendentals=Npad * depth * depth,
            bytes_accessed=4 * (4 * Npad * depth * H)),
    )(qh, kh, vh)

    attn = attn[:N]
    # module: scaled_attention.transpose(1, 2).contiguous().view(B, -1, d_model)
    concat = attn.reshape(B, S, depth, H).transpose(0, 2, 1, 3).reshape(B, S, D)
    cat2 = _pad_rows(concat.reshape(N, D), Npad)

    # ---- Kernel 3: dense + LN1 + FFN + LN2 ------------------------------
    def full(shape):
        return pl.BlockSpec(shape, lambda i: (0,) * len(shape))

    out2 = pl.pallas_call(
        encoder_tail_kernel,
        out_shape=jax.ShapeDtypeStruct((Npad, D), x.dtype),
        grid_spec=pltpu.PrefetchScalarGridSpec(
            num_scalar_prefetch=0,
            grid=grid,
            in_specs=[pl.BlockSpec((bm, D), lambda i: (i, 0)),
                      pl.BlockSpec((bm, D), lambda i: (i, 0)),
                      full(params["wd"].shape), full(params["bd"].shape),
                      full(params["g1"].shape), full(params["be1"].shape),
                      full(params["w1"].shape), full(params["b1"].shape),
                      full(params["w2"].shape), full(params["b2"].shape),
                      full(params["g2"].shape), full(params["be2"].shape)],
            out_specs=pl.BlockSpec((bm, D), lambda i: (i, 0)),
        ),
        compiler_params=parallel,
        cost_estimate=pl.CostEstimate(
            flops=2 * Npad * (D * D + 2 * D * dff),
            transcendentals=2 * Npad,
            bytes_accessed=4 * (3 * Npad * D + D * D + 2 * D * dff + 6 * D + dff)),
    )(cat2, x2p,
      params["wd"], params["bd"], params["g1"], params["be1"],
      params["w1"], params["b1"], params["w2"], params["b2"],
      params["g2"], params["be2"])

    return out2[:N].reshape(B, S, D)


# ---------------------------------------------------------------------------
# Params (PyTorch nn.Linear-style init, weights stored pre-transposed [in, out])
# ---------------------------------------------------------------------------
def init_params(key, d_model, dff, matmul_dtype=jnp.float32):
    D, F = d_model, dff
    ks = jax.random.split(key, 10)

    def linear(kw, kb, fan_in, fan_out, bias=True):
        bound = 1.0 / math.sqrt(fan_in)
        w = jax.random.uniform(kw, (fan_in, fan_out), jnp.float32, -bound, bound)
        b = (jax.random.uniform(kb, (1, fan_out), jnp.float32, -bound, bound)
             if bias else None)
        return w, b

    wq, _ = linear(ks[0], ks[0], D, D, bias=False)
    wk, _ = linear(ks[1], ks[1], D, D, bias=False)
    wv, _ = linear(ks[2], ks[2], D, D, bias=False)
    wd, bd = linear(ks[3], ks[4], D, D)
    w1, b1 = linear(ks[5], ks[6], D, F)
    w2, b2 = linear(ks[7], ks[8], F, D)

    cast = lambda w: w.astype(matmul_dtype)
    return {
        "wqkv": cast(jnp.concatenate([wq, wk, wv], axis=1)),
        "wd": cast(wd), "bd": bd,
        "w1": cast(w1), "b1": b1,
        "w2": cast(w2), "b2": b2,
        "g1": jnp.ones((1, D), jnp.float32), "be1": jnp.zeros((1, D), jnp.float32),
        "g2": jnp.ones((1, D), jnp.float32), "be2": jnp.zeros((1, D), jnp.float32),
    }


# ---------------------------------------------------------------------------
# Pure-JAX reference (mirrors the PyTorch module math, eval mode)
# ---------------------------------------------------------------------------
def encoder_layer_reference(x, p, num_heads):
    B, S, D = x.shape
    depth = D // num_heads
    hp = "highest"
    wqkv = p["wqkv"].astype(jnp.float32)
    q = jnp.einsum("bsd,de->bse", x, wqkv[:, :D], precision=hp)
    k = jnp.einsum("bsd,de->bse", x, wqkv[:, D:2 * D], precision=hp)
    v = jnp.einsum("bsd,de->bse", x, wqkv[:, 2 * D:], precision=hp)

    def split(t):
        return t.reshape(B, S, num_heads, depth).swapaxes(-1, -2)  # [B,S,depth,H]

    qh, kh, vh = split(q), split(k), split(v)
    logits = jnp.einsum("bsph,bsqh->bspq", qh, kh, precision=hp) * (1.0 / math.sqrt(depth))
    attn = jax.nn.softmax(logits, axis=-1)
    sa = jnp.einsum("bspq,bsqh->bsph", attn, vh, precision=hp)
    concat = sa.transpose(0, 2, 1, 3).reshape(B, S, D)   # torch transpose(1,2).view
    att_out = jnp.einsum("bsd,de->bse", concat, p["wd"].astype(jnp.float32),
                         precision=hp) + p["bd"]

    def ln(h, g, b):
        mu = jnp.mean(h, axis=-1, keepdims=True)
        var = jnp.mean(jnp.square(h - mu), axis=-1, keepdims=True)
        return (h - mu) * jax.lax.rsqrt(var + LN_EPS) * g + b

    o1 = ln(x + att_out, p["g1"], p["be1"])
    h = jnp.einsum("bsd,df->bsf", o1, p["w1"].astype(jnp.float32), precision=hp) + p["b1"]
    h = jnp.einsum("bsf,fd->bsd", h, p["w2"].astype(jnp.float32), precision=hp) + p["b2"]
    ffn = jnp.maximum(h, 0.0)
    return ln(o1 + ffn, p["g2"], p["be2"])


if __name__ == "__main__":
    key = jax.random.PRNGKey(0)
    kx, kp = jax.random.split(key)

    # Small demo shapes consistent with the module (real models should use
    # d_model/dff that are multiples of 128 for lane-dense stores).
    B, S, D, H, dff = 2, 8, 32, 4, 64
    x = jax.random.normal(kx, (B, S, D), jnp.float32)
    params = init_params(kp, D, dff)

    out = encoder_layer_forward(x, params, num_heads=H)
    out = jax.block_until_ready(out)

    ref = encoder_layer_reference(x, params, H)
    assert out.shape == (B, S, D)
    err = float(jnp.max(jnp.abs(out - ref)))
    assert jnp.allclose(out, ref, atol=1e-4, rtol=1e-4), f"mismatch vs reference (max abs err {err})"

    print("KERNEL_OK")
</pallas_src>

<mosaic_0001>
module attributes {stable_mosaic.version = 11 : i64} {
  func.func @qkv_kernel(%arg0: i32, %arg1: memref<16x32xf32, #tpu.memory_space<vmem>>, %arg2: memref<32x96xf32, #tpu.memory_space<vmem>>, %arg3: memref<16x96xf32, #tpu.memory_space<vmem>>) attributes {dimension_semantics = [#tpu.dimension_semantics<parallel>], iteration_bounds = array<i64: 1>, scalar_prefetch = 0 : i64, scratch_operands = 0 : i64, tpu.core_type = #tpu.core_type<tc>, window_params = [{transform_indices = @transform_0, window_bounds = array<i64: 16, 32>}, {pipeline_mode = #tpu.pipeline_mode<synchronous>, transform_indices = @transform_1, window_bounds = array<i64: 32, 96>}, {transform_indices = @transform_2, window_bounds = array<i64: 16, 96>}]} {
    %c0 = arith.constant 0 : index
    %c0_0 = arith.constant 0 : index
    %0 = vector.load %arg1[%c0, %c0_0] : memref<16x32xf32, #tpu.memory_space<vmem>>, vector<16x32xf32>
    %c0_1 = arith.constant 0 : index
    %c0_2 = arith.constant 0 : index
    %1 = vector.load %arg2[%c0_1, %c0_2] : memref<32x96xf32, #tpu.memory_space<vmem>>, vector<32x96xf32>
    %cst = arith.constant dense<0.000000e+00> : vector<16x96xf32>
    %2 = tpu.matmul %0, %1, %cst {dimension_numbers = #tpu.dot_dimension_numbers<[1], [0], [0], [1], [0, 0, 1, 1], [], []>} : vector<16x32xf32>, vector<32x96xf32>, vector<16x96xf32> -> vector<16x96xf32>
    %c0_3 = arith.constant 0 : index
    %c0_4 = arith.constant 0 : index
    %3 = vector.load %arg3[%c0_3, %c0_4] : memref<16x96xf32, #tpu.memory_space<vmem>>, vector<16x96xf32>
    tpu.vector_store %arg3[%c0_3, %c0_4], %2 {strides = array<i32>} : memref<16x96xf32, #tpu.memory_space<vmem>>, vector<16x96xf32>,
    return
  }
  func.func @transform_0(%arg0: i32) -> (i32, i32) {
    %c0_i32 = arith.constant 0 : i32
    %c0_i32_0 = arith.constant 0 : i32
    return %arg0, %c0_i32 : i32, i32
  }
  func.func @transform_1(%arg0: i32) -> (i32, i32) {
    %c0_i32 = arith.constant 0 : i32
    %c0_i32_0 = arith.constant 0 : i32
    %c0_i32_1 = arith.constant 0 : i32
    return %c0_i32, %c0_i32_0 : i32, i32
  }
  func.func @transform_2(%arg0: i32) -> (i32, i32) {
    %c0_i32 = arith.constant 0 : i32
    %c0_i32_0 = arith.constant 0 : i32
    return %arg0, %c0_i32 : i32, i32
  }
}

module attributes {stable_mosaic.version = 11 : i64} {
  func.func @attn_kernel(%arg0: i32, %arg1: memref<16x8x4xf32, #tpu.memory_space<vmem>>, %arg2: memref<16x8x4xf32, #tpu.memory_space<vmem>>, %arg3: memref<16x8x4xf32, #tpu.memory_space<vmem>>, %arg4: memref<16x8x4xf32, #tpu.memory_space<vmem>>) attributes {dimension_semantics = [#tpu.dimension_semantics<parallel>], iteration_bounds = array<i64: 1>, scalar_prefetch = 0 : i64, scratch_operands = 0 : i64, tpu.core_type = #tpu.core_type<tc>, window_params = [{transform_indices = @transform_0, window_bounds = array<i64: 16, 8, 4>}, {transform_indices = @transform_1, window_bounds = array<i64: 16, 8, 4>}, {transform_indices = @transform_2, window_bounds = array<i64: 16, 8, 4>}, {transform_indices = @transform_3, window_bounds = array<i64: 16, 8, 4>}]} {
    %c0 = arith.constant 0 : index
    %c0_0 = arith.constant 0 : index
    %c0_1 = arith.constant 0 : index
    %0 = vector.load %arg1[%c0, %c0_0, %c0_1] : memref<16x8x4xf32, #tpu.memory_space<vmem>>, vector<16x8x4xf32>
    %c0_2 = arith.constant 0 : index
    %c0_3 = arith.constant 0 : index
    %c0_4 = arith.constant 0 : index
    %1 = vector.load %arg2[%c0_2, %c0_3, %c0_4] : memref<16x8x4xf32, #tpu.memory_space<vmem>>, vector<16x8x4xf32>
    %c0_5 = arith.constant 0 : index
    %c0_6 = arith.constant 0 : index
    %c0_7 = arith.constant 0 : index
    %2 = vector.load %arg3[%c0_5, %c0_6, %c0_7] : memref<16x8x4xf32, #tpu.memory_space<vmem>>, vector<16x8x4xf32>
    "tpu.trace_start"() <{level = 10 : i32, message = "nph,nqh->npq"}> : () -> ()
    %cst = arith.constant dense<0.000000e+00> : vector<16x8x8xf32>
    %3 = tpu.matmul %0, %1, %cst {dimension_numbers = #tpu.dot_dimension_numbers<[2], [2], [1], [1], [0, 0, 0, 1, 1, 1], [0], [0]>} : vector<16x8x4xf32>, vector<16x8x4xf32>, vector<16x8x8xf32> -> vector<16x8x8xf32>
    "tpu.trace_stop"() : () -> ()
    %cst_8 = arith.constant 0.353553385 : f32
    %4 = vector.broadcast %cst_8 : f32 to vector<16x8x8xf32>
    %5 = arith.mulf %3, %4 : vector<16x8x8xf32>
    %cst_9 = arith.constant dense<0xFF800000> : vector<16x8xf32>
    %6 = vector.multi_reduction <maximumf>, %5, %cst_9 [2] : vector<16x8x8xf32> to vector<16x8xf32>
    %7 = vector.shape_cast %6 : vector<16x8xf32> to vector<16x8x1xf32>
    %8 = vector.broadcast %7 : vector<16x8x1xf32> to vector<16x8x8xf32>
    %9 = arith.subf %5, %8 : vector<16x8x8xf32>
    %10 = math.exp %9 : vector<16x8x8xf32>
    %cst_10 = arith.constant dense<0.000000e+00> : vector<16x8xf32>
    %11 = vector.multi_reduction <add>, %10, %cst_10 [2] : vector<16x8x8xf32> to vector<16x8xf32>
    %12 = vector.shape_cast %11 : vector<16x8xf32> to vector<16x8x1xf32>
    %13 = vector.broadcast %12 : vector<16x8x1xf32> to vector<16x8x8xf32>
    %14 = arith.divf %10, %13 : vector<16x8x8xf32>
    "tpu.trace_start"() <{level = 10 : i32, message = "npq,nqh->nph"}> : () -> ()
    %cst_11 = arith.constant dense<0.000000e+00> : vector<16x8x4xf32>
    %15 = tpu.matmul %14, %2, %cst_11 {dimension_numbers = #tpu.dot_dimension_numbers<[2], [1], [1], [2], [0, 0, 0, 1, 1, 2], [0], [0]>} : vector<16x8x8xf32>, vector<16x8x4xf32>, vector<16x8x4xf32> -> vector<16x8x4xf32>
    "tpu.trace_stop"() : () -> ()
    %c0_12 = arith.constant 0 : index
    %c0_13 = arith.constant 0 : index
    %c0_14 = arith.constant 0 : index
    %16 = vector.load %arg4[%c0_12, %c0_13, %c0_14] : memref<16x8x4xf32, #tpu.memory_space<vmem>>, vector<16x8x4xf32>
    tpu.vector_store %arg4[%c0_12, %c0_13, %c0_14], %15 {strides = array<i32>} : memref<16x8x4xf32, #tpu.memory_space<vmem>>, vector<16x8x4xf32>,
    return
  }
  func.func @transform_0(%arg0: i32) -> (i32, i32, i32) {
    %c0_i32 = arith.constant 0 : i32
    %c0_i32_0 = arith.constant 0 : i32
    %c0_i32_1 = arith.constant 0 : i32
    return %arg0, %c0_i32, %c0_i32_0 : i32, i32, i32
  }
  func.func @transform_1(%arg0: i32) -> (i32, i32, i32) {
    %c0_i32 = arith.constant 0 : i32
    %c0_i32_0 = arith.constant 0 : i32
    %c0_i32_1 = arith.constant 0 : i32
    return %arg0, %c0_i32, %c0_i32_0 : i32, i32, i32
  }
  func.func @transform_2(%arg0: i32) -> (i32, i32, i32) {
    %c0_i32 = arith.constant 0 : i32
    %c0_i32_0 = arith.constant 0 : i32
    %c0_i32_1 = arith.constant 0 : i32
    return %arg0, %c0_i32, %c0_i32_0 : i32, i32, i32
  }
  func.func @transform_3(%arg0: i32) -> (i32, i32, i32) {
    %c0_i32 = arith.constant 0 : i32
    %c0_i32_0 = arith.constant 0 : i32
    %c0_i32_1 = arith.constant 0 : i32
    return %arg0, %c0_i32, %c0_i32_0 : i32, i32, i32
  }
}

module attributes {stable_mosaic.version = 11 : i64} {
  func.func @encoder_tail_kernel(%arg0: i32, %arg1: memref<16x32xf32, #tpu.memory_space<vmem>>, %arg2: memref<16x32xf32, #tpu.memory_space<vmem>>, %arg3: memref<32x32xf32, #tpu.memory_space<vmem>>, %arg4: memref<1x32xf32, #tpu.memory_space<vmem>>, %arg5: memref<1x32xf32, #tpu.memory_space<vmem>>, %arg6: memref<1x32xf32, #tpu.memory_space<vmem>>, %arg7: memref<32x64xf32, #tpu.memory_space<vmem>>, %arg8: memref<1x64xf32, #tpu.memory_space<vmem>>, %arg9: memref<64x32xf32, #tpu.memory_space<vmem>>, %arg10: memref<1x32xf32, #tpu.memory_space<vmem>>, %arg11: memref<1x32xf32, #tpu.memory_space<vmem>>, %arg12: memref<1x32xf32, #tpu.memory_space<vmem>>, %arg13: memref<16x32xf32, #tpu.memory_space<vmem>>) attributes {dimension_semantics = [#tpu.dimension_semantics<parallel>], iteration_bounds = array<i64: 1>, scalar_prefetch = 0 : i64, scratch_operands = 0 : i64, tpu.core_type = #tpu.core_type<tc>, window_params = [{transform_indices = @transform_0, window_bounds = array<i64: 16, 32>}, {transform_indices = @transform_1, window_bounds = array<i64: 16, 32>}, {pipeline_mode = #tpu.pipeline_mode<synchronous>, transform_indices = @transform_2, window_bounds = array<i64: 32, 32>}, {pipeline_mode = #tpu.pipeline_mode<synchronous>, transform_indices = @transform_3, window_bounds = array<i64: 1, 32>}, {pipeline_mode = #tpu.pipeline_mode<synchronous>, transform_indices = @transform_4, window_bounds = array<i64: 1, 32>}, {pipeline_mode = #tpu.pipeline_mode<synchronous>, transform_indices = @transform_5, window_bounds = array<i64: 1, 32>}, {pipeline_mode = #tpu.pipeline_mode<synchronous>, transform_indices = @transform_6, window_bounds = array<i64: 32, 64>}, {pipeline_mode = #tpu.pipeline_mode<synchronous>, transform_indices = @transform_7, window_bounds = array<i64: 1, 64>}, {pipeline_mode = #tpu.pipeline_mode<synchronous>, transform_indices = @transform_8, window_bounds = array<i64: 64, 32>}, {pipeline_mode = #tpu.pipeline_mode<synchronous>, transform_indices = @transform_9, window_bounds = array<i64: 1, 32>}, {pipeline_mode = #tpu.pipeline_mode<synchronous>, transform_indices = @transform_10, window_bounds = array<i64: 1, 32>}, {pipeline_mode = #tpu.pipeline_mode<synchronous>, transform_indices = @transform_11, window_bounds = array<i64: 1, 32>}, {transform_indices = @transform_12, window_bounds = array<i64: 16, 32>}]} {
    %c0 = arith.constant 0 : index
    %c0_0 = arith.constant 0 : index
    %0 = vector.load %arg2[%c0, %c0_0] : memref<16x32xf32, #tpu.memory_space<vmem>>, vector<16x32xf32>
    %c0_1 = arith.constant 0 : index
    %c0_2 = arith.constant 0 : index
    %1 = vector.load %arg1[%c0_1, %c0_2] : memref<16x32xf32, #tpu.memory_space<vmem>>, vector<16x32xf32>
    %c0_3 = arith.constant 0 : index
    %c0_4 = arith.constant 0 : index
    %2 = vector.load %arg3[%c0_3, %c0_4] : memref<32x32xf32, #tpu.memory_space<vmem>>, vector<32x32xf32>
    %cst = arith.constant dense<0.000000e+00> : vector<16x32xf32>
    %3 = tpu.matmul %1, %2, %cst {dimension_numbers = #tpu.dot_dimension_numbers<[1], [0], [0], [1], [0, 0, 1, 1], [], []>} : vector<16x32xf32>, vector<32x32xf32>, vector<16x32xf32> -> vector<16x32xf32>
    %c0_5 = arith.constant 0 : index
    %c0_6 = arith.constant 0 : index
    %4 = vector.load %arg4[%c0_5, %c0_6] : memref<1x32xf32, #tpu.memory_space<vmem>>, vector<1x32xf32>
    %5 = vector.broadcast %4 : vector<1x32xf32> to vector<16x32xf32>
    %6 = arith.addf %3, %5 : vector<16x32xf32>
    %7 = arith.addf %0, %6 : vector<16x32xf32>
    %c0_7 = arith.constant 0 : index
    %c0_8 = arith.constant 0 : index
    %8 = vector.load %arg5[%c0_7, %c0_8] : memref<1x32xf32, #tpu.memory_space<vmem>>, vector<1x32xf32>
    %c0_9 = arith.constant 0 : index
    %c0_10 = arith.constant 0 : index
    %9 = vector.load %arg6[%c0_9, %c0_10] : memref<1x32xf32, #tpu.memory_space<vmem>>, vector<1x32xf32>
    %cst_11 = arith.constant dense<0.000000e+00> : vector<16xf32>
    %10 = vector.multi_reduction <add>, %7, %cst_11 [1] : vector<16x32xf32> to vector<16xf32>
    %11 = vector.shape_cast %10 : vector<16xf32> to vector<16x1xf32>
    %cst_12 = arith.constant 3.200000e+01 : f32
    %12 = vector.broadcast %cst_12 : f32 to vector<16x1xf32>
    %13 = arith.divf %11, %12 : vector<16x1xf32>
    %14 = arith.mulf %7, %7 : vector<16x32xf32>
    %cst_13 = arith.constant dense<0.000000e+00> : vector<16xf32>
    %15 = vector.multi_reduction <add>, %14, %cst_13 [1] : vector<16x32xf32> to vector<16xf32>
    %16 = vector.shape_cast %15 : vector<16xf32> to vector<16x1xf32>
    %cst_14 = arith.constant 3.200000e+01 : f32
    %17 = vector.broadcast %cst_14 : f32 to vector<16x1xf32>
    %18 = arith.divf %16, %17 : vector<16x1xf32>
    %19 = arith.mulf %13, %13 : vector<16x1xf32>
    %20 = arith.subf %18, %19 : vector<16x1xf32>
    %cst_15 = arith.constant 0.000000e+00 : f32
    %21 = vector.broadcast %cst_15 : f32 to vector<16x1xf32>
    %22 = arith.maximumf %20, %21 : vector<16x1xf32>
    %23 = vector.broadcast %13 : vector<16x1xf32> to vector<16x32xf32>
    %24 = arith.subf %7, %23 : vector<16x32xf32>
    %cst_16 = arith.constant 9.99999997E-7 : f32
    %25 = vector.broadcast %cst_16 : f32 to vector<16x1xf32>
    %26 = arith.addf %22, %25 : vector<16x1xf32>
    %27 = math.rsqrt %26 : vector<16x1xf32>
    %28 = vector.broadcast %27 : vector<16x1xf32> to vector<16x32xf32>
    %29 = arith.mulf %24, %28 : vector<16x32xf32>
    %30 = vector.broadcast %8 : vector<1x32xf32> to vector<16x32xf32>
    %31 = arith.mulf %29, %30 : vector<16x32xf32>
    %32 = vector.broadcast %9 : vector<1x32xf32> to vector<16x32xf32>
    %33 = arith.addf %31, %32 : vector<16x32xf32>
    %c0_17 = arith.constant 0 : index
    %c0_18 = arith.constant 0 : index
    %34 = vector.load %arg7[%c0_17, %c0_18] : memref<32x64xf32, #tpu.memory_space<vmem>>, vector<32x64xf32>
    %cst_19 = arith.constant dense<0.000000e+00> : vector<16x64xf32>
    %35 = tpu.matmul %33, %34, %cst_19 {dimension_numbers = #tpu.dot_dimension_numbers<[1], [0], [0], [1], [0, 0, 1, 1], [], []>} : vector<16x32xf32>, vector<32x64xf32>, vector<16x64xf32> -> vector<16x64xf32>
    %c0_20 = arith.constant 0 : index
    %c0_21 = arith.constant 0 : index
    %36 = vector.load %arg8[%c0_20, %c0_21] : memref<1x64xf32, #tpu.memory_space<vmem>>, vector<1x64xf32>
    %37 = vector.broadcast %36 : vector<1x64xf32> to vector<16x64xf32>
    %38 = arith.addf %35, %37 : vector<16x64xf32>
    %c0_22 = arith.constant 0 : index
    %c0_23 = arith.constant 0 : index
    %39 = vector.load %arg9[%c0_22, %c0_23] : memref<64x32xf32, #tpu.memory_space<vmem>>, vector<64x32xf32>
    %cst_24 = arith.constant dense<0.000000e+00> : vector<16x32xf32>
    %40 = tpu.matmul %38, %39, %cst_24 {dimension_numbers = #tpu.dot_dimension_numbers<[1], [0], [0], [1], [0, 0, 1, 1], [], []>} : vector<16x64xf32>, vector<64x32xf32>, vector<16x32xf32> -> vector<16x32xf32>
    %c0_25 = arith.constant 0 : index
    %c0_26 = arith.constant 0 : index
    %41 = vector.load %arg10[%c0_25, %c0_26] : memref<1x32xf32, #tpu.memory_space<vmem>>, vector<1x32xf32>
    %42 = vector.broadcast %41 : vector<1x32xf32> to vector<16x32xf32>
    %43 = arith.addf %40, %42 : vector<16x32xf32>
    %cst_27 = arith.constant 0.000000e+00 : f32
    %44 = vector.broadcast %cst_27 : f32 to vector<16x32xf32>
    %45 = arith.maximumf %43, %44 : vector<16x32xf32>
    %46 = arith.addf %33, %45 : vector<16x32xf32>
    %c0_28 = arith.constant 0 : index
    %c0_29 = arith.constant 0 : index
    %47 = vector.load %arg11[%c0_28, %c0_29] : memref<1x32xf32, #tpu.memory_space<vmem>>, vector<1x32xf32>
    %c0_30 = arith.constant 0 : index
    %c0_31 = arith.constant 0 : index
    %48 = vector.load %arg12[%c0_30, %c0_31] : memref<1x32xf32, #tpu.memory_space<vmem>>, vector<1x32xf32>
    %cst_32 = arith.constant dense<0.000000e+00> : vector<16xf32>
    %49 = vector.multi_reduction <add>, %46, %cst_32 [1] : vector<16x32xf32> to vector<16xf32>
    %50 = vector.shape_cast %49 : vector<16xf32> to vector<16x1xf32>
    %cst_33 = arith.constant 3.200000e+01 : f32
    %51 = vector.broadcast %cst_33 : f32 to vector<16x1xf32>
    %52 = arith.divf %50, %51 : vector<16x1xf32>
    %53 = arith.mulf %46, %46 : vector<16x32xf32>
    %cst_34 = arith.constant dense<0.000000e+00> : vector<16xf32>
    %54 = vector.multi_reduction <add>, %53, %cst_34 [1] : vector<16x32xf32> to vector<16xf32>
    %55 = vector.shape_cast %54 : vector<16xf32> to vector<16x1xf32>
    %cst_35 = arith.constant 3.200000e+01 : f32
    %56 = vector.broadcast %cst_35 : f32 to vector<16x1xf32>
    %57 = arith.divf %55, %56 : vector<16x1xf32>
    %58 = arith.mulf %52, %52 : vector<16x1xf32>
    %59 = arith.subf %57, %58 : vector<16x1xf32>
    %cst_36 = arith.constant 0.000000e+00 : f32
    %60 = vector.broadcast %cst_36 : f32 to vector<16x1xf32>
    %61 = arith.maximumf %59, %60 : vector<16x1xf32>
    %62 = vector.broadcast %52 : vector<16x1xf32> to vector<16x32xf32>
    %63 = arith.subf %46, %62 : vector<16x32xf32>
    %cst_37 = arith.constant 9.99999997E-7 : f32
    %64 = vector.broadcast %cst_37 : f32 to vector<16x1xf32>
    %65 = arith.addf %61, %64 : vector<16x1xf32>
    %66 = math.rsqrt %65 : vector<16x1xf32>
    %67 = vector.broadcast %66 : vector<16x1xf32> to vector<16x32xf32>
    %68 = arith.mulf %63, %67 : vector<16x32xf32>
    %69 = vector.broadcast %47 : vector<1x32xf32> to vector<16x32xf32>
    %70 = arith.mulf %68, %69 : vector<16x32xf32>
    %71 = vector.broadcast %48 : vector<1x32xf32> to vector<16x32xf32>
    %72 = arith.addf %70, %71 : vector<16x32xf32>
    %c0_38 = arith.constant 0 : index
    %c0_39 = arith.constant 0 : index
    %73 = vector.load %arg13[%c0_38, %c0_39] : memref<16x32xf32, #tpu.memory_space<vmem>>, vector<16x32xf32>
    tpu.vector_store %arg13[%c0_38, %c0_39], %72 {strides = array<i32>} : memref<16x32xf32, #tpu.memory_space<vmem>>, vector<16x32xf32>,
    return
  }
  func.func @transform_0(%arg0: i32) -> (i32, i32) {
    %c0_i32 = arith.constant 0 : i32
    %c0_i32_0 = arith.constant 0 : i32
    return %arg0, %c0_i32 : i32, i32
  }
  func.func @transform_1(%arg0: i32) -> (i32, i32) {
    %c0_i32 = arith.constant 0 : i32
    %c0_i32_0 = arith.constant 0 : i32
    return %arg0, %c0_i32 : i32, i32
  }
  func.func @transform_2(%arg0: i32) -> (i32, i32) {
    %c0_i32 = arith.constant 0 : i32
    %c0_i32_0 = arith.constant 0 : i32
    %c0_i32_1 = arith.constant 0 : i32
    return %c0_i32, %c0_i32_0 : i32, i32
  }
  func.func @transform_3(%arg0: i32) -> (i32, i32) {
    %c0_i32 = arith.constant 0 : i32
    %c0_i32_0 = arith.constant 0 : i32
    %c0_i32_1 = arith.constant 0 : i32
    return %c0_i32, %c0_i32_0 : i32, i32
  }
  func.func @transform_4(%arg0: i32) -> (i32, i32) {
    %c0_i32 = arith.constant 0 : i32
    %c0_i32_0 = arith.constant 0 : i32
    %c0_i32_1 = arith.constant 0 : i32
    return %c0_i32, %c0_i32_0 : i32, i32
  }
  func.func @transform_5(%arg0: i32) -> (i32, i32) {
    %c0_i32 = arith.constant 0 : i32
    %c0_i32_0 = arith.constant 0 : i32
    %c0_i32_1 = arith.constant 0 : i32
    return %c0_i32, %c0_i32_0 : i32, i32
  }
  func.func @transform_6(%arg0: i32) -> (i32, i32) {
    %c0_i32 = arith.constant 0 : i32
    %c0_i32_0 = arith.constant 0 : i32
    %c0_i32_1 = arith.constant 0 : i32
    return %c0_i32, %c0_i32_0 : i32, i32
  }
  func.func @transform_7(%arg0: i32) -> (i32, i32) {
    %c0_i32 = arith.constant 0 : i32
    %c0_i32_0 = arith.constant 0 : i32
    %c0_i32_1 = arith.constant 0 : i32
    return %c0_i32, %c0_i32_0 : i32, i32
  }
  func.func @transform_8(%arg0: i32) -> (i32, i32) {
    %c0_i32 = arith.constant 0 : i32
    %c0_i32_0 = arith.constant 0 : i32
    %c0_i32_1 = arith.constant 0 : i32
    return %c0_i32, %c0_i32_0 : i32, i32
  }
  func.func @transform_9(%arg0: i32) -> (i32, i32) {
    %c0_i32 = arith.constant 0 : i32
    %c0_i32_0 = arith.constant 0 : i32
    %c0_i32_1 = arith.constant 0 : i32
    return %c0_i32, %c0_i32_0 : i32, i32
  }
  func.func @transform_10(%arg0: i32) -> (i32, i32) {
    %c0_i32 = arith.constant 0 : i32
    %c0_i32_0 = arith.constant 0 : i32
    %c0_i32_1 = arith.constant 0 : i32
    return %c0_i32, %c0_i32_0 : i32, i32
  }
  func.func @transform_11(%arg0: i32) -> (i32, i32) {
    %c0_i32 = arith.constant 0 : i32
    %c0_i32_0 = arith.constant 0 : i32
    %c0_i32_1 = arith.constant 0 : i32
    return %c0_i32, %c0_i32_0 : i32, i32
  }
  func.func @transform_12(%arg0: i32) -> (i32, i32) {
    %c0_i32 = arith.constant 0 : i32
    %c0_i32_0 = arith.constant 0 : i32
    return %arg0, %c0_i32 : i32, i32
  }
}

</mosaic_0001>

<llo_original>
// kernel: encoder_layer_forward.3
$region0: #{encoder_layer_forward.3}
  #allocation0 [shape = 'u32[]', space=smem, size = 0x4, offset = 0x4, fixed_abs, tag = 'smem constant byte address 0x4 - core index']
  #allocation1 [shape = 'u32[144,128]{1,0:T(1,128)}', space=vmem, size = 0x12000, scoped, tag = 'internal scratch']
  %s0 = inlined_call_operand.vmem [shape: f32[16,32], index: 0, kind: input, shape index: {}]
  %s1 = inlined_call_operand.hbm [shape: f32[32,96], index: 1, kind: input, shape index: {}]
  %s2 = inlined_call_operand.vmem [shape: f32[16,96], index: 2, kind: output, shape index: {}]
  %s3 = sld [smem:[#allocation0]]
  $region22: #{encoder_layer_forward.3} parent=0
    _
  %s5 = ssub.s32 1, %s3
  %s6 = scalar_select 0, %s5, %s3
  $region1: #{encoder_layer_forward.3} parent=0
    #allocation2 [shape = 'u8[16384]{0}', space=vmem, size = 0x4000, scoped, tag = 'input window, operand 1, single buffered']
    #allocation3 [shape = 's32[1]{0}', space=sflag, size = 0x4, scoped, tag = 'scoped memory for encoder_layer_forward.3']
    %7 = vsyncpa [#allocation3], 0
    // Predicated region
    $region2: #{encoder_layer_forward.3} parent=1 // pred_check
      _
    $region3: #{encoder_layer_forward.3} parent=1 // pred_check_branch
      %9 = sbr.rel (0) target = $region5
    $region4: #{encoder_layer_forward.3} parent=1 // pred_region
      _
    $region5: #{encoder_layer_forward.3} parent=1 // pred_fallthru
      _
    // Predicated region
    $region6: #{encoder_layer_forward.3} parent=1 // pred_check
      _
    $region7: #{encoder_layer_forward.3} parent=1 // pred_check_branch
      %11 = sbr.rel (0) target = $region9
    $region8: #{encoder_layer_forward.3} parent=1 // pred_region
      %s13 = ssub.s32 512, 512
      %14 = vsyncadd [#allocation3], %s13
      %s15 = sshll.u32 [#allocation2], 4
      %s16 = int_to_ptr.vmem [resolvable:$true] %s15
      %21 = dma.hbm_to_vmem [thread:$0]  %s1, 512, %s16, [#allocation3], 128, 128, 8
    $region9: #{encoder_layer_forward.3} parent=1 // pred_fallthru
      _
    // Predicated region
    $region10: #{encoder_layer_forward.3} parent=1 // pred_check
      _
    $region11: #{encoder_layer_forward.3} parent=1 // pred_check_branch
      %23 = sbr.rel (0) target = $region13
    $region12: #{encoder_layer_forward.3} parent=1 // pred_region
      %24 = dma.done [#allocation3], 512
    $region13: #{encoder_layer_forward.3} parent=1 // pred_fallthru
      _
    %v25 = vld [vmem:[%s0] sm:$0xff]
    %v26 = vld [vmem:[%s0 + $0x8] sm:$0xff]
    %v27 = vld [vmem:[#allocation2] sm:$0xff]
    %v28 = vld [vmem:[#allocation2 + $0x8] sm:$0xff]
    %v29 = vld [vmem:[#allocation2 + $0x10] sm:$0xff]
    %v30 = vld [vmem:[#allocation2 + $0x18] sm:$0xff]
    %vm31 = vcmask 261120
    %v33 = vsel %vm31, %v25, 0
    %v36 = vsel %vm31, %v26, 0
    %38 = vmatprep.subr.mxu0 0.0
    %39 = vmatpush1.msra.mxu0 %v27
    %40 = vmatprep.subr.mxu0 0.0
    %41 = vmatpush1.msra.mxu0 %v28
    %42 = vmatprep.subr.mxu0 0.0
    %43 = vmatpush1.msra.mxu0 %v29
    %44 = vmatprep.subr.mxu0 0.0
    %45 = vmatpush1.msra.mxu0 %v30
    %46 = vmatprep.subr.mxu0 0.0
    %47 = vmatpush1.msra.mxu0 0.0
    %48 = vmatprep.subr.mxu0 0.0
    %49 = vmatpush1.msra.mxu0 0.0
    %50 = vmatprep.subr.mxu0 0.0
    %51 = vmatpush1.msra.mxu0 0.0
    %52 = vmatprep.subr.mxu0 0.0
    %53 = vmatpush1.msra.mxu0 0.0
    %54 = vmatprep.subr.mxu0 0.0
    %55 = vmatpush1.msra.mxu0 0.0
    %56 = vmatprep.subr.mxu0 0.0
    %57 = vmatpush1.msra.mxu0 0.0
    %58 = vmatprep.subr.mxu0 0.0
    %59 = vmatpush1.msra.mxu0 0.0
    %60 = vmatprep.subr.mxu0 0.0
    %61 = vmatpush1.msra.mxu0 0.0
    %62 = vmatprep.subr.mxu0 0.0
    %63 = vmatpush1.msra.mxu0 0.0
    %64 = vmatprep.subr.mxu0 0.0
    %65 = vmatpush1.msra.mxu0 0.0
    %66 = vmatprep.subr.mxu0 0.0
    %67 = vmatpush1.msra.mxu0 0.0
    %68 = vmatprep.subr.mxu0 0.0
    %69 = vmatpush1.msra.mxu0 0.0
    %70 = vmatprep.subr.mxu0 0.0
    %71 = vmatpush1.msra.mxu0 0.0
    %72 = vmatprep.subr.mxu0 0.0
    %73 = vmatpush1.msra.mxu0 0.0
    %74 = vmatprep.subr.mxu0 0.0
    %75 = vmatpush1.msra.mxu0 0.0
    %76 = vmatprep.subr.mxu0 0.0
    %77 = vmatpush1.msra.mxu0 0.0
    %78 = vmatprep.subr.mxu0 0.0
    %79 = vmatpush1.msra.mxu0 0.0
    %80 = vmatprep.subr.mxu0 0.0
    %81 = vmatpush1.msra.mxu0 0.0
    %82 = vmatprep.subr.mxu0 0.0
    %83 = vmatpush1.msra.mxu0 0.0
    %84 = vmatprep.subr.mxu0 0.0
    %85 = vmatpush1.msra.mxu0 0.0
    %86 = vmatprep.subr.mxu0 0.0
    %87 = vmatpush1.msra.mxu0 0.0
    %88 = vmatprep.subr.mxu0 0.0
    %89 = vmatpush1.msra.mxu0 0.0
    %90 = vmatprep.subr.mxu0 0.0
    %91 = vmatpush1.msra.mxu0 0.0
    %92 = vmatprep.subr.mxu0 0.0
    %93 = vmatpush1.msra.mxu0 0.0
    %94 = vmatprep.subr.mxu0 0.0
    %95 = vmatpush1.msra.mxu0 0.0
    %96 = vmatprep.subr.mxu0 0.0
    %97 = vmatpush1.msra.mxu0 0.0
    %98 = vmatprep.subr.mxu0 0.0
    %99 = vmatpush1.msra.mxu0 0.0
    %100 = vmatprep.subr.mxu0 0.0
    %101 = vmatpush1.msra.mxu0 0.0
    %102 = vmatprep.mubr.f32.mxu0 0.0
    %103 = vmatmul.mubr.f32.gmra.mrb[0].mxu0 %v33
    %v104 = vpop.f32.mrb[0].mxu0
    %v105 = vadd.f32 0.0, %v104
    %v106 = vpop.f32.mrb[0].mxu0
    %107 = vmatprep.mubr.f32.mxu0 0.0
    %108 = vmatmul.mubr.f32.gmra.mrb[0].mxu0 %v36
    %v109 = vpop.f32.mrb[0].mxu0
    %v110 = vadd.f32 0.0, %v109
    %v111 = vpop.f32.mrb[0].mxu0
    %112 = vdwg.mxu0
    %vm113 = vcmask 785408
    %114 = vst.msk [vmem:[%s2] sm:$0xff] %vm113, %v105
    %115 = vst.msk [vmem:[%s2 + $0x8] sm:$0xff] %vm113, %v110
    // Predicated region
    $region14: #{encoder_layer_forward.3} parent=1 // pred_check
      _
    $region15: #{encoder_layer_forward.3} parent=1 // pred_check_branch
      %117 = sbr.rel (0) target = $region17
    $region16: #{encoder_layer_forward.3} parent=1 // pred_region
      _
    $region17: #{encoder_layer_forward.3} parent=1 // pred_fallthru
      _
    // Predicated region
    $region18: #{encoder_layer_forward.3} parent=1 // pred_check
      _
    $region19: #{encoder_layer_forward.3} parent=1 // pred_check_branch
      %119 = sbr.rel (0) target = $region21
    $region20: #{encoder_layer_forward.3} parent=1 // pred_region
      _
    $region21: #{encoder_layer_forward.3} parent=1 // pred_fallthru
      _
    %120 = vsyncpa [#allocation3], 1

// kernel: encoder_layer_forward.5
$region0: #{encoder_layer_forward.5}
  #allocation0 [shape = 'u32[]', space=smem, size = 0x4, offset = 0x4, fixed_abs, tag = 'smem constant byte address 0x4 - core index']
  #allocation1 [shape = 'u32[144,128]{1,0:T(1,128)}', space=vmem, size = 0x12000, scoped, tag = 'internal scratch']
  %s0 = inlined_call_operand.vmem [shape: f32[16,32], index: 0, kind: input, shape index: {}]
  %s1 = inlined_call_operand.vmem [shape: f32[16,32], index: 1, kind: input, shape index: {}]
  %s2 = inlined_call_operand.vmem [shape: f32[32,32], index: 2, kind: input, shape index: {}]
  %s3 = inlined_call_operand.vmem [shape: f32[1,32], index: 3, kind: input, shape index: {}]
  %s4 = inlined_call_operand.vmem [shape: f32[1,32], index: 4, kind: input, shape index: {}]
  %s5 = inlined_call_operand.vmem [shape: f32[1,32], index: 5, kind: input, shape index: {}]
  %s6 = inlined_call_operand.vmem [shape: f32[32,64], index: 6, kind: input, shape index: {}]
  %s7 = inlined_call_operand.vmem [shape: f32[1,64], index: 7, kind: input, shape index: {}]
  %s8 = inlined_call_operand.vmem [shape: f32[64,32], index: 8, kind: input, shape index: {}]
  %s9 = inlined_call_operand.vmem [shape: f32[1,32], index: 9, kind: input, shape index: {}]
  %s10 = inlined_call_operand.vmem [shape: f32[1,32], index: 10, kind: input, shape index: {}]
  %s11 = inlined_call_operand.vmem [shape: f32[1,32], index: 11, kind: input, shape index: {}]
  %s12 = inlined_call_operand.hbm [shape: f32[16,32], index: 12, kind: output, shape index: {}]
  %s13 = sld [smem:[#allocation0]]
  $region58: #{encoder_layer_forward.5} parent=0
    _
  %s15 = ssub.s32 1, %s13
  %s16 = scalar_select 0, %s15, %s13
  $region1: #{encoder_layer_forward.5} parent=0
    #allocation2 [shape = 'u8[8192]{0}', space=vmem, size = 0x2000, scoped, tag = 'output window, operand 0, single buffered']
    #allocation3 [shape = 's32[1]{0}', space=sflag, size = 0x4, scoped, tag = 'scoped memory for encoder_layer_forward.5']
    %17 = vsyncpa [#allocation3], 0
    // Predicated region
    $region2: #{encoder_layer_forward.5} parent=1 // pred_check
      _
    $region3: #{encoder_layer_forward.5} parent=1 // pred_check_branch
      %19 = sbr.rel (0) target = $region5
    $region4: #{encoder_layer_forward.5} parent=1 // pred_region
      _
    $region5: #{encoder_layer_forward.5} parent=1 // pred_fallthru
      _
    // Predicated region
    $region6: #{encoder_layer_forward.5} parent=1 // pred_check
      _
    $region7: #{encoder_layer_forward.5} parent=1 // pred_check_branch
      %21 = sbr.rel (0) target = $region9
    $region8: #{encoder_layer_forward.5} parent=1 // pred_region
      _
    $region9: #{encoder_layer_forward.5} parent=1 // pred_fallthru
      _
    // Predicated region
    $region10: #{encoder_layer_forward.5} parent=1 // pred_check
      _
    $region11: #{encoder_layer_forward.5} parent=1 // pred_check_branch
      %23 = sbr.rel (0) target = $region13
    $region12: #{encoder_layer_forward.5} parent=1 // pred_region
      _
    $region13: #{encoder_layer_forward.5} parent=1 // pred_fallthru
      _
    // Predicated region
    $region14: #{encoder_layer_forward.5} parent=1 // pred_check
      _
    $region15: #{encoder_layer_forward.5} parent=1 // pred_check_branch
      %25 = sbr.rel (0) target = $region17
    $region16: #{encoder_layer_forward.5} parent=1 // pred_region
      _
    $region17: #{encoder_layer_forward.5} parent=1 // pred_fallthru
      _
    // Predicated region
    $region18: #{encoder_layer_forward.5} parent=1 // pred_check
      _
    $region19: #{encoder_layer_forward.5} parent=1 // pred_check_branch
      %27 = sbr.rel (0) target = $region21
    $region20: #{encoder_layer_forward.5} parent=1 // pred_region
      _
    $region21: #{encoder_layer_forward.5} parent=1 // pred_fallthru
      _
    // Predicated region
    $region22: #{encoder_layer_forward.5} parent=1 // pred_check
      _
    $region23: #{encoder_layer_forward.5} parent=1 // pred_check_branch
      %29 = sbr.rel (0) target = $region25
    $region24: #{encoder_layer_forward.5} parent=1 // pred_region
      _
    $region25: #{encoder_layer_forward.5} parent=1 // pred_fallthru
      _
    // Predicated region
    $region26: #{encoder_layer_forward.5} parent=1 // pred_check
      _
    $region27: #{encoder_layer_forward.5} parent=1 // pred_check_branch
      %31 = sbr.rel (0) target = $region29
    $region28: #{encoder_layer_forward.5} parent=1 // pred_region
      _
    $region29: #{encoder_layer_forward.5} parent=1 // pred_fallthru
      _
    // Predicated region
    $region30: #{encoder_layer_forward.5} parent=1 // pred_check
      _
    $region31: #{encoder_layer_forward.5} parent=1 // pred_check_branch
      %33 = sbr.rel (0) target = $region33
    $region32: #{encoder_layer_forward.5} parent=1 // pred_region
      _
    $region33: #{encoder_layer_forward.5} parent=1 // pred_fallthru
      _
    // Predicated region
    $region34: #{encoder_layer_forward.5} parent=1 // pred_check
      _
    $region35: #{encoder_layer_forward.5} parent=1 // pred_check_branch
      %35 = sbr.rel (0) target = $region37
    $region36: #{encoder_layer_forward.5} parent=1 // pred_region
      _
    $region37: #{encoder_layer_forward.5} parent=1 // pred_fallthru
      _
    // Predicated region
    $region38: #{encoder_layer_forward.5} parent=1 // pred_check
      _
    $region39: #{encoder_layer_forward.5} parent=1 // pred_check_branch
      %37 = sbr.rel (0) target = $region41
    $region40: #{encoder_layer_forward.5} parent=1 // pred_region
      _
    $region41: #{encoder_layer_forward.5} parent=1 // pred_fallthru
      _
    // Predicated region
    $region42: #{encoder_layer_forward.5} parent=1 // pred_check
      _
    $region43: #{encoder_layer_forward.5} parent=1 // pred_check_branch
      %39 = sbr.rel (0) target = $region45
    $region44: #{encoder_layer_forward.5} parent=1 // pred_region
      _
    $region45: #{encoder_layer_forward.5} parent=1 // pred_fallthru
      _
    // Predicated region
    $region46: #{encoder_layer_forward.5} parent=1 // pred_check
      _
    $region47: #{encoder_layer_forward.5} parent=1 // pred_check_branch
      %41 = sbr.rel (0) target = $region49
    $region48: #{encoder_layer_forward.5} parent=1 // pred_region
      _
    $region49: #{encoder_layer_forward.5} parent=1 // pred_fallthru
      _
    %v42 = vld [vmem:[%s1] sm:$0xff]
    %v43 = vld [vmem:[%s1 + $0x8] sm:$0xff]
    %v44 = vld [vmem:[%s0] sm:$0xff]
    %v45 = vld [vmem:[%s0 + $0x8] sm:$0xff]
    %v46 = vld [vmem:[%s2] sm:$0xff]
    %v47 = vld [vmem:[%s2 + $0x8] sm:$0xff]
    %v48 = vld [vmem:[%s2 + $0x10] sm:$0xff]
    %v49 = vld [vmem:[%s2 + $0x18] sm:$0xff]
    %v50 = vld [vmem:[%s3] sm:$0x1]
    %v52 = vlaneseq
    %v53 = vshrl.u32 %v52, 7
    %v54 = vsub.s32 0, %v53
    %v55 = vrot.slane %v50, %v54
    %vm57 = vcmask 261120
    %v59 = vsel %vm57, %v44, 0
    %v62 = vsel %vm57, %v45, 0
    %64 = vmatprep.subr.mxu0 0.0
    %65 = vmatpush1.msra.mxu0 %v46
    %66 = vmatprep.subr.mxu0 0.0
    %67 = vmatpush1.msra.mxu0 %v47
    %68 = vmatprep.subr.mxu0 0.0
    %69 = vmatpush1.msra.mxu0 %v48
    %70 = vmatprep.subr.mxu0 0.0
    %71 = vmatpush1.msra.mxu0 %v49
    %72 = vmatprep.subr.mxu0 0.0
    %73 = vmatpush1.msra.mxu0 0.0
    %74 = vmatprep.subr.mxu0 0.0
    %75 = vmatpush1.msra.mxu0 0.0
    %76 = vmatprep.subr.mxu0 0.0
    %77 = vmatpush1.msra.mxu0 0.0
    %78 = vmatprep.subr.mxu0 0.0
    %79 = vmatpush1.msra.mxu0 0.0
    %80 = vmatprep.subr.mxu0 0.0
    %81 = vmatpush1.msra.mxu0 0.0
    %82 = vmatprep.subr.mxu0 0.0
    %83 = vmatpush1.msra.mxu0 0.0
    %84 = vmatprep.subr.mxu0 0.0
    %85 = vmatpush1.msra.mxu0 0.0
    %86 = vmatprep.subr.mxu0 0.0
    %87 = vmatpush1.msra.mxu0 0.0
    %88 = vmatprep.subr.mxu0 0.0
    %89 = vmatpush1.msra.mxu0 0.0
    %90 = vmatprep.subr.mxu0 0.0
    %91 = vmatpush1.msra.mxu0 0.0
    %92 = vmatprep.subr.mxu0 0.0
    %93 = vmatpush1.msra.mxu0 0.0
    %94 = vmatprep.subr.mxu0 0.0
    %95 = vmatpush1.msra.mxu0 0.0
    %96 = vmatprep.subr.mxu0 0.0
    %97 = vmatpush1.msra.mxu0 0.0
    %98 = vmatprep.subr.mxu0 0.0
    %99 = vmatpush1.msra.mxu0 0.0
    %100 = vmatprep.subr.mxu0 0.0
    %101 = vmatpush1.msra.mxu0 0.0
    %102 = vmatprep.subr.mxu0 0.0
    %103 = vmatpush1.msra.mxu0 0.0
    %104 = vmatprep.subr.mxu0 0.0
    %105 = vmatpush1.msra.mxu0 0.0
    %106 = vmatprep.subr.mxu0 0.0
    %107 = vmatpush1.msra.mxu0 0.0
    %108 = vmatprep.subr.mxu0 0.0
    %109 = vmatpush1.msra.mxu0 0.0
    %110 = vmatprep.subr.mxu0 0.0
    %111 = vmatpush1.msra.mxu0 0.0
    %112 = vmatprep.subr.mxu0 0.0
    %113 = vmatpush1.msra.mxu0 0.0
    %114 = vmatprep.subr.mxu0 0.0
    %115 = vmatpush1.msra.mxu0 0.0
    %116 = vmatprep.subr.mxu0 0.0
    %117 = vmatpush1.msra.mxu0 0.0
    %118 = vmatprep.subr.mxu0 0.0
    %119 = vmatpush1.msra.mxu0 0.0
    %120 = vmatprep.subr.mxu0 0.0
    %121 = vmatpush1.msra.mxu0 0.0
    %122 = vmatprep.subr.mxu0 0.0
    %123 = vmatpush1.msra.mxu0 0.0
    %124 = vmatprep.subr.mxu0 0.0
    %125 = vmatpush1.msra.mxu0 0.0
    %126 = vmatprep.subr.mxu0 0.0
    %127 = vmatpush1.msra.mxu0 0.0
    %128 = vmatprep.mubr.f32.mxu0 0.0
    %129 = vmatmul.mubr.f32.gmra.mrb[0].mxu0 %v59
    %v130 = vpop.f32.mrb[0].mxu0
    %v131 = vadd.f32 %v55, %v130
    %v132 = vpop.f32.mrb[0].mxu0
    %133 = vmatprep.mubr.f32.mxu0 0.0
    %134 = vmatmul.mubr.f32.gmra.mrb[0].mxu0 %v62
    %v135 = vpop.f32.mrb[0].mxu0
    %v136 = vadd.f32 %v55, %v135
    %v137 = vpop.f32.mrb[0].mxu0
    %138 = vdwg.mxu0
    %v139 = vadd.f32 %v42, %v131
    %v140 = vadd.f32 %v43, %v136
    %v141 = vld [vmem:[%s4] sm:$0x1]
    %v142 = vld [vmem:[%s5] sm:$0x1]
    %v143 = vsel %vm57, %v139, 0.0
    %144 = vadd.xlane.f32.xlu0 %v143
    %v145 = vpop.xlane.xlu0 %144
    %v146 = vsel %vm57, %v140, 0.0
    %147 = vadd.xlane.f32.xlu0 %v146
    %v148 = vpop.xlane.xlu0 %147
    %v149 = vrcp.pop 32.0
    %v150 = vmul.f32 %v145, %v149
    %v151 = vmul.f32 %v148, %v149
    %v152 = vmul.f32 %v139, %v139
    %v153 = vmul.f32 %v140, %v140
    %v154 = vsel %vm57, %v152, 0.0
    %155 = vadd.xlane.f32.xlu0 %v154
    %v156 = vpop.xlane.xlu0 %155
    %v157 = vsel %vm57, %v153, 0.0
    %158 = vadd.xlane.f32.xlu0 %v157
    %v159 = vpop.xlane.xlu0 %158
    %v160 = vmul.f32 %v156, %v149
    %v161 = vmul.f32 %v159, %v149
    %v162 = vmul.f32 %v150, %v150
    %v163 = vmul.f32 %v151, %v151
    %v164 = vsub.f32 %v160, %v162
    %v165 = vsub.f32 %v161, %v163
    %v166 = vmax.f32 %v164, 0.0
    %v167 = vmax.f32 %v165, 0.0
    %v168 = vsub.f32 %v139, %v150
    %v169 = vsub.f32 %v140, %v151
    %v170 = vadd.f32 %v166, 1e-06
    %v171 = vadd.f32 %v167, 1e-06
    %v172 = vrsqrt.pop %v170
    %v173 = vrsqrt.pop %v171
    %v174 = vmul.f32 %v168, %v172
    %v175 = vmul.f32 %v169, %v173
    %v177 = vlaneseq
    %v178 = vshrl.u32 %v177, 7
    %v179 = vsub.s32 0, %v178
    %v180 = vrot.slane %v141, %v179
    %v182 = vmul.f32 %v174, %v180
    %v183 = vmul.f32 %v175, %v180
    %v185 = vlaneseq
    %v186 = vshrl.u32 %v185, 7
    %v187 = vsub.s32 0, %v186
    %v188 = vrot.slane %v142, %v187
    %v190 = vadd.f32 %v182, %v188
    %v191 = vadd.f32 %v183, %v188
    %v192 = vld [vmem:[%s6] sm:$0xff]
    %v193 = vld [vmem:[%s6 + $0x8] sm:$0xff]
    %v194 = vld [vmem:[%s6 + $0x10] sm:$0xff]
    %v195 = vld [vmem:[%s6 + $0x18] sm:$0xff]
    %v196 = vld [vmem:[%s7] sm:$0x1]
    %v198 = vlaneseq
    %v199 = vshrl.u32 %v198, 7
    %v200 = vsub.s32 0, %v199
    %v201 = vrot.slane %v196, %v200
    %v204 = vsel %vm57, %v190, 0
    %v207 = vsel %vm57, %v191, 0
    %209 = vmatprep.subr.mxu0 0.0
    %210 = vmatpush1.msra.mxu0 %v192
    %211 = vmatprep.subr.mxu0 0.0
    %212 = vmatpush1.msra.mxu0 %v193
    %213 = vmatprep.subr.mxu0 0.0
    %214 = vmatpush1.msra.mxu0 %v194
    %215 = vmatprep.subr.mxu0 0.0
    %216 = vmatpush1.msra.mxu0 %v195
    %217 = vmatprep.subr.mxu0 0.0
    %218 = vmatpush1.msra.mxu0 0.0
    %219 = vmatprep.subr.mxu0 0.0
    %220 = vmatpush1.msra.mxu0 0.0
    %221 = vmatprep.subr.mxu0 0.0
    %222 = vmatpush1.msra.mxu0 0.0
    %223 = vmatprep.subr.mxu0 0.0
    %224 = vmatpush1.msra.mxu0 0.0
    %225 = vmatprep.subr.mxu0 0.0
    %226 = vmatpush1.msra.mxu0 0.0
    %227 = vmatprep.subr.mxu0 0.0
    %228 = vmatpush1.msra.mxu0 0.0
    %229 = vmatprep.subr.mxu0 0.0
    %230 = vmatpush1.msra.mxu0 0.0
    %231 = vmatprep.subr.mxu0 0.0
    %232 = vmatpush1.msra.mxu0 0.0
    %233 = vmatprep.subr.mxu0 0.0
    %234 = vmatpush1.msra.mxu0 0.0
    %235 = vmatprep.subr.mxu0 0.0
    %236 = vmatpush1.msra.mxu0 0.0
    %237 = vmatprep.subr.mxu0 0.0
    %238 = vmatpush1.msra.mxu0 0.0
    %239 = vmatprep.subr.mxu0 0.0
    %240 = vmatpush1.msra.mxu0 0.0
    %241 = vmatprep.subr.mxu0 0.0
    %242 = vmatpush1.msra.mxu0 0.0
    %243 = vmatprep.subr.mxu0 0.0
    %244 = vmatpush1.msra.mxu0 0.0
    %245 = vmatprep.subr.mxu0 0.0
    %246 = vmatpush1.msra.mxu0 0.0
    %247 = vmatprep.subr.mxu0 0.0
    %248 = vmatpush1.msra.mxu0 0.0
    %249 = vmatprep.subr.mxu0 0.0
    %250 = vmatpush1.msra.mxu0 0.0
    %251 = vmatprep.subr.mxu0 0.0
    %252 = vmatpush1.msra.mxu0 0.0
    %253 = vmatprep.subr.mxu0 0.0
    %254 = vmatpush1.msra.mxu0 0.0
    %255 = vmatprep.subr.mxu0 0.0
    %256 = vmatpush1.msra.mxu0 0.0
    %257 = vmatprep.subr.mxu0 0.0
    %258 = vmatpush1.msra.mxu0 0.0
    %259 = vmatprep.subr.mxu0 0.0
    %260 = vmatpush1.msra.mxu0 0.0
    %261 = vmatprep.subr.mxu0 0.0
    %262 = vmatpush1.msra.mxu0 0.0
    %263 = vmatprep.subr.mxu0 0.0
    %264 = vmatpush1.msra.mxu0 0.0
    %265 = vmatprep.subr.mxu0 0.0
    %266 = vmatpush1.msra.mxu0 0.0
    %267 = vmatprep.subr.mxu0 0.0
    %268 = vmatpush1.msra.mxu0 0.0
    %269 = vmatprep.subr.mxu0 0.0
    %270 = vmatpush1.msra.mxu0 0.0
    %271 = vmatprep.subr.mxu0 0.0
    %272 = vmatpush1.msra.mxu0 0.0
    %273 = vmatprep.mubr.f32.mxu0 0.0
    %274 = vmatmul.mubr.f32.gmra.mrb[0].mxu0 %v204
    %v275 = vpop.f32.mrb[0].mxu0
    %v276 = vadd.f32 %v201, %v275
    %v277 = vpop.f32.mrb[0].mxu0
    %278 = vmatprep.mubr.f32.mxu0 0.0
    %279 = vmatmul.mubr.f32.gmra.mrb[0].mxu0 %v207
    %v280 = vpop.f32.mrb[0].mxu0
    %v281 = vadd.f32 %v201, %v280
    %v282 = vpop.f32.mrb[0].mxu0
    %283 = vdwg.mxu0
    %v284 = vld [vmem:[%s8] sm:$0xff]
    %v285 = vld [vmem:[%s8 + $0x8] sm:$0xff]
    %v286 = vld [vmem:[%s8 + $0x10] sm:$0xff]
    %v287 = vld [vmem:[%s8 + $0x18] sm:$0xff]
    %v288 = vld [vmem:[%s8 + $0x20] sm:$0xff]
    %v289 = vld [vmem:[%s8 + $0x28] sm:$0xff]
    %v290 = vld [vmem:[%s8 + $0x30] sm:$0xff]
    %v291 = vld [vmem:[%s8 + $0x38] sm:$0xff]
    %v292 = vld [vmem:[%s9] sm:$0x1]
    %v294 = vlaneseq
    %v295 = vshrl.u32 %v294, 7
    %v296 = vsub.s32 0, %v295
    %v297 = vrot.slane %v292, %v296
    %vm299 = vcmask 523264
    %v301 = vsel %vm299, %v276, 0
    %v304 = vsel %vm299, %v281, 0
    %306 = vmatprep.subr.mxu0 0.0
    %307 = vmatpush1.msra.mxu0 %v284
    %308 = vmatprep.subr.mxu0 0.0
    %309 = vmatpush1.msra.mxu0 %v285
    %310 = vmatprep.subr.mxu0 0.0
    %311 = vmatpush1.msra.mxu0 %v286
    %312 = vmatprep.subr.mxu0 0.0
    %313 = vmatpush1.msra.mxu0 %v287
    %314 = vmatprep.subr.mxu0 0.0
    %315 = vmatpush1.msra.mxu0 %v288
    %316 = vmatprep.subr.mxu0 0.0
    %317 = vmatpush1.msra.mxu0 %v289
    %318 = vmatprep.subr.mxu0 0.0
    %319 = vmatpush1.msra.mxu0 %v290
    %320 = vmatprep.subr.mxu0 0.0
    %321 = vmatpush1.msra.mxu0 %v291
    %322 = vmatprep.subr.mxu0 0.0
    %323 = vmatpush1.msra.mxu0 0.0
    %324 = vmatprep.subr.mxu0 0.0
    %325 = vmatpush1.msra.mxu0 0.0
    %326 = vmatprep.subr.mxu0 0.0
    %327 = vmatpush1.msra.mxu0 0.0
    %328 = vmatprep.subr.mxu0 0.0
    %329 = vmatpush1.msra.mxu0 0.0
    %330 = vmatprep.subr.mxu0 0.0
    %331 = vmatpush1.msra.mxu0 0.0
    %332 = vmatprep.subr.mxu0 0.0
    %333 = vmatpush1.msra.mxu0 0.0
    %334 = vmatprep.subr.mxu0 0.0
    %335 = vmatpush1.msra.mxu0 0.0
    %336 = vmatprep.subr.mxu0 0.0
    %337 = vmatpush1.msra.mxu0 0.0
    %338 = vmatprep.subr.mxu0 0.0
    %339 = vmatpush1.msra.mxu0 0.0
    %340 = vmatprep.subr.mxu0 0.0
    %341 = vmatpush1.msra.mxu0 0.0
    %342 = vmatprep.subr.mxu0 0.0
    %343 = vmatpush1.msra.mxu0 0.0
    %344 = vmatprep.subr.mxu0 0.0
    %345 = vmatpush1.msra.mxu0 0.0
    %346 = vmatprep.subr.mxu0 0.0
    %347 = vmatpush1.msra.mxu0 0.0
    %348 = vmatprep.subr.mxu0 0.0
    %349 = vmatpush1.msra.mxu0 0.0
    %350 = vmatprep.subr.mxu0 0.0
    %351 = vmatpush1.msra.mxu0 0.0
    %352 = vmatprep.subr.mxu0 0.0
    %353 = vmatpush1.msra.mxu0 0.0
    %354 = vmatprep.subr.mxu0 0.0
    %355 = vmatpush1.msra.mxu0 0.0
    %356 = vmatprep.subr.mxu0 0.0
    %357 = vmatpush1.msra.mxu0 0.0
    %358 = vmatprep.subr.mxu0 0.0
    %359 = vmatpush1.msra.mxu0 0.0
    %360 = vmatprep.subr.mxu0 0.0
    %361 = vmatpush1.msra.mxu0 0.0
    %362 = vmatprep.subr.mxu0 0.0
    %363 = vmatpush1.msra.mxu0 0.0
    %364 = vmatprep.subr.mxu0 0.0
    %365 = vmatpush1.msra.mxu0 0.0
    %366 = vmatprep.subr.mxu0 0.0
    %367 = vmatpush1.msra.mxu0 0.0
    %368 = vmatprep.subr.mxu0 0.0
    %369 = vmatpush1.msra.mxu0 0.0
    %370 = vmatprep.mubr.f32.mxu0 0.0
    %371 = vmatmul.mubr.f32.gmra.mrb[0].mxu0 %v301
    %v372 = vpop.f32.mrb[0].mxu0
    %v373 = vadd.f32 %v297, %v372
    %v374 = vpop.f32.mrb[0].mxu0
    %375 = vmatprep.mubr.f32.mxu0 0.0
    %376 = vmatmul.mubr.f32.gmra.mrb[0].mxu0 %v304
    %v377 = vpop.f32.mrb[0].mxu0
    %v378 = vadd.f32 %v297, %v377
    %v379 = vpop.f32.mrb[0].mxu0
    %380 = vdwg.mxu0
    %v381 = vmax.f32 %v373, 0.0
    %v382 = vmax.f32 %v378, 0.0
    %v383 = vadd.f32 %v190, %v381
    %v384 = vadd.f32 %v191, %v382
    %v385 = vld [vmem:[%s10] sm:$0x1]
    %v386 = vld [vmem:[%s11] sm:$0x1]
    %v387 = vsel %vm57, %v383, 0.0
    %388 = vadd.xlane.f32.xlu0 %v387
    %v389 = vpop.xlane.xlu0 %388
    %v390 = vsel %vm57, %v384, 0.0
    %391 = vadd.xlane.f32.xlu0 %v390
    %v392 = vpop.xlane.xlu0 %391
    %v393 = vmul.f32 %v389, %v149
    %v394 = vmul.f32 %v392, %v149
    %v395 = vmul.f32 %v383, %v383
    %v396 = vmul.f32 %v384, %v384
    %v397 = vsel %vm57, %v395, 0.0
    %398 = vadd.xlane.f32.xlu0 %v397
    %v399 = vpop.xlane.xlu0 %398
    %v400 = vsel %vm57, %v396, 0.0
    %401 = vadd.xlane.f32.xlu0 %v400
    %v402 = vpop.xlane.xlu0 %401
    %v403 = vmul.f32 %v399, %v149
    %v404 = vmul.f32 %v402, %v149
    %v405 = vmul.f32 %v393, %v393
    %v406 = vmul.f32 %v394, %v394
    %v407 = vsub.f32 %v403, %v405
    %v408 = vsub.f32 %v404, %v406
    %v409 = vmax.f32 %v407, 0.0
    %v410 = vmax.f32 %v408, 0.0
    %v411 = vsub.f32 %v383, %v393
    %v412 = vsub.f32 %v384, %v394
    %v413 = vadd.f32 %v409, 1e-06
    %v414 = vadd.f32 %v410, 1e-06
    %v415 = vrsqrt.pop %v413
    %v416 = vrsqrt.pop %v414
    %v417 = vmul.f32 %v411, %v415
    %v418 = vmul.f32 %v412, %v416
    %v420 = vlaneseq
    %v421 = vshrl.u32 %v420, 7
    %v422 = vsub.s32 0, %v421
    %v423 = vrot.slane %v385, %v422
    %v425 = vmul.f32 %v417, %v423
    %v426 = vmul.f32 %v418, %v423
    %v428 = vlaneseq
    %v429 = vshrl.u32 %v428, 7
    %v430 = vsub.s32 0, %v429
    %v431 = vrot.slane %v386, %v430
    %v433 = vadd.f32 %v425, %v431
    %v434 = vadd.f32 %v426, %v431
    %435 = vst.msk [vmem:[#allocation2] sm:$0xff] %vm57, %v433
    %436 = vst.msk [vmem:[#allocation2 + $0x8] sm:$0xff] %vm57, %v434
    // Predicated region
    $region50: #{encoder_layer_forward.5} parent=1 // pred_check
      _
    $region51: #{encoder_layer_forward.5} parent=1 // pred_check_branch
      %438 = sbr.rel (0) target = $region53
    $region52: #{encoder_layer_forward.5} parent=1 // pred_region
      %s440 = ssub.s32 256, 256
      %441 = vsyncadd [#allocation3], %s440
      %s442 = sshll.u32 [#allocation2], 4
      %s443 = int_to_ptr.vmem [resolvable:$true] %s442
      %448 = dma.vmem_to_hbm [thread:$0]  %s443, 256, %s12, [#allocation3], 128, 128, 8
    $region53: #{encoder_layer_forward.5} parent=1 // pred_fallthru
      _
    // Predicated region
    $region54: #{encoder_layer_forward.5} parent=1 // pred_check
      _
    $region55: #{encoder_layer_forward.5} parent=1 // pred_check_branch
      %450 = sbr.rel (0) target = $region57
    $region56: #{encoder_layer_forward.5} parent=1 // pred_region
      %451 = dma.done [#allocation3], 256
    $region57: #{encoder_layer_forward.5} parent=1 // pred_fallthru
      _
    %452 = vsyncpa [#allocation3], 1

// kernel: encoder_layer_forward.4
$region0: #{encoder_layer_forward.4}
  #allocation0 [shape = 'u32[]', space=smem, size = 0x4, offset = 0x4, fixed_abs, tag = 'smem constant byte address 0x4 - core index']
  #allocation1 [shape = 'u32[144,128]{1,0:T(1,128)}', space=vmem, size = 0x12000, scoped, tag = 'internal scratch']
  %s0 = inlined_call_operand.vmem [shape: f32[16,8,4], index: 0, kind: input, shape index: {}]
  %s1 = inlined_call_operand.vmem [shape: f32[16,8,4], index: 1, kind: input, shape index: {}]
  %s2 = inlined_call_operand.vmem [shape: f32[16,8,4], index: 2, kind: input, shape index: {}]
  %s3 = inlined_call_operand.vmem [shape: f32[16,8,4], index: 3, kind: output, shape index: {}]
  %s4 = sld [smem:[#allocation0]]
  $region22: #{encoder_layer_forward.4} parent=0
    _
  %s6 = ssub.s32 1, %s4
  %s7 = scalar_select 0, %s6, %s4
  // Predicated region
  $region2: #{encoder_layer_forward.4} parent=0 // pred_check
    _
  $region3: #{encoder_layer_forward.4} parent=0 // pred_check_branch
    %9 = sbr.rel (0) target = $region5
  $region4: #{encoder_layer_forward.4} parent=0 // pred_region
    _
  $region5: #{encoder_layer_forward.4} parent=0 // pred_fallthru
    _
  // Predicated region
  $region6: #{encoder_layer_forward.4} parent=0 // pred_check
    _
  $region7: #{encoder_layer_forward.4} parent=0 // pred_check_branch
    %11 = sbr.rel (0) target = $region9
  $region8: #{encoder_layer_forward.4} parent=0 // pred_region
    _
  $region9: #{encoder_layer_forward.4} parent=0 // pred_fallthru
    _
  // Predicated region
  $region10: #{encoder_layer_forward.4} parent=0 // pred_check
    _
  $region11: #{encoder_layer_forward.4} parent=0 // pred_check_branch
    %13 = sbr.rel (0) target = $region13
  $region12: #{encoder_layer_forward.4} parent=0 // pred_region
    _
  $region13: #{encoder_layer_forward.4} parent=0 // pred_fallthru
    _
  %v14 = vld [vmem:[%s0] sm:$0xff]
  %v15 = vld [vmem:[%s0 + $0x8] sm:$0xff]
  %v16 = vld [vmem:[%s0 + $0x10] sm:$0xff]
  %v17 = vld [vmem:[%s0 + $0x18] sm:$0xff]
  %v18 = vld [vmem:[%s0 + $0x20] sm:$0xff]
  %v19 = vld [vmem:[%s0 + $0x28] sm:$0xff]
  %v20 = vld [vmem:[%s0 + $0x30] sm:$0xff]
  %v21 = vld [vmem:[%s0 + $0x38] sm:$0xff]
  %v22 = vld [vmem:[%s0 + $0x40] sm:$0xff]
  %v23 = vld [vmem:[%s0 + $0x48] sm:$0xff]
  %v24 = vld [vmem:[%s0 + $0x50] sm:$0xff]
  %v25 = vld [vmem:[%s0 + $0x58] sm:$0xff]
  %v26 = vld [vmem:[%s0 + $0x60] sm:$0xff]
  %v27 = vld [vmem:[%s0 + $0x68] sm:$0xff]
  %v28 = vld [vmem:[%s0 + $0x70] sm:$0xff]
  %v29 = vld [vmem:[%s0 + $0x78] sm:$0xff]
  %v30 = vld [vmem:[%s1] sm:$0xff]
  %v31 = vld [vmem:[%s1 + $0x8] sm:$0xff]
  %v32 = vld [vmem:[%s1 + $0x10] sm:$0xff]
  %v33 = vld [vmem:[%s1 + $0x18] sm:$0xff]
  %v34 = vld [vmem:[%s1 + $0x20] sm:$0xff]
  %v35 = vld [vmem:[%s1 + $0x28] sm:$0xff]
  %v36 = vld [vmem:[%s1 + $0x30] sm:$0xff]
  %v37 = vld [vmem:[%s1 + $0x38] sm:$0xff]
  %v38 = vld [vmem:[%s1 + $0x40] sm:$0xff]
  %v39 = vld [vmem:[%s1 + $0x48] sm:$0xff]
  %v40 = vld [vmem:[%s1 + $0x50] sm:$0xff]
  %v41 = vld [vmem:[%s1 + $0x58] sm:$0xff]
  %v42 = vld [vmem:[%s1 + $0x60] sm:$0xff]
  %v43 = vld [vmem:[%s1 + $0x68] sm:$0xff]
  %v44 = vld [vmem:[%s1 + $0x70] sm:$0xff]
  %v45 = vld [vmem:[%s1 + $0x78] sm:$0xff]
  %v46 = vld [vmem:[%s2] sm:$0xff]
  %v47 = vld [vmem:[%s2 + $0x8] sm:$0xff]
  %v48 = vld [vmem:[%s2 + $0x10] sm:$0xff]
  %v49 = vld [vmem:[%s2 + $0x18] sm:$0xff]
  %v50 = vld [vmem:[%s2 + $0x20] sm:$0xff]
  %v51 = vld [vmem:[%s2 + $0x28] sm:$0xff]
  %v52 = vld [vmem:[%s2 + $0x30] sm:$0xff]
  %v53 = vld [vmem:[%s2 + $0x38] sm:$0xff]
  %v54 = vld [vmem:[%s2 + $0x40] sm:$0xff]
  %v55 = vld [vmem:[%s2 + $0x48] sm:$0xff]
  %v56 = vld [vmem:[%s2 + $0x50] sm:$0xff]
  %v57 = vld [vmem:[%s2 + $0x58] sm:$0xff]
  %v58 = vld [vmem:[%s2 + $0x60] sm:$0xff]
  %v59 = vld [vmem:[%s2 + $0x68] sm:$0xff]
  %v60 = vld [vmem:[%s2 + $0x70] sm:$0xff]
  %v61 = vld [vmem:[%s2 + $0x78] sm:$0xff]
  %vm62 = vcmask 31744
  %v64 = vsel %vm62, %v14, 0
  %v67 = vsel %vm62, %v30, 0
  %69 = vmatprep.subr.mxu0 0.0
  %70 = vmatpush1.xpose.msra.mxu0 %v67
  %71 = vmatprep.subr.mxu0 0.0
  %72 = vmatpush1.xpose.msra.mxu0 0.0
  %73 = vmatprep.subr.mxu0 0.0
  %74 = vmatpush1.xpose.msra.mxu0 0.0
  %75 = vmatprep.subr.mxu0 0.0
  %76 = vmatpush1.xpose.msra.mxu0 0.0
  %77 = vmatprep.subr.mxu0 0.0
  %78 = vmatpush1.xpose.msra.mxu0 0.0
  %79 = vmatprep.subr.mxu0 0.0
  %80 = vmatpush1.xpose.msra.mxu0 0.0
  %81 = vmatprep.subr.mxu0 0.0
  %82 = vmatpush1.xpose.msra.mxu0 0.0
  %83 = vmatprep.subr.mxu0 0.0
  %84 = vmatpush1.xpose.msra.mxu0 0.0
  %85 = vmatprep.subr.mxu0 0.0
  %86 = vmatpush1.xpose.msra.mxu0 0.0
  %87 = vmatprep.subr.mxu0 0.0
  %88 = vmatpush1.xpose.msra.mxu0 0.0
  %89 = vmatprep.subr.mxu0 0.0
  %90 = vmatpush1.xpose.msra.mxu0 0.0
  %91 = vmatprep.subr.mxu0 0.0
  %92 = vmatpush1.xpose.msra.mxu0 0.0
  %93 = vmatprep.subr.mxu0 0.0
  %94 = vmatpush1.xpose.msra.mxu0 0.0
  %95 = vmatprep.subr.mxu0 0.0
  %96 = vmatpush1.xpose.msra.mxu0 0.0
  %97 = vmatprep.subr.mxu0 0.0
  %98 = vmatpush1.xpose.msra.mxu0 0.0
  %99 = vmatprep.subr.mxu0 0.0
  %100 = vmatpush1.xpose.msra.mxu0 0.0
  %101 = vmatprep.subr.mxu0 0.0
  %102 = vmatpush1.xpose.msra.mxu0 0.0
  %103 = vmatprep.subr.mxu0 0.0
  %104 = vmatpush1.xpose.msra.mxu0 0.0
  %105 = vmatprep.subr.mxu0 0.0
  %106 = vmatpush1.xpose.msra.mxu0 0.0
  %107 = vmatprep.subr.mxu0 0.0
  %108 = vmatpush1.xpose.msra.mxu0 0.0
  %109 = vmatprep.subr.mxu0 0.0
  %110 = vmatpush1.xpose.msra.mxu0 0.0
  %111 = vmatprep.subr.mxu0 0.0
  %112 = vmatpush1.xpose.msra.mxu0 0.0
  %113 = vmatprep.subr.mxu0 0.0
  %114 = vmatpush1.xpose.msra.mxu0 0.0
  %115 = vmatprep.subr.mxu0 0.0
  %116 = vmatpush1.xpose.msra.mxu0 0.0
  %117 = vmatprep.subr.mxu0 0.0
  %118 = vmatpush1.xpose.msra.mxu0 0.0
  %119 = vmatprep.subr.mxu0 0.0
  %120 = vmatpush1.xpose.msra.mxu0 0.0
  %121 = vmatprep.subr.mxu0 0.0
  %122 = vmatpush1.xpose.msra.mxu0 0.0
  %123 = vmatprep.subr.mxu0 0.0
  %124 = vmatpush1.xpose.msra.mxu0 0.0
  %125 = vmatprep.subr.mxu0 0.0
  %126 = vmatpush1.xpose.msra.mxu0 0.0
  %127 = vmatprep.subr.mxu0 0.0
  %128 = vmatpush1.xpose.msra.mxu0 0.0
  %129 = vmatprep.subr.mxu0 0.0
  %130 = vmatpush1.xpose.msra.mxu0 0.0
  %131 = vmatprep.subr.mxu0 0.0
  %132 = vmatpush1.xpose.msra.mxu0 0.0
  %133 = vmatprep.mubr.f32.mxu0 0.0
  %134 = vmatmul.mubr.f32.gmra.mrb[0].mxu0 %v64
  %v135 = vpop.f32.mrb[0].mxu0
  %v136 = vadd.f32 0.0, %v135
  %v137 = vpop.f32.mrb[0].mxu0
  %138 = vdwg.mxu0
  %v140 = vsel %vm62, %v15, 0
  %v143 = vsel %vm62, %v31, 0
  %145 = vmatprep.subr.mxu0 0.0
  %146 = vmatpush1.xpose.msra.mxu0 %v143
  %147 = vmatprep.subr.mxu0 0.0
  %148 = vmatpush1.xpose.msra.mxu0 0.0
  %149 = vmatprep.subr.mxu0 0.0
  %150 = vmatpush1.xpose.msra.mxu0 0.0
  %151 = vmatprep.subr.mxu0 0.0
  %152 = vmatpush1.xpose.msra.mxu0 0.0
  %153 = vmatprep.subr.mxu0 0.0
  %154 = vmatpush1.xpose.msra.mxu0 0.0
  %155 = vmatprep.subr.mxu0 0.0
  %156 = vmatpush1.xpose.msra.mxu0 0.0
  %157 = vmatprep.subr.mxu0 0.0
  %158 = vmatpush1.xpose.msra.mxu0 0.0
  %159 = vmatprep.subr.mxu0 0.0
  %160 = vmatpush1.xpose.msra.mxu0 0.0
  %161 = vmatprep.subr.mxu0 0.0
  %162 = vmatpush1.xpose.msra.mxu0 0.0
  %163 = vmatprep.subr.mxu0 0.0
  %164 = vmatpush1.xpose.msra.mxu0 0.0
  %165 = vmatprep.subr.mxu0 0.0
  %166 = vmatpush1.xpose.msra.mxu0 0.0
  %167 = vmatprep.subr.mxu0 0.0
  %168 = vmatpush1.xpose.msra.mxu0 0.0
  %169 = vmatprep.subr.mxu0 0.0
  %170 = vmatpush1.xpose.msra.mxu0 0.0
  %171 = vmatprep.subr.mxu0 0.0
  %172 = vmatpush1.xpose.msra.mxu0 0.0
  %173 = vmatprep.subr.mxu0 0.0
  %174 = vmatpush1.xpose.msra.mxu0 0.0
  %175 = vmatprep.subr.mxu0 0.0
  %176 = vmatpush1.xpose.msra.mxu0 0.0
  %177 = vmatprep.subr.mxu0 0.0
  %178 = vmatpush1.xpose.msra.mxu0 0.0
  %179 = vmatprep.subr.mxu0 0.0
  %180 = vmatpush1.xpose.msra.mxu0 0.0
  %181 = vmatprep.subr.mxu0 0.0
  %182 = vmatpush1.xpose.msra.mxu0 0.0
  %183 = vmatprep.subr.mxu0 0.0
  %184 = vmatpush1.xpose.msra.mxu0 0.0
  %185 = vmatprep.subr.mxu0 0.0
  %186 = vmatpush1.xpose.msra.mxu0 0.0
  %187 = vmatprep.subr.mxu0 0.0
  %188 = vmatpush1.xpose.msra.mxu0 0.0
  %189 = vmatprep.subr.mxu0 0.0
  %190 = vmatpush1.xpose.msra.mxu0 0.0
  %191 = vmatprep.subr.mxu0 0.0
  %192 = vmatpush1.xpose.msra.mxu0 0.0
  %193 = vmatprep.subr.mxu0 0.0
  %194 = vmatpush1.xpose.msra.mxu0 0.0
  %195 = vmatprep.subr.mxu0 0.0
  %196 = vmatpush1.xpose.msra.mxu0 0.0
  %197 = vmatprep.subr.mxu0 0.0
  %198 = vmatpush1.xpose.msra.mxu0 0.0
  %199 = vmatprep.subr.mxu0 0.0
  %200 = vmatpush1.xpose.msra.mxu0 0.0
  %201 = vmatprep.subr.mxu0 0.0
  %202 = vmatpush1.xpose.msra.mxu0 0.0
  %203 = vmatprep.subr.mxu0 0.0
  %204 = vmatpush1.xpose.msra.mxu0 0.0
  %205 = vmatprep.subr.mxu0 0.0
  %206 = vmatpush1.xpose.msra.mxu0 0.0
  %207 = vmatprep.subr.mxu0 0.0
  %208 = vmatpush1.xpose.msra.mxu0 0.0
  %209 = vmatprep.mubr.f32.mxu0 0.0
  %210 = vmatmul.mubr.f32.gmra.mrb[0].mxu0 %v140
  %v211 = vpop.f32.mrb[0].mxu0
  %v212 = vadd.f32 0.0, %v211
  %v213 = vpop.f32.mrb[0].mxu0
  %214 = vdwg.mxu0
  %v216 = vsel %vm62, %v16, 0
  %v219 = vsel %vm62, %v32, 0
  %221 = vmatprep.subr.mxu0 0.0
  %222 = vmatpush1.xpose.msra.mxu0 %v219
  %223 = vmatprep.subr.mxu0 0.0
  %224 = vmatpush1.xpose.msra.mxu0 0.0
  %225 = vmatprep.subr.mxu0 0.0
  %226 = vmatpush1.xpose.msra.mxu0 0.0
  %227 = vmatprep.subr.mxu0 0.0
  %228 = vmatpush1.xpose.msra.mxu0 0.0
  %229 = vmatprep.subr.mxu0 0.0
  %230 = vmatpush1.xpose.msra.mxu0 0.0
  %231 = vmatprep.subr.mxu0 0.0
  %232 = vmatpush1.xpose.msra.mxu0 0.0
  %233 = vmatprep.subr.mxu0 0.0
  %234 = vmatpush1.xpose.msra.mxu0 0.0
  %235 = vmatprep.subr.mxu0 0.0
  %236 = vmatpush1.xpose.msra.mxu0 0.0
  %237 = vmatprep.subr.mxu0 0.0
  %238 = vmatpush1.xpose.msra.mxu0 0.0
  %239 = vmatprep.subr.mxu0 0.0
  %240 = vmatpush1.xpose.msra.mxu0 0.0
  %241 = vmatprep.subr.mxu0 0.0
  %242 = vmatpush1.xpose.msra.mxu0 0.0
  %243 = vmatprep.subr.mxu0 0.0
  %244 = vmatpush1.xpose.msra.mxu0 0.0
  %245 = vmatprep.subr.mxu0 0.0
  %246 = vmatpush1.xpose.msra.mxu0 0.0
  %247 = vmatprep.subr.mxu0 0.0
  %248 = vmatpush1.xpose.msra.mxu0 0.0
  %249 = vmatprep.subr.mxu0 0.0
  %250 = vmatpush1.xpose.msra.mxu0 0.0
  %251 = vmatprep.subr.mxu0 0.0
  %252 = vmatpush1.xpose.msra.mxu0 0.0
  %253 = vmatprep.subr.mxu0 0.0
  %254 = vmatpush1.xpose.msra.mxu0 0.0
  %255 = vmatprep.subr.mxu0 0.0
  %256 = vmatpush1.xpose.msra.mxu0 0.0
  %257 = vmatprep.subr.mxu0 0.0
  %258 = vmatpush1.xpose.msra.mxu0 0.0
  %259 = vmatprep.subr.mxu0 0.0
  %260 = vmatpush1.xpose.msra.mxu0 0.0
  %261 = vmatprep.subr.mxu0 0.0
  %262 = vmatpush1.xpose.msra.mxu0 0.0
  %263 = vmatprep.subr.mxu0 0.0
  %264 = vmatpush1.xpose.msra.mxu0 0.0
  %265 = vmatprep.subr.mxu0 0.0
  %266 = vmatpush1.xpose.msra.mxu0 0.0
  %267 = vmatprep.subr.mxu0 0.0
  %268 = vmatpush1.xpose.msra.mxu0 0.0
  %269 = vmatprep.subr.mxu0 0.0
  %270 = vmatpush1.xpose.msra.mxu0 0.0
  %271 = vmatprep.subr.mxu0 0.0
  %272 = vmatpush1.xpose.msra.mxu0 0.0
  %273 = vmatprep.subr.mxu0 0.0
  %274 = vmatpush1.xpose.msra.mxu0 0.0
  %275 = vmatprep.subr.mxu0 0.0
  %276 = vmatpush1.xpose.msra.mxu0 0.0
  %277 = vmatprep.subr.mxu0 0.0
  %278 = vmatpush1.xpose.msra.mxu0 0.0
  %279 = vmatprep.subr.mxu0 0.0
  %280 = vmatpush1.xpose.msra.mxu0 0.0
  %281 = vmatprep.subr.mxu0 0.0
  %282 = vmatpush1.xpose.msra.mxu0 0.0
  %283 = vmatprep.subr.mxu0 0.0
  %284 = vmatpush1.xpose.msra.mxu0 0.0
  %285 = vmatprep.mubr.f32.mxu0 0.0
  %286 = vmatmul.mubr.f32.gmra.mrb[0].mxu0 %v216
  %v287 = vpop.f32.mrb[0].mxu0
  %v288 = vadd.f32 0.0, %v287
  %v289 = vpop.f32.mrb[0].mxu0
  %290 = vdwg.mxu0
  %v292 = vsel %vm62, %v17, 0
  %v295 = vsel %vm62, %v33, 0
  %297 = vmatprep.subr.mxu0 0.0
  %298 = vmatpush1.xpose.msra.mxu0 %v295
  %299 = vmatprep.subr.mxu0 0.0
  %300 = vmatpush1.xpose.msra.mxu0 0.0
  %301 = vmatprep.subr.mxu0 0.0
  %302 = vmatpush1.xpose.msra.mxu0 0.0
  %303 = vmatprep.subr.mxu0 0.0
  %304 = vmatpush1.xpose.msra.mxu0 0.0
  %305 = vmatprep.subr.mxu0 0.0
  %306 = vmatpush1.xpose.msra.mxu0 0.0
  %307 = vmatprep.subr.mxu0 0.0
  %308 = vmatpush1.xpose.msra.mxu0 0.0
  %309 = vmatprep.subr.mxu0 0.0
  %310 = vmatpush1.xpose.msra.mxu0 0.0
  %311 = vmatprep.subr.mxu0 0.0
  %312 = vmatpush1.xpose.msra.mxu0 0.0
  %313 = vmatprep.subr.mxu0 0.0
  %314 = vmatpush1.xpose.msra.mxu0 0.0
  %315 = vmatprep.subr.mxu0 0.0
  %316 = vmatpush1.xpose.msra.mxu0 0.0
  %317 = vmatprep.subr.mxu0 0.0
  %318 = vmatpush1.xpose.msra.mxu0 0.0
  %319 = vmatprep.subr.mxu0 0.0
  %320 = vmatpush1.xpose.msra.mxu0 0.0
  %321 = vmatprep.subr.mxu0 0.0
  %322 = vmatpush1.xpose.msra.mxu0 0.0
  %323 = vmatprep.subr.mxu0 0.0
  %324 = vmatpush1.xpose.msra.mxu0 0.0
  %325 = vmatprep.subr.mxu0 0.0
  %326 = vmatpush1.xpose.msra.mxu0 0.0
  %327 = vmatprep.subr.mxu0 0.0
  %328 = vmatpush1.xpose.msra.mxu0 0.0
  %329 = vmatprep.subr.mxu0 0.0
  %330 = vmatpush1.xpose.msra.mxu0 0.0
  %331 = vmatprep.subr.mxu0 0.0
  %332 = vmatpush1.xpose.msra.mxu0 0.0
  %333 = vmatprep.subr.mxu0 0.0
  %334 = vmatpush1.xpose.msra.mxu0 0.0
  %335 = vmatprep.subr.mxu0 0.0
  %336 = vmatpush1.xpose.msra.mxu0 0.0
  %337 = vmatprep.subr.mxu0 0.0
  %338 = vmatpush1.xpose.msra.mxu0 0.0
  %339 = vmatprep.subr.mxu0 0.0
  %340 = vmatpush1.xpose.msra.mxu0 0.0
  %341 = vmatprep.subr.mxu0 0.0
  %342 = vmatpush1.xpose.msra.mxu0 0.0
  %343 = vmatprep.subr.mxu0 0.0
  %344 = vmatpush1.xpose.msra.mxu0 0.0
  %345 = vmatprep.subr.mxu0 0.0
  %346 = vmatpush1.xpose.msra.mxu0 0.0
  %347 = vmatprep.subr.mxu0 0.0
  %348 = vmatpush1.xpose.msra.mxu0 0.0
  %349 = vmatprep.subr.mxu0 0.0
  %350 = vmatpush1.xpose.msra.mxu0 0.0
  %351 = vmatprep.subr.mxu0 0.0
  %352 = vmatpush1.xpose.msra.mxu0 0.0
  %353 = vmatprep.subr.mxu0 0.0
  %354 = vmatpush1.xpose.msra.mxu0 0.0
  %355 = vmatprep.subr.mxu0 0.0
  %356 = vmatpush1.xpose.msra.mxu0 0.0
  %357 = vmatprep.subr.mxu0 0.0
  %358 = vmatpush1.xpose.msra.mxu0 0.0
  %359 = vmatprep.subr.mxu0 0.0
  %360 = vmatpush1.xpose.msra.mxu0 0.0
  %361 = vmatprep.mubr.f32.mxu0 0.0
  %362 = vmatmul.mubr.f32.gmra.mrb[0].mxu0 %v292
  %v363 = vpop.f32.mrb[0].mxu0
  %v364 = vadd.f32 0.0, %v363
  %v365 = vpop.f32.mrb[0].mxu0
  %366 = vdwg.mxu0
  %v368 = vsel %vm62, %v18, 0
  %v371 = vsel %vm62, %v34, 0
  %373 = vmatprep.subr.mxu0 0.0
  %374 = vmatpush1.xpose.msra.mxu0 %v371
  %375 = vmatprep.subr.mxu0 0.0
  %376 = vmatpush1.xpose.msra.mxu0 0.0
  %377 = vmatprep.subr.mxu0 0.0
  %378 = vmatpush1.xpose.msra.mxu0 0.0
  %379 = vmatprep.subr.mxu0 0.0
  %380 = vmatpush1.xpose.msra.mxu0 0.0
  %381 = vmatprep.subr.mxu0 0.0
  %382 = vmatpush1.xpose.msra.mxu0 0.0
  %383 = vmatprep.subr.mxu0 0.0
  %384 = vmatpush1.xpose.msra.mxu0 0.0
  %385 = vmatprep.subr.mxu0 0.0
  %386 = vmatpush1.xpose.msra.mxu0 0.0
  %387 = vmatprep.subr.mxu0 0.0
  %388 = vmatpush1.xpose.msra.mxu0 0.0
  %389 = vmatprep.subr.mxu0 0.0
  %390 = vmatpush1.xpose.msra.mxu0 0.0
  %391 = vmatprep.subr.mxu0 0.0
  %392 = vmatpush1.xpose.msra.mxu0 0.0
  %393 = vmatprep.subr.mxu0 0.0
  %394 = vmatpush1.xpose.msra.mxu0 0.0
  %395 = vmatprep.subr.mxu0 0.0
  %396 = vmatpush1.xpose.msra.mxu0 0.0
  %397 = vmatprep.subr.mxu0 0.0
  %398 = vmatpush1.xpose.msra.mxu0 0.0
  %399 = vmatprep.subr.mxu0 0.0
  %400 = vmatpush1.xpose.msra.mxu0 0.0
  %401 = vmatprep.subr.mxu0 0.0
  %402 = vmatpush1.xpose.msra.mxu0 0.0
  %403 = vmatprep.subr.mxu0 0.0
  %404 = vmatpush1.xpose.msra.mxu0 0.0
  %405 = vmatprep.subr.mxu0 0.0
  %406 = vmatpush1.xpose.msra.mxu0 0.0
  %407 = vmatprep.subr.mxu0 0.0
  %408 = vmatpush1.xpose.msra.mxu0 0.0
  %409 = vmatprep.subr.mxu0 0.0
  %410 = vmatpush1.xpose.msra.mxu0 0.0
  %411 = vmatprep.subr.mxu0 0.0
  %412 = vmatpush1.xpose.msra.mxu0 0.0
  %413 = vmatprep.subr.mxu0 0.0
  %414 = vmatpush1.xpose.msra.mxu0 0.0
  %415 = vmatprep.subr.mxu0 0.0
  %416 = vmatpush1.xpose.msra.mxu0 0.0
  %417 = vmatprep.subr.mxu0 0.0
  %418 = vmatpush1.xpose.msra.mxu0 0.0
  %419 = vmatprep.subr.mxu0 0.0
  %420 = vmatpush1.xpose.msra.mxu0 0.0
  %421 = vmatprep.subr.mxu0 0.0
  %422 = vmatpush1.xpose.msra.mxu0 0.0
  %423 = vmatprep.subr.mxu0 0.0
  %424 = vmatpush1.xpose.msra.mxu0 0.0
  %425 = vmatprep.subr.mxu0 0.0
  %426 = vmatpush1.xpose.msra.mxu0 0.0
  %427 = vmatprep.subr.mxu0 0.0
  %428 = vmatpush1.xpose.msra.mxu0 0.0
  %429 = vmatprep.subr.mxu0 0.0
  %430 = vmatpush1.xpose.msra.mxu0 0.0
  %431 = vmatprep.subr.mxu0 0.0
  %432 = vmatpush1.xpose.msra.mxu0 0.0
  %433 = vmatprep.subr.mxu0 0.0
  %434 = vmatpush1.xpose.msra.mxu0 0.0
  %435 = vmatprep.subr.mxu0 0.0
  %436 = vmatpush1.xpose.msra.mxu0 0.0
  %437 = vmatprep.mubr.f32.mxu0 0.0
  %438 = vmatmul.mubr.f32.gmra.mrb[0].mxu0 %v368
  %v439 = vpop.f32.mrb[0].mxu0
  %v440 = vadd.f32 0.0, %v439
  %v441 = vpop.f32.mrb[0].mxu0
  %442 = vdwg.mxu0
  %v444 = vsel %vm62, %v19, 0
  %v447 = vsel %vm62, %v35, 0
  %449 = vmatprep.subr.mxu0 0.0
  %450 = vmatpush1.xpose.msra.mxu0 %v447
  %451 = vmatprep.subr.mxu0 0.0
  %452 = vmatpush1.xpose.msra.mxu0 0.0
  %453 = vmatprep.subr.mxu0 0.0
  %454 = vmatpush1.xpose.msra.mxu0 0.0
  %455 = vmatprep.subr.mxu0 0.0
  %456 = vmatpush1.xpose.msra.mxu0 0.0
  %457 = vmatprep.subr.mxu0 0.0
  %458 = vmatpush1.xpose.msra.mxu0 0.0
  %459 = vmatprep.subr.mxu0 0.0
  %460 = vmatpush1.xpose.msra.mxu0 0.0
  %461 = vmatprep.subr.mxu0 0.0
  %462 = vmatpush1.xpose.msra.mxu0 0.0
  %463 = vmatprep.subr.mxu0 0.0
  %464 = vmatpush1.xpose.msra.mxu0 0.0
  %465 = vmatprep.subr.mxu0 0.0
  %466 = vmatpush1.xpose.msra.mxu0 0.0
  %467 = vmatprep.subr.mxu0 0.0
  %468 = vmatpush1.xpose.msra.mxu0 0.0
  %469 = vmatprep.subr.mxu0 0.0
  %470 = vmatpush1.xpose.msra.mxu0 0.0
  %471 = vmatprep.subr.mxu0 0.0
  %472 = vmatpush1.xpose.msra.mxu0 0.0
  %473 = vmatprep.subr.mxu0 0.0
  %474 = vmatpush1.xpose.msra.mxu0 0.0
  %475 = vmatprep.subr.mxu0 0.0
  %476 = vmatpush1.xpose.msra.mxu0 0.0
  %477 = vmatprep.subr.mxu0 0.0
  %478 = vmatpush1.xpose.msra.mxu0 0.0
  %479 = vmatprep.subr.mxu0 0.0
  %480 = vmatpush1.xpose.msra.mxu0 0.0
  %481 = vmatprep.subr.mxu0 0.0
  %482 = vmatpush1.xpose.msra.mxu0 0.0
  %483 = vmatprep.subr.mxu0 0.0
  %484 = vmatpush1.xpose.msra.mxu0 0.0
  %485 = vmatprep.subr.mxu0 0.0
  %486 = vmatpush1.xpose.msra.mxu0 0.0
  %487 = vmatprep.subr.mxu0 0.0
  %488 = vmatpush1.xpose.msra.mxu0 0.0
  %489 = vmatprep.subr.mxu0 0.0
  %490 = vmatpush1.xpose.msra.mxu0 0.0
  %491 = vmatprep.subr.mxu0 0.0
  %492 = vmatpush1.xpose.msra.mxu0 0.0
  %493 = vmatprep.subr.mxu0 0.0
  %494 = vmatpush1.xpose.msra.mxu0 0.0
  %495 = vmatprep.subr.mxu0 0.0
  %496 = vmatpush1.xpose.msra.mxu0 0.0
  %497 = vmatprep.subr.mxu0 0.0
  %498 = vmatpush1.xpose.msra.mxu0 0.0
  %499 = vmatprep.subr.mxu0 0.0
  %500 = vmatpush1.xpose.msra.mxu0 0.0
  %501 = vmatprep.subr.mxu0 0.0
  %502 = vmatpush1.xpose.msra.mxu0 0.0
  %503 = vmatprep.subr.mxu0 0.0
  %504 = vmatpush1.xpose.msra.mxu0 0.0
  %505 = vmatprep.subr.mxu0 0.0
  %506 = vmatpush1.xpose.msra.mxu0 0.0
  %507 = vmatprep.subr.mxu0 0.0
  %508 = vmatpush1.xpose.msra.mxu0 0.0
  %509 = vmatprep.subr.mxu0 0.0
  %510 = vmatpush1.xpose.msra.mxu0 0.0
  %511 = vmatprep.subr.mxu0 0.0
  %512 = vmatpush1.xpose.msra.mxu0 0.0
  %513 = vmatprep.mubr.f32.mxu0 0.0
  %514 = vmatmul.mubr.f32.gmra.mrb[0].mxu0 %v444
  %v515 = vpop.f32.mrb[0].mxu0
  %v516 = vadd.f32 0.0, %v515
  %v517 = vpop.f32.mrb[0].mxu0
  %518 = vdwg.mxu0
  %v520 = vsel %vm62, %v20, 0
  %v523 = vsel %vm62, %v36, 0
  %525 = vmatprep.subr.mxu0 0.0
  %526 = vmatpush1.xpose.msra.mxu0 %v523
  %527 = vmatprep.subr.mxu0 0.0
  %528 = vmatpush1.xpose.msra.mxu0 0.0
  %529 = vmatprep.subr.mxu0 0.0
  %530 = vmatpush1.xpose.msra.mxu0 0.0
  %531 = vmatprep.subr.mxu0 0.0
  %532 = vmatpush1.xpose.msra.mxu0 0.0
  %533 = vmatprep.subr.mxu0 0.0
  %534 = vmatpush1.xpose.msra.mxu0 0.0
  %535 = vmatprep.subr.mxu0 0.0
  %536 = vmatpush1.xpose.msra.mxu0 0.0
  %537 = vmatprep.subr.mxu0 0.0
  %538 = vmatpush1.xpose.msra.mxu0 0.0
  %539 = vmatprep.subr.mxu0 0.0
  %540 = vmatpush1.xpose.msra.mxu0 0.0
  %541 = vmatprep.subr.mxu0 0.0
  %542 = vmatpush1.xpose.msra.mxu0 0.0
  %543 = vmatprep.subr.mxu0 0.0
  %544 = vmatpush1.xpose.msra.mxu0 0.0
  %545 = vmatprep.subr.mxu0 0.0
  %546 = vmatpush1.xpose.msra.mxu0 0.0
  %547 = vmatprep.subr.mxu0 0.0
  %548 = vmatpush1.xpose.msra.mxu0 0.0
  %549 = vmatprep.subr.mxu0 0.0
  %550 = vmatpush1.xpose.msra.mxu0 0.0
  %551 = vmatprep.subr.mxu0 0.0
  %552 = vmatpush1.xpose.msra.mxu0 0.0
  %553 = vmatprep.subr.mxu0 0.0
  %554 = vmatpush1.xpose.msra.mxu0 0.0
  %555 = vmatprep.subr.mxu0 0.0
  %556 = vmatpush1.xpose.msra.mxu0 0.0
  %557 = vmatprep.subr.mxu0 0.0
  %558 = vmatpush1.xpose.msra.mxu0 0.0
  %559 = vmatprep.subr.mxu0 0.0
  %560 = vmatpush1.xpose.msra.mxu0 0.0
  %561 = vmatprep.subr.mxu0 0.0
  %562 = vmatpush1.xpose.msra.mxu0 0.0
  %563 = vmatprep.subr.mxu0 0.0
  %564 = vmatpush1.xpose.msra.mxu0 0.0
  %565 = vmatprep.subr.mxu0 0.0
  %566 = vmatpush1.xpose.msra.mxu0 0.0
  %567 = vmatprep.subr.mxu0 0.0
  %568 = vmatpush1.xpose.msra.mxu0 0.0
  %569 = vmatprep.subr.mxu0 0.0
  %570 = vmatpush1.xpose.msra.mxu0 0.0
  %571 = vmatprep.subr.mxu0 0.0
  %572 = vmatpush1.xpose.msra.mxu0 0.0
  %573 = vmatprep.subr.mxu0 0.0
  %574 = vmatpush1.xpose.msra.mxu0 0.0
  %575 = vmatprep.subr.mxu0 0.0
  %576 = vmatpush1.xpose.msra.mxu0 0.0
  %577 = vmatprep.subr.mxu0 0.0
  %578 = vmatpush1.xpose.msra.mxu0 0.0
  %579 = vmatprep.subr.mxu0 0.0
  %580 = vmatpush1.xpose.msra.mxu0 0.0
  %581 = vmatprep.subr.mxu0 0.0
  %582 = vmatpush1.xpose.msra.mxu0 0.0
  %583 = vmatprep.subr.mxu0 0.0
  %584 = vmatpush1.xpose.msra.mxu0 0.0
  %585 = vmatprep.subr.mxu0 0.0
  %586 = vmatpush1.xpose.msra.mxu0 0.0
  %587 = vmatprep.subr.mxu0 0.0
  %588 = vmatpush1.xpose.msra.mxu0 0.0
  %589 = vmatprep.mubr.f32.mxu0 0.0
  %590 = vmatmul.mubr.f32.gmra.mrb[0].mxu0 %v520
  %v591 = vpop.f32.mrb[0].mxu0
  %v592 = vadd.f32 0.0, %v591
  %v593 = vpop.f32.mrb[0].mxu0
  %594 = vdwg.mxu0
  %v596 = vsel %vm62, %v21, 0
  %v599 = vsel %vm62, %v37, 0
  %601 = vmatprep.subr.mxu0 0.0
  %602 = vmatpush1.xpose.msra.mxu0 %v599
  %603 = vmatprep.subr.mxu0 0.0
  %604 = vmatpush1.xpose.msra.mxu0 0.0
  %605 = vmatprep.subr.mxu0 0.0
  %606 = vmatpush1.xpose.msra.mxu0 0.0
  %607 = vmatprep.subr.mxu0 0.0
  %608 = vmatpush1.xpose.msra.mxu0 0.0
  %609 = vmatprep.subr.mxu0 0.0
  %610 = vmatpush1.xpose.msra.mxu0 0.0
  %611 = vmatprep.subr.mxu0 0.0
  %612 = vmatpush1.xpose.msra.mxu0 0.0
  %613 = vmatprep.subr.mxu0 0.0
  %614 = vmatpush1.xpose.msra.mxu0 0.0
  %615 = vmatprep.subr.mxu0 0.0
  %616 = vmatpush1.xpose.msra.mxu0 0.0
  %617 = vmatprep.subr.mxu0 0.0
  %618 = vmatpush1.xpose.msra.mxu0 0.0
  %619 = vmatprep.subr.mxu0 0.0
  %620 = vmatpush1.xpose.msra.mxu0 0.0
  %621 = vmatprep.subr.mxu0 0.0
  %622 = vmatpush1.xpose.msra.mxu0 0.0
  %623 = vmatprep.subr.mxu0 0.0
  %624 = vmatpush1.xpose.msra.mxu0 0.0
  %625 = vmatprep.subr.mxu0 0.0
  %626 = vmatpush1.xpose.msra.mxu0 0.0
  %627 = vmatprep.subr.mxu0 0.0
  %628 = vmatpush1.xpose.msra.mxu0 0.0
  %629 = vmatprep.subr.mxu0 0.0
  %630 = vmatpush1.xpose.msra.mxu0 0.0
  %631 = vmatprep.subr.mxu0 0.0
  %632 = vmatpush1.xpose.msra.mxu0 0.0
  %633 = vmatprep.subr.mxu0 0.0
  %634 = vmatpush1.xpose.msra.mxu0 0.0
  %635 = vmatprep.subr.mxu0 0.0
  %636 = vmatpush1.xpose.msra.mxu0 0.0
  %637 = vmatprep.subr.mxu0 0.0
  %638 = vmatpush1.xpose.msra.mxu0 0.0
  %639 = vmatprep.subr.mxu0 0.0
  %640 = vmatpush1.xpose.msra.mxu0 0.0
  %641 = vmatprep.subr.mxu0 0.0
  %642 = vmatpush1.xpose.msra.mxu0 0.0
  %643 = vmatprep.subr.mxu0 0.0
  %644 = vmatpush1.xpose.msra.mxu0 0.0
  %645 = vmatprep.subr.mxu0 0.0
  %646 = vmatpush1.xpose.msra.mxu0 0.0
  %647 = vmatprep.subr.mxu0 0.0
  %648 = vmatpush1.xpose.msra.mxu0 0.0
  %649 = vmatprep.subr.mxu0 0.0
  %650 = vmatpush1.xpose.msra.mxu0 0.0
  %651 = vmatprep.subr.mxu0 0.0
  %652 = vmatpush1.xpose.msra.mxu0 0.0
  %653 = vmatprep.subr.mxu0 0.0
  %654 = vmatpush1.xpose.msra.mxu0 0.0
  %655 = vmatprep.subr.mxu0 0.0
  %656 = vmatpush1.xpose.msra.mxu0 0.0
  %657 = vmatprep.subr.mxu0 0.0
  %658 = vmatpush1.xpose.msra.mxu0 0.0
  %659 = vmatprep.subr.mxu0 0.0
  %660 = vmatpush1.xpose.msra.mxu0 0.0
  %661 = vmatprep.subr.mxu0 0.0
  %662 = vmatpush1.xpose.msra.mxu0 0.0
  %663 = vmatprep.subr.mxu0 0.0
  %664 = vmatpush1.xpose.msra.mxu0 0.0
  %665 = vmatprep.mubr.f32.mxu0 0.0
  %666 = vmatmul.mubr.f32.gmra.mrb[0].mxu0 %v596
  %v667 = vpop.f32.mrb[0].mxu0
  %v668 = vadd.f32 0.0, %v667
  %v669 = vpop.f32.mrb[0].mxu0
  %670 = vdwg.mxu0
  %v672 = vsel %vm62, %v22, 0
  %v675 = vsel %vm62, %v38, 0
  %677 = vmatprep.subr.mxu0 0.0
  %678 = vmatpush1.xpose.msra.mxu0 %v675
  %679 = vmatprep.subr.mxu0 0.0
  %680 = vmatpush1.xpose.msra.mxu0 0.0
  %681 = vmatprep.subr.mxu0 0.0
  %682 = vmatpush1.xpose.msra.mxu0 0.0
  %683 = vmatprep.subr.mxu0 0.0
  %684 = vmatpush1.xpose.msra.mxu0 0.0
  %685 = vmatprep.subr.mxu0 0.0
  %686 = vmatpush1.xpose.msra.mxu0 0.0
  %687 = vmatprep.subr.mxu0 0.0
  %688 = vmatpush1.xpose.msra.mxu0 0.0
  %689 = vmatprep.subr.mxu0 0.0
  %690 = vmatpush1.xpose.msra.mxu0 0.0
  %691 = vmatprep.subr.mxu0 0.0
  %692 = vmatpush1.xpose.msra.mxu0 0.0
  %693 = vmatprep.subr.mxu0 0.0
  %694 = vmatpush1.xpose.msra.mxu0 0.0
  %695 = vmatprep.subr.mxu0 0.0
  %696 = vmatpush1.xpose.msra.mxu0 0.0
  %697 = vmatprep.subr.mxu0 0.0
  %698 = vmatpush1.xpose.msra.mxu0 0.0
  %699 = vmatprep.subr.mxu0 0.0
  %700 = vmatpush1.xpose.msra.mxu0 0.0
  %701 = vmatprep.subr.mxu0 0.0
  %702 = vmatpush1.xpose.msra.mxu0 0.0
  %703 = vmatprep.subr.mxu0 0.0
  %704 = vmatpush1.xpose.msra.mxu0 0.0
  %705 = vmatprep.subr.mxu0 0.0
  %706 = vmatpush1.xpose.msra.mxu0 0.0
  %707 = vmatprep.subr.mxu0 0.0
  %708 = vmatpush1.xpose.msra.mxu0 0.0
  %709 = vmatprep.subr.mxu0 0.0
  %710 = vmatpush1.xpose.msra.mxu0 0.0
  %711 = vmatprep.subr.mxu0 0.0
  %712 = vmatpush1.xpose.msra.mxu0 0.0
  %713 = vmatprep.subr.mxu0 0.0
  %714 = vmatpush1.xpose.msra.mxu0 0.0
  %715 = vmatprep.subr.mxu0 0.0
  %716 = vmatpush1.xpose.msra.mxu0 0.0
  %717 = vmatprep.subr.mxu0 0.0
  %718 = vmatpush1.xpose.msra.mxu0 0.0
  %719 = vmatprep.subr.mxu0 0.0
  %720 = vmatpush1.xpose.msra.mxu0 0.0
  %721 = vmatprep.subr.mxu0 0.0
  %722 = vmatpush1.xpose.msra.mxu0 0.0
  %723 = vmatprep.subr.mxu0 0.0
  %724 = vmatpush1.xpose.msra.mxu0 0.0
  %725 = vmatprep.subr.mxu0 0.0
  %726 = vmatpush1.xpose.msra.mxu0 0.0
  %727 = vmatprep.subr.mxu0 0.0
  %728 = vmatpush1.xpose.msra.mxu0 0.0
  %729 = vmatprep.subr.mxu0 0.0
  %730 = vmatpush1.xpose.msra.mxu0 0.0
  %731 = vmatprep.subr.mxu0 0.0
  %732 = vmatpush1.xpose.msra.mxu0 0.0
  %733 = vmatprep.subr.mxu0 0.0
  %734 = vmatpush1.xpose.msra.mxu0 0.0
  %735 = vmatprep.subr.mxu0 0.0
  %736 = vmatpush1.xpose.msra.mxu0 0.0
  %737 = vmatprep.subr.mxu0 0.0
  %738 = vmatpush1.xpose.msra.mxu0 0.0
  %739 = vmatprep.subr.mxu0 0.0
  %740 = vmatpush1.xpose.msra.mxu0 0.0
  %741 = vmatprep.mubr.f32.mxu0 0.0
  %742 = vmatmul.mubr.f32.gmra.mrb[0].mxu0 %v672
  %v743 = vpop.f32.mrb[0].mxu0
  %v744 = vadd.f32 0.0, %v743
  %v745 = vpop.f32.mrb[0].mxu0
  %746 = vdwg.mxu0
  %v748 = vsel %vm62, %v23, 0
  %v751 = vsel %vm62, %v39, 0
  %753 = vmatprep.subr.mxu0 0.0
  %754 = vmatpush1.xpose.msra.mxu0 %v751
  %755 = vmatprep.subr.mxu0 0.0
  %756 = vmatpush1.xpose.msra.mxu0 0.0
  %757 = vmatprep.subr.mxu0 0.0
  %758 = vmatpush1.xpose.msra.mxu0 0.0
  %759 = vmatprep.subr.mxu0 0.0
  %760 = vmatpush1.xpose.msra.mxu0 0.0
  %761 = vmatprep.subr.mxu0 0.0
  %762 = vmatpush1.xpose.msra.mxu0 0.0
  %763 = vmatprep.subr.mxu0 0.0
  %764 = vmatpush1.xpose.msra.mxu0 0.0
  %765 = vmatprep.subr.mxu0 0.0
  %766 = vmatpush1.xpose.msra.mxu0 0.0
  %767 = vmatprep.subr.mxu0 0.0
  %768 = vmatpush1.xpose.msra.mxu0 0.0
  %769 = vmatprep.subr.mxu0 0.0
  %770 = vmatpush1.xpose.msra.mxu0 0.0
  %771 = vmatprep.subr.mxu0 0.0
  %772 = vmatpush1.xpose.msra.mxu0 0.0
  %773 = vmatprep.subr.mxu0 0.0
  %774 = vmatpush1.xpose.msra.mxu0 0.0
  %775 = vmatprep.subr.mxu0 0.0
  %776 = vmatpush1.xpose.msra.mxu0 0.0
  %777 = vmatprep.subr.mxu0 0.0
  %778 = vmatpush1.xpose.msra.mxu0 0.0
  %779 = vmatprep.subr.mxu0 0.0
  %780 = vmatpush1.xpose.msra.mxu0 0.0
  %781 = vmatprep.subr.mxu0 0.0
  %782 = vmatpush1.xpose.msra.mxu0 0.0
  %783 = vmatprep.subr.mxu0 0.0
  %784 = vmatpush1.xpose.msra.mxu0 0.0
  %785 = vmatprep.subr.mxu0 0.0
  %786 = vmatpush1.xpose.msra.mxu0 0.0
  %787 = vmatprep.subr.mxu0 0.0
  %788 = vmatpush1.xpose.msra.mxu0 0.0
  %789 = vmatprep.subr.mxu0 0.0
  %790 = vmatpush1.xpose.msra.mxu0 0.0
  %791 = vmatprep.subr.mxu0 0.0
  %792 = vmatpush1.xpose.msra.mxu0 0.0
  %793 = vmatprep.subr.mxu0 0.0
  %794 = vmatpush1.xpose.msra.mxu0 0.0
  %795 = vmatprep.subr.mxu0 0.0
  %796 = vmatpush1.xpose.msra.mxu0 0.0
  %797 = vmatprep.subr.mxu0 0.0
  %798 = vmatpush1.xpose.msra.mxu0 0.0
  %799 = vmatprep.subr.mxu0 0.0
  %800 = vmatpush1.xpose.msra.mxu0 0.0
  %801 = vmatprep.subr.mxu0 0.0
  %802 = vmatpush1.xpose.msra.mxu0 0.0
  %803 = vmatprep.subr.mxu0 0.0
  %804 = vmatpush1.xpose.msra.mxu0 0.0
  %805 = vmatprep.subr.mxu0 0.0
  %806 = vmatpush1.xpose.msra.mxu0 0.0
  %807 = vmatprep.subr.mxu0 0.0
  %808 = vmatpush1.xpose.msra.mxu0 0.0
  %809 = vmatprep.subr.mxu0 0.0
  %810 = vmatpush1.xpose.msra.mxu0 0.0
  %811 = vmatprep.subr.mxu0 0.0
  %812 = vmatpush1.xpose.msra.mxu0 0.0
  %813 = vmatprep.subr.mxu0 0.0
  %814 = vmatpush1.xpose.msra.mxu0 0.0
  %815 = vmatprep.subr.mxu0 0.0
  %816 = vmatpush1.xpose.msra.mxu0 0.0
  %817 = vmatprep.mubr.f32.mxu0 0.0
  %818 = vmatmul.mubr.f32.gmra.mrb[0].mxu0 %v748
  %v819 = vpop.f32.mrb[0].mxu0
  %v820 = vadd.f32 0.0, %v819
  %v821 = vpop.f32.mrb[0].mxu0
  %822 = vdwg.mxu0
  %v824 = vsel %vm62, %v24, 0
  %v827 = vsel %vm62, %v40, 0
  %829 = vmatprep.subr.mxu0 0.0
  %830 = vmatpush1.xpose.msra.mxu0 %v827
  %831 = vmatprep.subr.mxu0 0.0
  %832 = vmatpush1.xpose.msra.mxu0 0.0
  %833 = vmatprep.subr.mxu0 0.0
  %834 = vmatpush1.xpose.msra.mxu0 0.0
  %835 = vmatprep.subr.mxu0 0.0
  %836 = vmatpush1.xpose.msra.mxu0 0.0
  %837 = vmatprep.subr.mxu0 0.0
  %838 = vmatpush1.xpose.msra.mxu0 0.0
  %839 = vmatprep.subr.mxu0 0.0
  %840 = vmatpush1.xpose.msra.mxu0 0.0
  %841 = vmatprep.subr.mxu0 0.0
  %842 = vmatpush1.xpose.msra.mxu0 0.0
  %843 = vmatprep.subr.mxu0 0.0
  %844 = vmatpush1.xpose.msra.mxu0 0.0
  %845 = vmatprep.subr.mxu0 0.0
  %846 = vmatpush1.xpose.msra.mxu0 0.0
  %847 = vmatprep.subr.mxu0 0.0
  %848 = vmatpush1.xpose.msra.mxu0 0.0
  %849 = vmatprep.subr.mxu0 0.0
  %850 = vmatpush1.xpose.msra.mxu0 0.0
  %851 = vmatprep.subr.mxu0 0.0
  %852 = vmatpush1.xpose.msra.mxu0 0.0
  %853 = vmatprep.subr.mxu0 0.0
  %854 = vmatpush1.xpose.msra.mxu0 0.0
  %855 = vmatprep.subr.mxu0 0.0
  %856 = vmatpush1.xpose.msra.mxu0 0.0
  %857 = vmatprep.subr.mxu0 0.0
  %858 = vmatpush1.xpose.msra.mxu0 0.0
  %859 = vmatprep.subr.mxu0 0.0
  %860 = vmatpush1.xpose.msra.mxu0 0.0
  %861 = vmatprep.subr.mxu0 0.0
  %862 = vmatpush1.xpose.msra.mxu0 0.0
  %863 = vmatprep.subr.mxu0 0.0
  %864 = vmatpush1.xpose.msra.mxu0 0.0
  %865 = vmatprep.subr.mxu0 0.0
  %866 = vmatpush1.xpose.msra.mxu0 0.0
  %867 = vmatprep.subr.mxu0 0.0
  %868 = vmatpush1.xpose.msra.mxu0 0.0
  %869 = vmatprep.subr.mxu0 0.0
  %870 = vmatpush1.xpose.msra.mxu0 0.0
  %871 = vmatprep.subr.mxu0 0.0
  %872 = vmatpush1.xpose.msra.mxu0 0.0
  %873 = vmatprep.subr.mxu0 0.0
  %874 = vmatpush1.xpose.msra.mxu0 0.0
  %875 = vmatprep.subr.mxu0 0.0
  %876 = vmatpush1.xpose.msra.mxu0 0.0
  %877 = vmatprep.subr.mxu0 0.0
  %878 = vmatpush1.xpose.msra.mxu0 0.0
  %879 = vmatprep.subr.mxu0 0.0
  %880 = vmatpush1.xpose.msra.mxu0 0.0
  %881 = vmatprep.subr.mxu0 0.0
  %882 = vmatpush1.xpose.msra.mxu0 0.0
  %883 = vmatprep.subr.mxu0 0.0
  %884 = vmatpush1.xpose.msra.mxu0 0.0
  %885 = vmatprep.subr.mxu0 0.0
  %886 = vmatpush1.xpose.msra.mxu0 0.0
  %887 = vmatprep.subr.mxu0 0.0
  %888 = vmatpush1.xpose.msra.mxu0 0.0
  %889 = vmatprep.subr.mxu0 0.0
  %890 = vmatpush1.xpose.msra.mxu0 0.0
  %891 = vmatprep.subr.mxu0 0.0
  %892 = vmatpush1.xpose.msra.mxu0 0.0
  %893 = vmatprep.mubr.f32.mxu0 0.0
  %894 = vmatmul.mubr.f32.gmra.mrb[0].mxu0 %v824
  %v895 = vpop.f32.mrb[0].mxu0
  %v896 = vadd.f32 0.0, %v895
  %v897 = vpop.f32.mrb[0].mxu0
  %898 = vdwg.mxu0
  %v900 = vsel %vm62, %v25, 0
  %v903 = vsel %vm62, %v41, 0
  %905 = vmatprep.subr.mxu0 0.0
  %906 = vmatpush1.xpose.msra.mxu0 %v903
  %907 = vmatprep.subr.mxu0 0.0
  %908 = vmatpush1.xpose.msra.mxu0 0.0
  %909 = vmatprep.subr.mxu0 0.0
  %910 = vmatpush1.xpose.msra.mxu0 0.0
  %911 = vmatprep.subr.mxu0 0.0
  %912 = vmatpush1.xpose.msra.mxu0 0.0
  %913 = vmatprep.subr.mxu0 0.0
  %914 = vmatpush1.xpose.msra.mxu0 0.0
  %915 = vmatprep.subr.mxu0 0.0
  %916 = vmatpush1.xpose.msra.mxu0 0.0
  %917 = vmatprep.subr.mxu0 0.0
  %918 = vmatpush1.xpose.msra.mxu0 0.0
  %919 = vmatprep.subr.mxu0 0.0
  %920 = vmatpush1.xpose.msra.mxu0 0.0
  %921 = vmatprep.subr.mxu0 0.0
  %922 = vmatpush1.xpose.msra.mxu0 0.0
  %923 = vmatprep.subr.mxu0 0.0
  %924 = vmatpush1.xpose.msra.mxu0 0.0
  %925 = vmatprep.subr.mxu0 0.0
  %926 = vmatpush1.xpose.msra.mxu0 0.0
  %927 = vmatprep.subr.mxu0 0.0
  %928 = vmatpush1.xpose.msra.mxu0 0.0
  %929 = vmatprep.subr.mxu0 0.0
  %930 = vmatpush1.xpose.msra.mxu0 0.0
  %931 = vmatprep.subr.mxu0 0.0
  %932 = vmatpush1.xpose.msra.mxu0 0.0
  %933 = vmatprep.subr.mxu0 0.0
  %934 = vmatpush1.xpose.msra.mxu0 0.0
  %935 = vmatprep.subr.mxu0 0.0
  %936 = vmatpush1.xpose.msra.mxu0 0.0
  %937 = vmatprep.subr.mxu0 0.0
  %938 = vmatpush1.xpose.msra.mxu0 0.0
  %939 = vmatprep.subr.mxu0 0.0
  %940 = vmatpush1.xpose.msra.mxu0 0.0
  %941 = vmatprep.subr.mxu0 0.0
  %942 = vmatpush1.xpose.msra.mxu0 0.0
  %943 = vmatprep.subr.mxu0 0.0
  %944 = vmatpush1.xpose.msra.mxu0 0.0
  %945 = vmatprep.subr.mxu0 0.0
  %946 = vmatpush1.xpose.msra.mxu0 0.0
  %947 = vmatprep.subr.mxu0 0.0
  %948 = vmatpush1.xpose.msra.mxu0 0.0
  %949 = vmatprep.subr.mxu0 0.0
  %950 = vmatpush1.xpose.msra.mxu0 0.0
  %951 = vmatprep.subr.mxu0 0.0
  %952 = vmatpush1.xpose.msra.mxu0 0.0
  %953 = vmatprep.subr.mxu0 0.0
  %954 = vmatpush1.xpose.msra.mxu0 0.0
  %955 = vmatprep.subr.mxu0 0.0
  %956 = vmatpush1.xpose.msra.mxu0 0.0
  %957 = vmatprep.subr.mxu0 0.0
  %958 = vmatpush1.xpose.msra.mxu0 0.0
  %959 = vmatprep.subr.mxu0 0.0
  %960 = vmatpush1.xpose.msra.mxu0 0.0
  %961 = vmatprep.subr.mxu0 0.0
  %962 = vmatpush1.xpose.msra.mxu0 0.0
  %963 = vmatprep.subr.mxu0 0.0
  %964 = vmatpush1.xpose.msra.mxu0 0.0
  %965 = vmatprep.subr.mxu0 0.0
  %966 = vmatpush1.xpose.msra.mxu0 0.0
  %967 = vmatprep.subr.mxu0 0.0
  %968 = vmatpush1.xpose.msra.mxu0 0.0
  %969 = vmatprep.mubr.f32.mxu0 0.0
  %970 = vmatmul.mubr.f32.gmra.mrb[0].mxu0 %v900
  %v971 = vpop.f32.mrb[0].mxu0
  %v972 = vadd.f32 0.0, %v971
  %v973 = vpop.f32.mrb[0].mxu0
  %974 = vdwg.mxu0
  %v976 = vsel %vm62, %v26, 0
  %v979 = vsel %vm62, %v42, 0
  %981 = vmatprep.subr.mxu0 0.0
  %982 = vmatpush1.xpose.msra.mxu0 %v979
  %983 = vmatprep.subr.mxu0 0.0
  %984 = vmatpush1.xpose.msra.mxu0 0.0
  %985 = vmatprep.subr.mxu0 0.0
  %986 = vmatpush1.xpose.msra.mxu0 0.0
  %987 = vmatprep.subr.mxu0 0.0
  %988 = vmatpush1.xpose.msra.mxu0 0.0
  %989 = vmatprep.subr.mxu0 0.0
  %990 = vmatpush1.xpose.msra.mxu0 0.0
  %991 = vmatprep.subr.mxu0 0.0
  %992 = vmatpush1.xpose.msra.mxu0 0.0
  %993 = vmatprep.subr.mxu0 0.0
  %994 = vmatpush1.xpose.msra.mxu0 0.0
  %995 = vmatprep.subr.mxu0 0.0
  %996 = vmatpush1.xpose.msra.mxu0 0.0
  %997 = vmatprep.subr.mxu0 0.0
  %998 = vmatpush1.xpose.msra.mxu0 0.0
  %999 = vmatprep.subr.mxu0 0.0
  %1000 = vmatpush1.xpose.msra.mxu0 0.0
  %1001 = vmatprep.subr.mxu0 0.0
  %1002 = vmatpush1.xpose.msra.mxu0 0.0
  %1003 = vmatprep.subr.mxu0 0.0
  %1004 = vmatpush1.xpose.msra.mxu0 0.0
  %1005 = vmatprep.subr.mxu0 0.0
  %1006 = vmatpush1.xpose.msra.mxu0 0.0
  %1007 = vmatprep.subr.mxu0 0.0
  %1008 = vmatpush1.xpose.msra.mxu0 0.0
  %1009 = vmatprep.subr.mxu0 0.0
  %1010 = vmatpush1.xpose.msra.mxu0 0.0
  %1011 = vmatprep.subr.mxu0 0.0
  %1012 = vmatpush1.xpose.msra.mxu0 0.0
  %1013 = vmatprep.subr.mxu0 0.0
  %1014 = vmatpush1.xpose.msra.mxu0 0.0
  %1015 = vmatprep.subr.mxu0 0.0
  %1016 = vmatpush1.xpose.msra.mxu0 0.0
  %1017 = vmatprep.subr.mxu0 0.0
  %1018 = vmatpush1.xpose.msra.mxu0 0.0
  %1019 = vmatprep.subr.mxu0 0.0
  %1020 = vmatpush1.xpose.msra.mxu0 0.0
  %1021 = vmatprep.subr.mxu0 0.0
  %1022 = vmatpush1.xpose.msra.mxu0 0.0
  %1023 = vmatprep.subr.mxu0 0.0
  %1024 = vmatpush1.xpose.msra.mxu0 0.0
  %1025 = vmatprep.subr.mxu0 0.0
  %1026 = vmatpush1.xpose.msra.mxu0 0.0
  %1027 = vmatprep.subr.mxu0 0.0
  %1028 = vmatpush1.xpose.msra.mxu0 0.0
  %1029 = vmatprep.subr.mxu0 0.0
  %1030 = vmatpush1.xpose.msra.mxu0 0.0
  %1031 = vmatprep.subr.mxu0 0.0
  %1032 = vmatpush1.xpose.msra.mxu0 0.0
  %1033 = vmatprep.subr.mxu0 0.0
  %1034 = vmatpush1.xpose.msra.mxu0 0.0
  %1035 = vmatprep.subr.mxu0 0.0
  %1036 = vmatpush1.xpose.msra.mxu0 0.0
  %1037 = vmatprep.subr.mxu0 0.0
  %1038 = vmatpush1.xpose.msra.mxu0 0.0
  %1039 = vmatprep.subr.mxu0 0.0
  %1040 = vmatpush1.xpose.msra.mxu0 0.0
  %1041 = vmatprep.subr.mxu0 0.0
  %1042 = vmatpush1.xpose.msra.mxu0 0.0
  %1043 = vmatprep.subr.mxu0 0.0
  %1044 = vmatpush1.xpose.msra.mxu0 0.0
  %1045 = vmatprep.mubr.f32.mxu0 0.0
  %1046 = vmatmul.mubr.f32.gmra.mrb[0].mxu0 %v976
  %v1047 = vpop.f32.mrb[0].mxu0
  %v1048 = vadd.f32 0.0, %v1047
  %v1049 = vpop.f32.mrb[0].mxu0
  %1050 = vdwg.mxu0
  %v1052 = vsel %vm62, %v27, 0
  %v1055 = vsel %vm62, %v43, 0
  %1057 = vmatprep.subr.mxu0 0.0
  %1058 = vmatpush1.xpose.msra.mxu0 %v1055
  %1059 = vmatprep.subr.mxu0 0.0
  %1060 = vmatpush1.xpose.msra.mxu0 0.0
  %1061 = vmatprep.subr.mxu0 0.0
  %1062 = vmatpush1.xpose.msra.mxu0 0.0
  %1063 = vmatprep.subr.mxu0 0.0
  %1064 = vmatpush1.xpose.msra.mxu0 0.0
  %1065 = vmatprep.subr.mxu0 0.0
  %1066 = vmatpush1.xpose.msra.mxu0 0.0
  %1067 = vmatprep.subr.mxu0 0.0
  %1068 = vmatpush1.xpose.msra.mxu0 0.0
  %1069 = vmatprep.subr.mxu0 0.0
  %1070 = vmatpush1.xpose.msra.mxu0 0.0
  %1071 = vmatprep.subr.mxu0 0.0
  %1072 = vmatpush1.xpose.msra.mxu0 0.0
  %1073 = vmatprep.subr.mxu0 0.0
  %1074 = vmatpush1.xpose.msra.mxu0 0.0
  %1075 = vmatprep.subr.mxu0 0.0
  %1076 = vmatpush1.xpose.msra.mxu0 0.0
  %1077 = vmatprep.subr.mxu0 0.0
  %1078 = vmatpush1.xpose.msra.mxu0 0.0
  %1079 = vmatprep.subr.mxu0 0.0
  %1080 = vmatpush1.xpose.msra.mxu0 0.0
  %1081 = vmatprep.subr.mxu0 0.0
  %1082 = vmatpush1.xpose.msra.mxu0 0.0
  %1083 = vmatprep.subr.mxu0 0.0
  %1084 = vmatpush1.xpose.msra.mxu0 0.0
  %1085 = vmatprep.subr.mxu0 0.0
  %1086 = vmatpush1.xpose.msra.mxu0 0.0
  %1087 = vmatprep.subr.mxu0 0.0
  %1088 = vmatpush1.xpose.msra.mxu0 0.0
  %1089 = vmatprep.subr.mxu0 0.0
  %1090 = vmatpush1.xpose.msra.mxu0 0.0
  %1091 = vmatprep.subr.mxu0 0.0
  %1092 = vmatpush1.xpose.msra.mxu0 0.0
  %1093 = vmatprep.subr.mxu0 0.0
  %1094 = vmatpush1.xpose.msra.mxu0 0.0
  %1095 = vmatprep.subr.mxu0 0.0
  %1096 = vmatpush1.xpose.msra.mxu0 0.0
  %1097 = vmatprep.subr.mxu0 0.0
  %1098 = vmatpush1.xpose.msra.mxu0 0.0
  %1099 = vmatprep.subr.mxu0 0.0
  %1100 = vmatpush1.xpose.msra.mxu0 0.0
  %1101 = vmatprep.subr.mxu0 0.0
  %1102 = vmatpush1.xpose.msra.mxu0 0.0
  %1103 = vmatprep.subr.mxu0 0.0
  %1104 = vmatpush1.xpose.msra.mxu0 0.0
  %1105 = vmatprep.subr.mxu0 0.0
  %1106 = vmatpush1.xpose.msra.mxu0 0.0
  %1107 = vmatprep.subr.mxu0 0.0
  %1108 = vmatpush1.xpose.msra.mxu0 0.0
  %1109 = vmatprep.subr.mxu0 0.0
  %1110 = vmatpush1.xpose.msra.mxu0 0.0
  %1111 = vmatprep.subr.mxu0 0.0
  %1112 = vmatpush1.xpose.msra.mxu0 0.0
  %1113 = vmatprep.subr.mxu0 0.0
  %1114 = vmatpush1.xpose.msra.mxu0 0.0
  %1115 = vmatprep.subr.mxu0 0.0
  %1116 = vmatpush1.xpose.msra.mxu0 0.0
  %1117 = vmatprep.subr.mxu0 0.0
  %1118 = vmatpush1.xpose.msra.mxu0 0.0
  %1119 = vmatprep.subr.mxu0 0.0
  %1120 = vmatpush1.xpose.msra.mxu0 0.0
  %1121 = vmatprep.mubr.f32.mxu0 0.0
  %1122 = vmatmul.mubr.f32.gmra.mrb[0].mxu0 %v1052
  %v1123 = vpop.f32.mrb[0].mxu0
  %v1124 = vadd.f32 0.0, %v1123
  %v1125 = vpop.f32.mrb[0].mxu0
  %1126 = vdwg.mxu0
  %v1128 = vsel %vm62, %v28, 0
  %v1131 = vsel %vm62, %v44, 0
  %1133 = vmatprep.subr.mxu0 0.0
  %1134 = vmatpush1.xpose.msra.mxu0 %v1131
  %1135 = vmatprep.subr.mxu0 0.0
  %1136 = vmatpush1.xpose.msra.mxu0 0.0
  %1137 = vmatprep.subr.mxu0 0.0
  %1138 = vmatpush1.xpose.msra.mxu0 0.0
  %1139 = vmatprep.subr.mxu0 0.0
  %1140 = vmatpush1.xpose.msra.mxu0 0.0
  %1141 = vmatprep.subr.mxu0 0.0
  %1142 = vmatpush1.xpose.msra.mxu0 0.0
  %1143 = vmatprep.subr.mxu0 0.0
  %1144 = vmatpush1.xpose.msra.mxu0 0.0
  %1145 = vmatprep.subr.mxu0 0.0
  %1146 = vmatpush1.xpose.msra.mxu0 0.0
  %1147 = vmatprep.subr.mxu0 0.0
  %1148 = vmatpush1.xpose.msra.mxu0 0.0
  %1149 = vmatprep.subr.mxu0 0.0
  %1150 = vmatpush1.xpose.msra.mxu0 0.0
  %1151 = vmatprep.subr.mxu0 0.0
  %1152 = vmatpush1.xpose.msra.mxu0 0.0
  %1153 = vmatprep.subr.mxu0 0.0
  %1154 = vmatpush1.xpose.msra.mxu0 0.0
  %1155 = vmatprep.subr.mxu0 0.0
  %1156 = vmatpush1.xpose.msra.mxu0 0.0
  %1157 = vmatprep.subr.mxu0 0.0
  %1158 = vmatpush1.xpose.msra.mxu0 0.0
  %1159 = vmatprep.subr.mxu0 0.0
  %1160 = vmatpush1.xpose.msra.mxu0 0.0
  %1161 = vmatprep.subr.mxu0 0.0
  %1162 = vmatpush1.xpose.msra.mxu0 0.0
  %1163 = vmatprep.subr.mxu0 0.0
  %1164 = vmatpush1.xpose.msra.mxu0 0.0
  %1165 = vmatprep.subr.mxu0 0.0
  %1166 = vmatpush1.xpose.msra.mxu0 0.0
  %1167 = vmatprep.subr.mxu0 0.0
  %1168 = vmatpush1.xpose.msra.mxu0 0.0
  %1169 = vmatprep.subr.mxu0 0.0
  %1170 = vmatpush1.xpose.msra.mxu0 0.0
  %1171 = vmatprep.subr.mxu0 0.0
  %1172 = vmatpush1.xpose.msra.mxu0 0.0
  %1173 = vmatprep.subr.mxu0 0.0
  %1174 = vmatpush1.xpose.msra.mxu0 0.0
  %1175 = vmatprep.subr.mxu0 0.0
  %1176 = vmatpush1.xpose.msra.mxu0 0.0
  %1177 = vmatprep.subr.mxu0 0.0
  %1178 = vmatpush1.xpose.msra.mxu0 0.0
  %1179 = vmatprep.subr.mxu0 0.0
  %1180 = vmatpush1.xpose.msra.mxu0 0.0
  %1181 = vmatprep.subr.mxu0 0.0
  %1182 = vmatpush1.xpose.msra.mxu0 0.0
  %1183 = vmatprep.subr.mxu0 0.0
  %1184 = vmatpush1.xpose.msra.mxu0 0.0
  %1185 = vmatprep.subr.mxu0 0.0
  %1186 = vmatpush1.xpose.msra.mxu0 0.0
  %1187 = vmatprep.subr.mxu0 0.0
  %1188 = vmatpush1.xpose.msra.mxu0 0.0
  %1189 = vmatprep.subr.mxu0 0.0
  %1190 = vmatpush1.xpose.msra.mxu0 0.0
  %1191 = vmatprep.subr.mxu0 0.0
  %1192 = vmatpush1.xpose.msra.mxu0 0.0
  %1193 = vmatprep.subr.mxu0 0.0
  %1194 = vmatpush1.xpose.msra.mxu0 0.0
  %1195 = vmatprep.subr.mxu0 0.0
  %1196 = vmatpush1.xpose.msra.mxu0 0.0
  %1197 = vmatprep.mubr.f32.mxu0 0.0
  %1198 = vmatmul.mubr.f32.gmra.mrb[0].mxu0 %v1128
  %v1199 = vpop.f32.mrb[0].mxu0
  %v1200 = vadd.f32 0.0, %v1199
  %v1201 = vpop.f32.mrb[0].mxu0
  %1202 = vdwg.mxu0
  %v1204 = vsel %vm62, %v29, 0
  %v1207 = vsel %vm62, %v45, 0
  %1209 = vmatprep.subr.mxu0 0.0
  %1210 = vmatpush1.xpose.msra.mxu0 %v1207
  %1211 = vmatprep.subr.mxu0 0.0
  %1212 = vmatpush1.xpose.msra.mxu0 0.0
  %1213 = vmatprep.subr.mxu0 0.0
  %1214 = vmatpush1.xpose.msra.mxu0 0.0
  %1215 = vmatprep.subr.mxu0 0.0
  %1216 = vmatpush1.xpose.msra.mxu0 0.0
  %1217 = vmatprep.subr.mxu0 0.0
  %1218 = vmatpush1.xpose.msra.mxu0 0.0
  %1219 = vmatprep.subr.mxu0 0.0
  %1220 = vmatpush1.xpose.msra.mxu0 0.0
  %1221 = vmatprep.subr.mxu0 0.0
  %1222 = vmatpush1.xpose.msra.mxu0 0.0
  %1223 = vmatprep.subr.mxu0 0.0
  %1224 = vmatpush1.xpose.msra.mxu0 0.0
  %1225 = vmatprep.subr.mxu0 0.0
  %1226 = vmatpush1.xpose.msra.mxu0 0.0
  %1227 = vmatprep.subr.mxu0 0.0
  %1228 = vmatpush1.xpose.msra.mxu0 0.0
  %1229 = vmatprep.subr.mxu0 0.0
  %1230 = vmatpush1.xpose.msra.mxu0 0.0
  %1231 = vmatprep.subr.mxu0 0.0
  %1232 = vmatpush1.xpose.msra.mxu0 0.0
  %1233 = vmatprep.subr.mxu0 0.0
  %1234 = vmatpush1.xpose.msra.mxu0 0.0
  %1235 = vmatprep.subr.mxu0 0.0
  %1236 = vmatpush1.xpose.msra.mxu0 0.0
  %1237 = vmatprep.subr.mxu0 0.0
  %1238 = vmatpush1.xpose.msra.mxu0 0.0
  %1239 = vmatprep.subr.mxu0 0.0
  %1240 = vmatpush1.xpose.msra.mxu0 0.0
  %1241 = vmatprep.subr.mxu0 0.0
  %1242 = vmatpush1.xpose.msra.mxu0 0.0
  %1243 = vmatprep.subr.mxu0 0.0
  %1244 = vmatpush1.xpose.msra.mxu0 0.0
  %1245 = vmatprep.subr.mxu0 0.0
  %1246 = vmatpush1.xpose.msra.mxu0 0.0
  %1247 = vmatprep.subr.mxu0 0.0
  %1248 = vmatpush1.xpose.msra.mxu0 0.0
  %1249 = vmatprep.subr.mxu0 0.0
  %1250 = vmatpush1.xpose.msra.mxu0 0.0
  %1251 = vmatprep.subr.mxu0 0.0
  %1252 = vmatpush1.xpose.msra.mxu0 0.0
  %1253 = vmatprep.subr.mxu0 0.0
  %1254 = vmatpush1.xpose.msra.mxu0 0.0
  %1255 = vmatprep.subr.mxu0 0.0
  %1256 = vmatpush1.xpose.msra.mxu0 0.0
  %1257 = vmatprep.subr.mxu0 0.0
  %1258 = vmatpush1.xpose.msra.mxu0 0.0
  %1259 = vmatprep.subr.mxu0 0.0
  %1260 = vmatpush1.xpose.msra.mxu0 0.0
  %1261 = vmatprep.subr.mxu0 0.0
  %1262 = vmatpush1.xpose.msra.mxu0 0.0
  %1263 = vmatprep.subr.mxu0 0.0
  %1264 = vmatpush1.xpose.msra.mxu0 0.0
  %1265 = vmatprep.subr.mxu0 0.0
  %1266 = vmatpush1.xpose.msra.mxu0 0.0
  %1267 = vmatprep.subr.mxu0 0.0
  %1268 = vmatpush1.xpose.msra.mxu0 0.0
  %1269 = vmatprep.subr.mxu0 0.0
  %1270 = vmatpush1.xpose.msra.mxu0 0.0
  %1271 = vmatprep.subr.mxu0 0.0
  %1272 = vmatpush1.xpose.msra.mxu0 0.0
  %1273 = vmatprep.mubr.f32.mxu0 0.0
  %1274 = vmatmul.mubr.f32.gmra.mrb[0].mxu0 %v1204
  %v1275 = vpop.f32.mrb[0].mxu0
  %v1276 = vadd.f32 0.0, %v1275
  %v1277 = vpop.f32.mrb[0].mxu0
  %1278 = vdwg.mxu0
  %v1279 = vmul.f32 %v136, 0.35355338
  %v1280 = vmul.f32 %v212, 0.35355338
  %v1281 = vmul.f32 %v288, 0.35355338
  %v1282 = vmul.f32 %v364, 0.35355338
  %v1283 = vmul.f32 %v440, 0.35355338
  %v1284 = vmul.f32 %v516, 0.35355338
  %v1285 = vmul.f32 %v592, 0.35355338
  %v1286 = vmul.f32 %v668, 0.35355338
  %v1287 = vmul.f32 %v744, 0.35355338
  %v1288 = vmul.f32 %v820, 0.35355338
  %v1289 = vmul.f32 %v896, 0.35355338
  %v1290 = vmul.f32 %v972, 0.35355338
  %v1291 = vmul.f32 %v1048, 0.35355338
  %v1292 = vmul.f32 %v1124, 0.35355338
  %v1293 = vmul.f32 %v1200, 0.35355338
  %v1294 = vmul.f32 %v1276, 0.35355338
  %vm1295 = vcmask 64512
  %v1296 = vsel %vm1295, %v1279, -inf
  %1297 = vmax.xlane.f32.xlu0 %v1296
  %v1298 = vpop.xlane.xlu0 %1297
  %v1299 = vsel %vm1295, %v1280, -inf
  %1300 = vmax.xlane.f32.xlu0 %v1299
  %v1301 = vpop.xlane.xlu0 %1300
  %v1302 = vsel %vm1295, %v1281, -inf
  %1303 = vmax.xlane.f32.xlu0 %v1302
  %v1304 = vpop.xlane.xlu0 %1303
  %v1305 = vsel %vm1295, %v1282, -inf
  %1306 = vmax.xlane.f32.xlu0 %v1305
  %v1307 = vpop.xlane.xlu0 %1306
  %v1308 = vsel %vm1295, %v1283, -inf
  %1309 = vmax.xlane.f32.xlu0 %v1308
  %v1310 = vpop.xlane.xlu0 %1309
  %v1311 = vsel %vm1295, %v1284, -inf
  %1312 = vmax.xlane.f32.xlu0 %v1311
  %v1313 = vpop.xlane.xlu0 %1312
  %v1314 = vsel %vm1295, %v1285, -inf
  %1315 = vmax.xlane.f32.xlu0 %v1314
  %v1316 = vpop.xlane.xlu0 %1315
  %v1317 = vsel %vm1295, %v1286, -inf
  %1318 = vmax.xlane.f32.xlu0 %v1317
  %v1319 = vpop.xlane.xlu0 %1318
  %v1320 = vsel %vm1295, %v1287, -inf
  %1321 = vmax.xlane.f32.xlu0 %v1320
  %v1322 = vpop.xlane.xlu0 %1321
  %v1323 = vsel %vm1295, %v1288, -inf
  %1324 = vmax.xlane.f32.xlu0 %v1323
  %v1325 = vpop.xlane.xlu0 %1324
  %v1326 = vsel %vm1295, %v1289, -inf
  %1327 = vmax.xlane.f32.xlu0 %v1326
  %v1328 = vpop.xlane.xlu0 %1327
  %v1329 = vsel %vm1295, %v1290, -inf
  %1330 = vmax.xlane.f32.xlu0 %v1329
  %v1331 = vpop.xlane.xlu0 %1330
  %v1332 = vsel %vm1295, %v1291, -inf
  %1333 = vmax.xlane.f32.xlu0 %v1332
  %v1334 = vpop.xlane.xlu0 %1333
  %v1335 = vsel %vm1295, %v1292, -inf
  %1336 = vmax.xlane.f32.xlu0 %v1335
  %v1337 = vpop.xlane.xlu0 %1336
  %v1338 = vsel %vm1295, %v1293, -inf
  %1339 = vmax.xlane.f32.xlu0 %v1338
  %v1340 = vpop.xlane.xlu0 %1339
  %v1341 = vsel %vm1295, %v1294, -inf
  %1342 = vmax.xlane.f32.xlu0 %v1341
  %v1343 = vpop.xlane.xlu0 %1342
  %v1344 = vsub.f32 %v1279, %v1298
  %v1345 = vsub.f32 %v1280, %v1301
  %v1346 = vsub.f32 %v1281, %v1304
  %v1347 = vsub.f32 %v1282, %v1307
  %v1348 = vsub.f32 %v1283, %v1310
  %v1349 = vsub.f32 %v1284, %v1313
  %v1350 = vsub.f32 %v1285, %v1316
  %v1351 = vsub.f32 %v1286, %v1319
  %v1352 = vsub.f32 %v1287, %v1322
  %v1353 = vsub.f32 %v1288, %v1325
  %v1354 = vsub.f32 %v1289, %v1328
  %v1355 = vsub.f32 %v1290, %v1331
  %v1356 = vsub.f32 %v1291, %v1334
  %v1357 = vsub.f32 %v1292, %v1337
  %v1358 = vsub.f32 %v1293, %v1340
  %v1359 = vsub.f32 %v1294, %v1343
  %v1360 = vmul.f32 %v1344, 1.442695
  %v1361 = vpow.pop %v1360
  %v1362 = vmul.f32 %v1345, 1.442695
  %v1363 = vpow.pop %v1362
  %v1364 = vmul.f32 %v1346, 1.442695
  %v1365 = vpow.pop %v1364
  %v1366 = vmul.f32 %v1347, 1.442695
  %v1367 = vpow.pop %v1366
  %v1368 = vmul.f32 %v1348, 1.442695
  %v1369 = vpow.pop %v1368
  %v1370 = vmul.f32 %v1349, 1.442695
  %v1371 = vpow.pop %v1370
  %v1372 = vmul.f32 %v1350, 1.442695
  %v1373 = vpow.pop %v1372
  %v1374 = vmul.f32 %v1351, 1.442695
  %v1375 = vpow.pop %v1374
  %v1376 = vmul.f32 %v1352, 1.442695
  %v1377 = vpow.pop %v1376
  %v1378 = vmul.f32 %v1353, 1.442695
  %v1379 = vpow.pop %v1378
  %v1380 = vmul.f32 %v1354, 1.442695
  %v1381 = vpow.pop %v1380
  %v1382 = vmul.f32 %v1355, 1.442695
  %v1383 = vpow.pop %v1382
  %v1384 = vmul.f32 %v1356, 1.442695
  %v1385 = vpow.pop %v1384
  %v1386 = vmul.f32 %v1357, 1.442695
  %v1387 = vpow.pop %v1386
  %v1388 = vmul.f32 %v1358, 1.442695
  %v1389 = vpow.pop %v1388
  %v1390 = vmul.f32 %v1359, 1.442695
  %v1391 = vpow.pop %v1390
  %v1392 = vsel %vm1295, %v1361, 0.0
  %1393 = vadd.xlane.f32.xlu0 %v1392
  %v1394 = vpop.xlane.xlu0 %1393
  %v1395 = vsel %vm1295, %v1363, 0.0
  %1396 = vadd.xlane.f32.xlu0 %v1395
  %v1397 = vpop.xlane.xlu0 %1396
  %v1398 = vsel %vm1295, %v1365, 0.0
  %1399 = vadd.xlane.f32.xlu0 %v1398
  %v1400 = vpop.xlane.xlu0 %1399
  %v1401 = vsel %vm1295, %v1367, 0.0
  %1402 = vadd.xlane.f32.xlu0 %v1401
  %v1403 = vpop.xlane.xlu0 %1402
  %v1404 = vsel %vm1295, %v1369, 0.0
  %1405 = vadd.xlane.f32.xlu0 %v1404
  %v1406 = vpop.xlane.xlu0 %1405
  %v1407 = vsel %vm1295, %v1371, 0.0
  %1408 = vadd.xlane.f32.xlu0 %v1407
  %v1409 = vpop.xlane.xlu0 %1408
  %v1410 = vsel %vm1295, %v1373, 0.0
  %1411 = vadd.xlane.f32.xlu0 %v1410
  %v1412 = vpop.xlane.xlu0 %1411
  %v1413 = vsel %vm1295, %v1375, 0.0
  %1414 = vadd.xlane.f32.xlu0 %v1413
  %v1415 = vpop.xlane.xlu0 %1414
  %v1416 = vsel %vm1295, %v1377, 0.0
  %1417 = vadd.xlane.f32.xlu0 %v1416
  %v1418 = vpop.xlane.xlu0 %1417
  %v1419 = vsel %vm1295, %v1379, 0.0
  %1420 = vadd.xlane.f32.xlu0 %v1419
  %v1421 = vpop.xlane.xlu0 %1420
  %v1422 = vsel %vm1295, %v1381, 0.0
  %1423 = vadd.xlane.f32.xlu0 %v1422
  %v1424 = vpop.xlane.xlu0 %1423
  %v1425 = vsel %vm1295, %v1383, 0.0
  %1426 = vadd.xlane.f32.xlu0 %v1425
  %v1427 = vpop.xlane.xlu0 %1426
  %v1428 = vsel %vm1295, %v1385, 0.0
  %1429 = vadd.xlane.f32.xlu0 %v1428
  %v1430 = vpop.xlane.xlu0 %1429
  %v1431 = vsel %vm1295, %v1387, 0.0
  %1432 = vadd.xlane.f32.xlu0 %v1431
  %v1433 = vpop.xlane.xlu0 %1432
  %v1434 = vsel %vm1295, %v1389, 0.0
  %1435 = vadd.xlane.f32.xlu0 %v1434
  %v1436 = vpop.xlane.xlu0 %1435
  %v1437 = vsel %vm1295, %v1391, 0.0
  %1438 = vadd.xlane.f32.xlu0 %v1437
  %v1439 = vpop.xlane.xlu0 %1438
  %v1440 = vrcp.pop %v1394
  %v1441 = vmul.f32 %v1361, %v1440
  %v1442 = vrcp.pop %v1397
  %v1443 = vmul.f32 %v1363, %v1442
  %v1444 = vrcp.pop %v1400
  %v1445 = vmul.f32 %v1365, %v1444
  %v1446 = vrcp.pop %v1403
  %v1447 = vmul.f32 %v1367, %v1446
  %v1448 = vrcp.pop %v1406
  %v1449 = vmul.f32 %v1369, %v1448
  %v1450 = vrcp.pop %v1409
  %v1451 = vmul.f32 %v1371, %v1450
  %v1452 = vrcp.pop %v1412
  %v1453 = vmul.f32 %v1373, %v1452
  %v1454 = vrcp.pop %v1415
  %v1455 = vmul.f32 %v1375, %v1454
  %v1456 = vrcp.pop %v1418
  %v1457 = vmul.f32 %v1377, %v1456
  %v1458 = vrcp.pop %v1421
  %v1459 = vmul.f32 %v1379, %v1458
  %v1460 = vrcp.pop %v1424
  %v1461 = vmul.f32 %v1381, %v1460
  %v1462 = vrcp.pop %v1427
  %v1463 = vmul.f32 %v1383, %v1462
  %v1464 = vrcp.pop %v1430
  %v1465 = vmul.f32 %v1385, %v1464
  %v1466 = vrcp.pop %v1433
  %v1467 = vmul.f32 %v1387, %v1466
  %v1468 = vrcp.pop %v1436
  %v1469 = vmul.f32 %v1389, %v1468
  %v1470 = vrcp.pop %v1439
  %v1471 = vmul.f32 %v1391, %v1470
  %v1473 = vsel %vm1295, %v1441, 0
  %1475 = vmatprep.subr.mxu0 0.0
  %1476 = vmatpush1.msra.mxu0 %v46
  %1477 = vmatprep.subr.mxu0 0.0
  %1478 = vmatpush1.msra.mxu0 0.0
  %1479 = vmatprep.subr.mxu0 0.0
  %1480 = vmatpush1.msra.mxu0 0.0
  %1481 = vmatprep.subr.mxu0 0.0
  %1482 = vmatpush1.msra.mxu0 0.0
  %1483 = vmatprep.subr.mxu0 0.0
  %1484 = vmatpush1.msra.mxu0 0.0
  %1485 = vmatprep.subr.mxu0 0.0
  %1486 = vmatpush1.msra.mxu0 0.0
  %1487 = vmatprep.subr.mxu0 0.0
  %1488 = vmatpush1.msra.mxu0 0.0
  %1489 = vmatprep.subr.mxu0 0.0
  %1490 = vmatpush1.msra.mxu0 0.0
  %1491 = vmatprep.subr.mxu0 0.0
  %1492 = vmatpush1.msra.mxu0 0.0
  %1493 = vmatprep.subr.mxu0 0.0
  %1494 = vmatpush1.msra.mxu0 0.0
  %1495 = vmatprep.subr.mxu0 0.0
  %1496 = vmatpush1.msra.mxu0 0.0
  %1497 = vmatprep.subr.mxu0 0.0
  %1498 = vmatpush1.msra.mxu0 0.0
  %1499 = vmatprep.subr.mxu0 0.0
  %1500 = vmatpush1.msra.mxu0 0.0
  %1501 = vmatprep.subr.mxu0 0.0
  %1502 = vmatpush1.msra.mxu0 0.0
  %1503 = vmatprep.subr.mxu0 0.0
  %1504 = vmatpush1.msra.mxu0 0.0
  %1505 = vmatprep.subr.mxu0 0.0
  %1506 = vmatpush1.msra.mxu0 0.0
  %1507 = vmatprep.subr.mxu0 0.0
  %1508 = vmatpush1.msra.mxu0 0.0
  %1509 = vmatprep.subr.mxu0 0.0
  %1510 = vmatpush1.msra.mxu0 0.0
  %1511 = vmatprep.subr.mxu0 0.0
  %1512 = vmatpush1.msra.mxu0 0.0
  %1513 = vmatprep.subr.mxu0 0.0
  %1514 = vmatpush1.msra.mxu0 0.0
  %1515 = vmatprep.subr.mxu0 0.0
  %1516 = vmatpush1.msra.mxu0 0.0
  %1517 = vmatprep.subr.mxu0 0.0
  %1518 = vmatpush1.msra.mxu0 0.0
  %1519 = vmatprep.subr.mxu0 0.0
  %1520 = vmatpush1.msra.mxu0 0.0
  %1521 = vmatprep.subr.mxu0 0.0
  %1522 = vmatpush1.msra.mxu0 0.0
  %1523 = vmatprep.subr.mxu0 0.0
  %1524 = vmatpush1.msra.mxu0 0.0
  %1525 = vmatprep.subr.mxu0 0.0
  %1526 = vmatpush1.msra.mxu0 0.0
  %1527 = vmatprep.subr.mxu0 0.0
  %1528 = vmatpush1.msra.mxu0 0.0
  %1529 = vmatprep.subr.mxu0 0.0
  %1530 = vmatpush1.msra.mxu0 0.0
  %1531 = vmatprep.subr.mxu0 0.0
  %1532 = vmatpush1.msra.mxu0 0.0
  %1533 = vmatprep.subr.mxu0 0.0
  %1534 = vmatpush1.msra.mxu0 0.0
  %1535 = vmatprep.subr.mxu0 0.0
  %1536 = vmatpush1.msra.mxu0 0.0
  %1537 = vmatprep.subr.mxu0 0.0
  %1538 = vmatpush1.msra.mxu0 0.0
  %1539 = vmatprep.mubr.f32.mxu0 0.0
  %1540 = vmatmul.mubr.f32.gmra.mrb[0].mxu0 %v1473
  %v1541 = vpop.f32.mrb[0].mxu0
  %v1542 = vadd.f32 0.0, %v1541
  %v1543 = vpop.f32.mrb[0].mxu0
  %1544 = vdwg.mxu0
  %v1546 = vsel %vm1295, %v1443, 0
  %1548 = vmatprep.subr.mxu0 0.0
  %1549 = vmatpush1.msra.mxu0 %v47
  %1550 = vmatprep.subr.mxu0 0.0
  %1551 = vmatpush1.msra.mxu0 0.0
  %1552 = vmatprep.subr.mxu0 0.0
  %1553 = vmatpush1.msra.mxu0 0.0
  %1554 = vmatprep.subr.mxu0 0.0
  %1555 = vmatpush1.msra.mxu0 0.0
  %1556 = vmatprep.subr.mxu0 0.0
  %1557 = vmatpush1.msra.mxu0 0.0
  %1558 = vmatprep.subr.mxu0 0.0
  %1559 = vmatpush1.msra.mxu0 0.0
  %1560 = vmatprep.subr.mxu0 0.0
  %1561 = vmatpush1.msra.mxu0 0.0
  %1562 = vmatprep.subr.mxu0 0.0
  %1563 = vmatpush1.msra.mxu0 0.0
  %1564 = vmatprep.subr.mxu0 0.0
  %1565 = vmatpush1.msra.mxu0 0.0
  %1566 = vmatprep.subr.mxu0 0.0
  %1567 = vmatpush1.msra.mxu0 0.0
  %1568 = vmatprep.subr.mxu0 0.0
  %1569 = vmatpush1.msra.mxu0 0.0
  %1570 = vmatprep.subr.mxu0 0.0
  %1571 = vmatpush1.msra.mxu0 0.0
  %1572 = vmatprep.subr.mxu0 0.0
  %1573 = vmatpush1.msra.mxu0 0.0
  %1574 = vmatprep.subr.mxu0 0.0
  %1575 = vmatpush1.msra.mxu0 0.0
  %1576 = vmatprep.subr.mxu0 0.0
  %1577 = vmatpush1.msra.mxu0 0.0
  %1578 = vmatprep.subr.mxu0 0.0
  %1579 = vmatpush1.msra.mxu0 0.0
  %1580 = vmatprep.subr.mxu0 0.0
  %1581 = vmatpush1.msra.mxu0 0.0
  %1582 = vmatprep.subr.mxu0 0.0
  %1583 = vmatpush1.msra.mxu0 0.0
  %1584 = vmatprep.subr.mxu0 0.0
  %1585 = vmatpush1.msra.mxu0 0.0
  %1586 = vmatprep.subr.mxu0 0.0
  %1587 = vmatpush1.msra.mxu0 0.0
  %1588 = vmatprep.subr.mxu0 0.0
  %1589 = vmatpush1.msra.mxu0 0.0
  %1590 = vmatprep.subr.mxu0 0.0
  %1591 = vmatpush1.msra.mxu0 0.0
  %1592 = vmatprep.subr.mxu0 0.0
  %1593 = vmatpush1.msra.mxu0 0.0
  %1594 = vmatprep.subr.mxu0 0.0
  %1595 = vmatpush1.msra.mxu0 0.0
  %1596 = vmatprep.subr.mxu0 0.0
  %1597 = vmatpush1.msra.mxu0 0.0
  %1598 = vmatprep.subr.mxu0 0.0
  %1599 = vmatpush1.msra.mxu0 0.0
  %1600 = vmatprep.subr.mxu0 0.0
  %1601 = vmatpush1.msra.mxu0 0.0
  %1602 = vmatprep.subr.mxu0 0.0
  %1603 = vmatpush1.msra.mxu0 0.0
  %1604 = vmatprep.subr.mxu0 0.0
  %1605 = vmatpush1.msra.mxu0 0.0
  %1606 = vmatprep.subr.mxu0 0.0
  %1607 = vmatpush1.msra.mxu0 0.0
  %1608 = vmatprep.subr.mxu0 0.0
  %1609 = vmatpush1.msra.mxu0 0.0
  %1610 = vmatprep.subr.mxu0 0.0
  %1611 = vmatpush1.msra.mxu0 0.0
  %1612 = vmatprep.mubr.f32.mxu0 0.0
  %1613 = vmatmul.mubr.f32.gmra.mrb[0].mxu0 %v1546
  %v1614 = vpop.f32.mrb[0].mxu0
  %v1615 = vadd.f32 0.0, %v1614
  %v1616 = vpop.f32.mrb[0].mxu0
  %1617 = vdwg.mxu0
  %v1619 = vsel %vm1295, %v1445, 0
  %1621 = vmatprep.subr.mxu0 0.0
  %1622 = vmatpush1.msra.mxu0 %v48
  %1623 = vmatprep.subr.mxu0 0.0
  %1624 = vmatpush1.msra.mxu0 0.0
  %1625 = vmatprep.subr.mxu0 0.0
  %1626 = vmatpush1.msra.mxu0 0.0
  %1627 = vmatprep.subr.mxu0 0.0
  %1628 = vmatpush1.msra.mxu0 0.0
  %1629 = vmatprep.subr.mxu0 0.0
  %1630 = vmatpush1.msra.mxu0 0.0
  %1631 = vmatprep.subr.mxu0 0.0
  %1632 = vmatpush1.msra.mxu0 0.0
  %1633 = vmatprep.subr.mxu0 0.0
  %1634 = vmatpush1.msra.mxu0 0.0
  %1635 = vmatprep.subr.mxu0 0.0
  %1636 = vmatpush1.msra.mxu0 0.0
  %1637 = vmatprep.subr.mxu0 0.0
  %1638 = vmatpush1.msra.mxu0 0.0
  %1639 = vmatprep.subr.mxu0 0.0
  %1640 = vmatpush1.msra.mxu0 0.0
  %1641 = vmatprep.subr.mxu0 0.0
  %1642 = vmatpush1.msra.mxu0 0.0
  %1643 = vmatprep.subr.mxu0 0.0
  %1644 = vmatpush1.msra.mxu0 0.0
  %1645 = vmatprep.subr.mxu0 0.0
  %1646 = vmatpush1.msra.mxu0 0.0
  %1647 = vmatprep.subr.mxu0 0.0
  %1648 = vmatpush1.msra.mxu0 0.0
  %1649 = vmatprep.subr.mxu0 0.0
  %1650 = vmatpush1.msra.mxu0 0.0
  %1651 = vmatprep.subr.mxu0 0.0
  %1652 = vmatpush1.msra.mxu0 0.0
  %1653 = vmatprep.subr.mxu0 0.0
  %1654 = vmatpush1.msra.mxu0 0.0
  %1655 = vmatprep.subr.mxu0 0.0
  %1656 = vmatpush1.msra.mxu0 0.0
  %1657 = vmatprep.subr.mxu0 0.0
  %1658 = vmatpush1.msra.mxu0 0.0
  %1659 = vmatprep.subr.mxu0 0.0
  %1660 = vmatpush1.msra.mxu0 0.0
  %1661 = vmatprep.subr.mxu0 0.0
  %1662 = vmatpush1.msra.mxu0 0.0
  %1663 = vmatprep.subr.mxu0 0.0
  %1664 = vmatpush1.msra.mxu0 0.0
  %1665 = vmatprep.subr.mxu0 0.0
  %1666 = vmatpush1.msra.mxu0 0.0
  %1667 = vmatprep.subr.mxu0 0.0
  %1668 = vmatpush1.msra.mxu0 0.0
  %1669 = vmatprep.subr.mxu0 0.0
  %1670 = vmatpush1.msra.mxu0 0.0
  %1671 = vmatprep.subr.mxu0 0.0
  %1672 = vmatpush1.msra.mxu0 0.0
  %1673 = vmatprep.subr.mxu0 0.0
  %1674 = vmatpush1.msra.mxu0 0.0
  %1675 = vmatprep.subr.mxu0 0.0
  %1676 = vmatpush1.msra.mxu0 0.0
  %1677 = vmatprep.subr.mxu0 0.0
  %1678 = vmatpush1.msra.mxu0 0.0
  %1679 = vmatprep.subr.mxu0 0.0
  %1680 = vmatpush1.msra.mxu0 0.0
  %1681 = vmatprep.subr.mxu0 0.0
  %1682 = vmatpush1.msra.mxu0 0.0
  %1683 = vmatprep.subr.mxu0 0.0
  %1684 = vmatpush1.msra.mxu0 0.0
  %1685 = vmatprep.mubr.f32.mxu0 0.0
  %1686 = vmatmul.mubr.f32.gmra.mrb[0].mxu0 %v1619
  %v1687 = vpop.f32.mrb[0].mxu0
  %v1688 = vadd.f32 0.0, %v1687
  %v1689 = vpop.f32.mrb[0].mxu0
  %1690 = vdwg.mxu0
  %v1692 = vsel %vm1295, %v1447, 0
  %1694 = vmatprep.subr.mxu0 0.0
  %1695 = vmatpush1.msra.mxu0 %v49
  %1696 = vmatprep.subr.mxu0 0.0
  %1697 = vmatpush1.msra.mxu0 0.0
  %1698 = vmatprep.subr.mxu0 0.0
  %1699 = vmatpush1.msra.mxu0 0.0
  %1700 = vmatprep.subr.mxu0 0.0
  %1701 = vmatpush1.msra.mxu0 0.0
  %1702 = vmatprep.subr.mxu0 0.0
  %1703 = vmatpush1.msra.mxu0 0.0
  %1704 = vmatprep.subr.mxu0 0.0
  %1705 = vmatpush1.msra.mxu0 0.0
  %1706 = vmatprep.subr.mxu0 0.0
  %1707 = vmatpush1.msra.mxu0 0.0
  %1708 = vmatprep.subr.mxu0 0.0
  %1709 = vmatpush1.msra.mxu0 0.0
  %1710 = vmatprep.subr.mxu0 0.0
  %1711 = vmatpush1.msra.mxu0 0.0
  %1712 = vmatprep.subr.mxu0 0.0
  %1713 = vmatpush1.msra.mxu0 0.0
  %1714 = vmatprep.subr.mxu0 0.0
  %1715 = vmatpush1.msra.mxu0 0.0
  %1716 = vmatprep.subr.mxu0 0.0
  %1717 = vmatpush1.msra.mxu0 0.0
  %1718 = vmatprep.subr.mxu0 0.0
  %1719 = vmatpush1.msra.mxu0 0.0
  %1720 = vmatprep.subr.mxu0 0.0
  %1721 = vmatpush1.msra.mxu0 0.0
  %1722 = vmatprep.subr.mxu0 0.0
  %1723 = vmatpush1.msra.mxu0 0.0
  %1724 = vmatprep.subr.mxu0 0.0
  %1725 = vmatpush1.msra.mxu0 0.0
  %1726 = vmatprep.subr.mxu0 0.0
  %1727 = vmatpush1.msra.mxu0 0.0
  %1728 = vmatprep.subr.mxu0 0.0
  %1729 = vmatpush1.msra.mxu0 0.0
  %1730 = vmatprep.subr.mxu0 0.0
  %1731 = vmatpush1.msra.mxu0 0.0
  %1732 = vmatprep.subr.mxu0 0.0
  %1733 = vmatpush1.msra.mxu0 0.0
  %1734 = vmatprep.subr.mxu0 0.0
  %1735 = vmatpush1.msra.mxu0 0.0
  %1736 = vmatprep.subr.mxu0 0.0
  %1737 = vmatpush1.msra.mxu0 0.0
  %1738 = vmatprep.subr.mxu0 0.0
  %1739 = vmatpush1.msra.mxu0 0.0
  %1740 = vmatprep.subr.mxu0 0.0
  %1741 = vmatpush1.msra.mxu0 0.0
  %1742 = vmatprep.subr.mxu0 0.0
  %1743 = vmatpush1.msra.mxu0 0.0
  %1744 = vmatprep.subr.mxu0 0.0
  %1745 = vmatpush1.msra.mxu0 0.0
  %1746 = vmatprep.subr.mxu0 0.0
  %1747 = vmatpush1.msra.mxu0 0.0
  %1748 = vmatprep.subr.mxu0 0.0
  %1749 = vmatpush1.msra.mxu0 0.0
  %1750 = vmatprep.subr.mxu0 0.0
  %1751 = vmatpush1.msra.mxu0 0.0
  %1752 = vmatprep.subr.mxu0 0.0
  %1753 = vmatpush1.msra.mxu0 0.0
  %1754 = vmatprep.subr.mxu0 0.0
  %1755 = vmatpush1.msra.mxu0 0.0
  %1756 = vmatprep.subr.mxu0 0.0
  %1757 = vmatpush1.msra.mxu0 0.0
  %1758 = vmatprep.mubr.f32.mxu0 0.0
  %1759 = vmatmul.mubr.f32.gmra.mrb[0].mxu0 %v1692
  %v1760 = vpop.f32.mrb[0].mxu0
  %v1761 = vadd.f32 0.0, %v1760
  %v1762 = vpop.f32.mrb[0].mxu0
  %1763 = vdwg.mxu0
  %v1765 = vsel %vm1295, %v1449, 0
  %1767 = vmatprep.subr.mxu0 0.0
  %1768 = vmatpush1.msra.mxu0 %v50
  %1769 = vmatprep.subr.mxu0 0.0
  %1770 = vmatpush1.msra.mxu0 0.0
  %1771 = vmatprep.subr.mxu0 0.0
  %1772 = vmatpush1.msra.mxu0 0.0
  %1773 = vmatprep.subr.mxu0 0.0
  %1774 = vmatpush1.msra.mxu0 0.0
  %1775 = vmatprep.subr.mxu0 0.0
  %1776 = vmatpush1.msra.mxu0 0.0
  %1777 = vmatprep.subr.mxu0 0.0
  %1778 = vmatpush1.msra.mxu0 0.0
  %1779 = vmatprep.subr.mxu0 0.0
  %1780 = vmatpush1.msra.mxu0 0.0
  %1781 = vmatprep.subr.mxu0 0.0
  %1782 = vmatpush1.msra.mxu0 0.0
  %1783 = vmatprep.subr.mxu0 0.0
  %1784 = vmatpush1.msra.mxu0 0.0
  %1785 = vmatprep.subr.mxu0 0.0
  %1786 = vmatpush1.msra.mxu0 0.0
  %1787 = vmatprep.subr.mxu0 0.0
  %1788 = vmatpush1.msra.mxu0 0.0
  %1789 = vmatprep.subr.mxu0 0.0
  %1790 = vmatpush1.msra.mxu0 0.0
  %1791 = vmatprep.subr.mxu0 0.0
  %1792 = vmatpush1.msra.mxu0 0.0
  %1793 = vmatprep.subr.mxu0 0.0
  %1794 = vmatpush1.msra.mxu0 0.0
  %1795 = vmatprep.subr.mxu0 0.0
  %1796 = vmatpush1.msra.mxu0 0.0
  %1797 = vmatprep.subr.mxu0 0.0
  %1798 = vmatpush1.msra.mxu0 0.0
  %1799 = vmatprep.subr.mxu0 0.0
  %1800 = vmatpush1.msra.mxu0 0.0
  %1801 = vmatprep.subr.mxu0 0.0
  %1802 = vmatpush1.msra.mxu0 0.0
  %1803 = vmatprep.subr.mxu0 0.0
  %1804 = vmatpush1.msra.mxu0 0.0
  %1805 = vmatprep.subr.mxu0 0.0
  %1806 = vmatpush1.msra.mxu0 0.0
  %1807 = vmatprep.subr.mxu0 0.0
  %1808 = vmatpush1.msra.mxu0 0.0
  %1809 = vmatprep.subr.mxu0 0.0
  %1810 = vmatpush1.msra.mxu0 0.0
  %1811 = vmatprep.subr.mxu0 0.0
  %1812 = vmatpush1.msra.mxu0 0.0
  %1813 = vmatprep.subr.mxu0 0.0
  %1814 = vmatpush1.msra.mxu0 0.0
  %1815 = vmatprep.subr.mxu0 0.0
  %1816 = vmatpush1.msra.mxu0 0.0
  %1817 = vmatprep.subr.mxu0 0.0
  %1818 = vmatpush1.msra.mxu0 0.0
  %1819 = vmatprep.subr.mxu0 0.0
  %1820 = vmatpush1.msra.mxu0 0.0
  %1821 = vmatprep.subr.mxu0 0.0
  %1822 = vmatpush1.msra.mxu0 0.0
  %1823 = vmatprep.subr.mxu0 0.0
  %1824 = vmatpush1.msra.mxu0 0.0
  %1825 = vmatprep.subr.mxu0 0.0
  %1826 = vmatpush1.msra.mxu0 0.0
  %1827 = vmatprep.subr.mxu0 0.0
  %1828 = vmatpush1.msra.mxu0 0.0
  %1829 = vmatprep.subr.mxu0 0.0
  %1830 = vmatpush1.msra.mxu0 0.0
  %1831 = vmatprep.mubr.f32.mxu0 0.0
  %1832 = vmatmul.mubr.f32.gmra.mrb[0].mxu0 %v1765
  %v1833 = vpop.f32.mrb[0].mxu0
  %v1834 = vadd.f32 0.0, %v1833
  %v1835 = vpop.f32.mrb[0].mxu0
  %1836 = vdwg.mxu0
  %v1838 = vsel %vm1295, %v1451, 0
  %1840 = vmatprep.subr.mxu0 0.0
  %1841 = vmatpush1.msra.mxu0 %v51
  %1842 = vmatprep.subr.mxu0 0.0
  %1843 = vmatpush1.msra.mxu0 0.0
  %1844 = vmatprep.subr.mxu0 0.0
  %1845 = vmatpush1.msra.mxu0 0.0
  %1846 = vmatprep.subr.mxu0 0.0
  %1847 = vmatpush1.msra.mxu0 0.0
  %1848 = vmatprep.subr.mxu0 0.0
  %1849 = vmatpush1.msra.mxu0 0.0
  %1850 = vmatprep.subr.mxu0 0.0
  %1851 = vmatpush1.msra.mxu0 0.0
  %1852 = vmatprep.subr.mxu0 0.0
  %1853 = vmatpush1.msra.mxu0 0.0
  %1854 = vmatprep.subr.mxu0 0.0
  %1855 = vmatpush1.msra.mxu0 0.0
  %1856 = vmatprep.subr.mxu0 0.0
  %1857 = vmatpush1.msra.mxu0 0.0
  %1858 = vmatprep.subr.mxu0 0.0
  %1859 = vmatpush1.msra.mxu0 0.0
  %1860 = vmatprep.subr.mxu0 0.0
  %1861 = vmatpush1.msra.mxu0 0.0
  %1862 = vmatprep.subr.mxu0 0.0
  %1863 = vmatpush1.msra.mxu0 0.0
  %1864 = vmatprep.subr.mxu0 0.0
  %1865 = vmatpush1.msra.mxu0 0.0
  %1866 = vmatprep.subr.mxu0 0.0
  %1867 = vmatpush1.msra.mxu0 0.0
  %1868 = vmatprep.subr.mxu0 0.0
  %1869 = vmatpush1.msra.mxu0 0.0
  %1870 = vmatprep.subr.mxu0 0.0
  %1871 = vmatpush1.msra.mxu0 0.0
  %1872 = vmatprep.subr.mxu0 0.0
  %1873 = vmatpush1.msra.mxu0 0.0
  %1874 = vmatprep.subr.mxu0 0.0
  %1875 = vmatpush1.msra.mxu0 0.0
  %1876 = vmatprep.subr.mxu0 0.0
  %1877 = vmatpush1.msra.mxu0 0.0
  %1878 = vmatprep.subr.mxu0 0.0
  %1879 = vmatpush1.msra.mxu0 0.0
  %1880 = vmatprep.subr.mxu0 0.0
  %1881 = vmatpush1.msra.mxu0 0.0
  %1882 = vmatprep.subr.mxu0 0.0
  %1883 = vmatpush1.msra.mxu0 0.0
  %1884 = vmatprep.subr.mxu0 0.0
  %1885 = vmatpush1.msra.mxu0 0.0
  %1886 = vmatprep.subr.mxu0 0.0
  %1887 = vmatpush1.msra.mxu0 0.0
  %1888 = vmatprep.subr.mxu0 0.0
  %1889 = vmatpush1.msra.mxu0 0.0
  %1890 = vmatprep.subr.mxu0 0.0
  %1891 = vmatpush1.msra.mxu0 0.0
  %1892 = vmatprep.subr.mxu0 0.0
  %1893 = vmatpush1.msra.mxu0 0.0
  %1894 = vmatprep.subr.mxu0 0.0
  %1895 = vmatpush1.msra.mxu0 0.0
  %1896 = vmatprep.subr.mxu0 0.0
  %1897 = vmatpush1.msra.mxu0 0.0
  %1898 = vmatprep.subr.mxu0 0.0
  %1899 = vmatpush1.msra.mxu0 0.0
  %1900 = vmatprep.subr.mxu0 0.0
  %1901 = vmatpush1.msra.mxu0 0.0
  %1902 = vmatprep.subr.mxu0 0.0
  %1903 = vmatpush1.msra.mxu0 0.0
  %1904 = vmatprep.mubr.f32.mxu0 0.0
  %1905 = vmatmul.mubr.f32.gmra.mrb[0].mxu0 %v1838
  %v1906 = vpop.f32.mrb[0].mxu0
  %v1907 = vadd.f32 0.0, %v1906
  %v1908 = vpop.f32.mrb[0].mxu0
  %1909 = vdwg.mxu0
  %v1911 = vsel %vm1295, %v1453, 0
  %1913 = vmatprep.subr.mxu0 0.0
  %1914 = vmatpush1.msra.mxu0 %v52
  %1915 = vmatprep.subr.mxu0 0.0
  %1916 = vmatpush1.msra.mxu0 0.0
  %1917 = vmatprep.subr.mxu0 0.0
  %1918 = vmatpush1.msra.mxu0 0.0
  %1919 = vmatprep.subr.mxu0 0.0
  %1920 = vmatpush1.msra.mxu0 0.0
  %1921 = vmatprep.subr.mxu0 0.0
  %1922 = vmatpush1.msra.mxu0 0.0
  %1923 = vmatprep.subr.mxu0 0.0
  %1924 = vmatpush1.msra.mxu0 0.0
  %1925 = vmatprep.subr.mxu0 0.0
  %1926 = vmatpush1.msra.mxu0 0.0
  %1927 = vmatprep.subr.mxu0 0.0
  %1928 = vmatpush1.msra.mxu0 0.0
  %1929 = vmatprep.subr.mxu0 0.0
  %1930 = vmatpush1.msra.mxu0 0.0
  %1931 = vmatprep.subr.mxu0 0.0
  %1932 = vmatpush1.msra.mxu0 0.0
  %1933 = vmatprep.subr.mxu0 0.0
  %1934 = vmatpush1.msra.mxu0 0.0
  %1935 = vmatprep.subr.mxu0 0.0
  %1936 = vmatpush1.msra.mxu0 0.0
  %1937 = vmatprep.subr.mxu0 0.0
  %1938 = vmatpush1.msra.mxu0 0.0
  %1939 = vmatprep.subr.mxu0 0.0
  %1940 = vmatpush1.msra.mxu0 0.0
  %1941 = vmatprep.subr.mxu0 0.0
  %1942 = vmatpush1.msra.mxu0 0.0
  %1943 = vmatprep.subr.mxu0 0.0
  %1944 = vmatpush1.msra.mxu0 0.0
  %1945 = vmatprep.subr.mxu0 0.0
  %1946 = vmatpush1.msra.mxu0 0.0
  %1947 = vmatprep.subr.mxu0 0.0
  %1948 = vmatpush1.msra.mxu0 0.0
  %1949 = vmatprep.subr.mxu0 0.0
  %1950 = vmatpush1.msra.mxu0 0.0
  %1951 = vmatprep.subr.mxu0 0.0
  %1952 = vmatpush1.msra.mxu0 0.0
  %1953 = vmatprep.subr.mxu0 0.0
  %1954 = vmatpush1.msra.mxu0 0.0
  %1955 = vmatprep.subr.mxu0 0.0
  %1956 = vmatpush1.msra.mxu0 0.0
  %1957 = vmatprep.subr.mxu0 0.0
  %1958 = vmatpush1.msra.mxu0 0.0
  %1959 = vmatprep.subr.mxu0 0.0
  %1960 = vmatpush1.msra.mxu0 0.0
  %1961 = vmatprep.subr.mxu0 0.0
  %1962 = vmatpush1.msra.mxu0 0.0
  %1963 = vmatprep.subr.mxu0 0.0
  %1964 = vmatpush1.msra.mxu0 0.0
  %1965 = vmatprep.subr.mxu0 0.0
  %1966 = vmatpush1.msra.mxu0 0.0
  %1967 = vmatprep.subr.mxu0 0.0
  %1968 = vmatpush1.msra.mxu0 0.0
  %1969 = vmatprep.subr.mxu0 0.0
  %1970 = vmatpush1.msra.mxu0 0.0
  %1971 = vmatprep.subr.mxu0 0.0
  %1972 = vmatpush1.msra.mxu0 0.0
  %1973 = vmatprep.subr.mxu0 0.0
  %1974 = vmatpush1.msra.mxu0 0.0
  %1975 = vmatprep.subr.mxu0 0.0
  %1976 = vmatpush1.msra.mxu0 0.0
  %1977 = vmatprep.mubr.f32.mxu0 0.0
  %1978 = vmatmul.mubr.f32.gmra.mrb[0].mxu0 %v1911
  %v1979 = vpop.f32.mrb[0].mxu0
  %v1980 = vadd.f32 0.0, %v1979
  %v1981 = vpop.f32.mrb[0].mxu0
  %1982 = vdwg.mxu0
  %v1984 = vsel %vm1295, %v1455, 0
  %1986 = vmatprep.subr.mxu0 0.0
  %1987 = vmatpush1.msra.mxu0 %v53
  %1988 = vmatprep.subr.mxu0 0.0
  %1989 = vmatpush1.msra.mxu0 0.0
  %1990 = vmatprep.subr.mxu0 0.0
  %1991 = vmatpush1.msra.mxu0 0.0
  %1992 = vmatprep.subr.mxu0 0.0
  %1993 = vmatpush1.msra.mxu0 0.0
  %1994 = vmatprep.subr.mxu0 0.0
  %1995 = vmatpush1.msra.mxu0 0.0
  %1996 = vmatprep.subr.mxu0 0.0
  %1997 = vmatpush1.msra.mxu0 0.0
  %1998 = vmatprep.subr.mxu0 0.0
  %1999 = vmatpush1.msra.mxu0 0.0
  %2000 = vmatprep.subr.mxu0 0.0
  %2001 = vmatpush1.msra.mxu0 0.0
  %2002 = vmatprep.subr.mxu0 0.0
  %2003 = vmatpush1.msra.mxu0 0.0
  %2004 = vmatprep.subr.mxu0 0.0
  %2005 = vmatpush1.msra.mxu0 0.0
  %2006 = vmatprep.subr.mxu0 0.0
  %2007 = vmatpush1.msra.mxu0 0.0
  %2008 = vmatprep.subr.mxu0 0.0
  %2009 = vmatpush1.msra.mxu0 0.0
  %2010 = vmatprep.subr.mxu0 0.0
  %2011 = vmatpush1.msra.mxu0 0.0
  %2012 = vmatprep.subr.mxu0 0.0
  %2013 = vmatpush1.msra.mxu0 0.0
  %2014 = vmatprep.subr.mxu0 0.0
  %2015 = vmatpush1.msra.mxu0 0.0
  %2016 = vmatprep.subr.mxu0 0.0
  %2017 = vmatpush1.msra.mxu0 0.0
  %2018 = vmatprep.subr.mxu0 0.0
  %2019 = vmatpush1.msra.mxu0 0.0
  %2020 = vmatprep.subr.mxu0 0.0
  %2021 = vmatpush1.msra.mxu0 0.0
  %2022 = vmatprep.subr.mxu0 0.0
  %2023 = vmatpush1.msra.mxu0 0.0
  %2024 = vmatprep.subr.mxu0 0.0
  %2025 = vmatpush1.msra.mxu0 0.0
  %2026 = vmatprep.subr.mxu0 0.0
  %2027 = vmatpush1.msra.mxu0 0.0
  %2028 = vmatprep.subr.mxu0 0.0
  %2029 = vmatpush1.msra.mxu0 0.0
  %2030 = vmatprep.subr.mxu0 0.0
  %2031 = vmatpush1.msra.mxu0 0.0
  %2032 = vmatprep.subr.mxu0 0.0
  %2033 = vmatpush1.msra.mxu0 0.0
  %2034 = vmatprep.subr.mxu0 0.0
  %2035 = vmatpush1.msra.mxu0 0.0
  %2036 = vmatprep.subr.mxu0 0.0
  %2037 = vmatpush1.msra.mxu0 0.0
  %2038 = vmatprep.subr.mxu0 0.0
  %2039 = vmatpush1.msra.mxu0 0.0
  %2040 = vmatprep.subr.mxu0 0.0
  %2041 = vmatpush1.msra.mxu0 0.0
  %2042 = vmatprep.subr.mxu0 0.0
  %2043 = vmatpush1.msra.mxu0 0.0
  %2044 = vmatprep.subr.mxu0 0.0
  %2045 = vmatpush1.msra.mxu0 0.0
  %2046 = vmatprep.subr.mxu0 0.0
  %2047 = vmatpush1.msra.mxu0 0.0
  %2048 = vmatprep.subr.mxu0 0.0
  %2049 = vmatpush1.msra.mxu0 0.0
  %2050 = vmatprep.mubr.f32.mxu0 0.0
  %2051 = vmatmul.mubr.f32.gmra.mrb[0].mxu0 %v1984
  %v2052 = vpop.f32.mrb[0].mxu0
  %v2053 = vadd.f32 0.0, %v2052
  %v2054 = vpop.f32.mrb[0].mxu0
  %2055 = vdwg.mxu0
  %v2057 = vsel %vm1295, %v1457, 0
  %2059 = vmatprep.subr.mxu0 0.0
  %2060 = vmatpush1.msra.mxu0 %v54
  %2061 = vmatprep.subr.mxu0 0.0
  %2062 = vmatpush1.msra.mxu0 0.0
  %2063 = vmatprep.subr.mxu0 0.0
  %2064 = vmatpush1.msra.mxu0 0.0
  %2065 = vmatprep.subr.mxu0 0.0
  %2066 = vmatpush1.msra.mxu0 0.0
  %2067 = vmatprep.subr.mxu0 0.0
  %2068 = vmatpush1.msra.mxu0 0.0
  %2069 = vmatprep.subr.mxu0 0.0
  %2070 = vmatpush1.msra.mxu0 0.0
  %2071 = vmatprep.subr.mxu0 0.0
  %2072 = vmatpush1.msra.mxu0 0.0
  %2073 = vmatprep.subr.mxu0 0.0
  %2074 = vmatpush1.msra.mxu0 0.0
  %2075 = vmatprep.subr.mxu0 0.0
  %2076 = vmatpush1.msra.mxu0 0.0
  %2077 = vmatprep.subr.mxu0 0.0
  %2078 = vmatpush1.msra.mxu0 0.0
  %2079 = vmatprep.subr.mxu0 0.0
  %2080 = vmatpush1.msra.mxu0 0.0
  %2081 = vmatprep.subr.mxu0 0.0
  %2082 = vmatpush1.msra.mxu0 0.0
  %2083 = vmatprep.subr.mxu0 0.0
  %2084 = vmatpush1.msra.mxu0 0.0
  %2085 = vmatprep.subr.mxu0 0.0
  %2086 = vmatpush1.msra.mxu0 0.0
  %2087 = vmatprep.subr.mxu0 0.0
  %2088 = vmatpush1.msra.mxu0 0.0
  %2089 = vmatprep.subr.mxu0 0.0
  %2090 = vmatpush1.msra.mxu0 0.0
  %2091 = vmatprep.subr.mxu0 0.0
  %2092 = vmatpush1.msra.mxu0 0.0
  %2093 = vmatprep.subr.mxu0 0.0
  %2094 = vmatpush1.msra.mxu0 0.0
  %2095 = vmatprep.subr.mxu0 0.0
  %2096 = vmatpush1.msra.mxu0 0.0
  %2097 = vmatprep.subr.mxu0 0.0
  %2098 = vmatpush1.msra.mxu0 0.0
  %2099 = vmatprep.subr.mxu0 0.0
  %2100 = vmatpush1.msra.mxu0 0.0
  %2101 = vmatprep.subr.mxu0 0.0
  %2102 = vmatpush1.msra.mxu0 0.0
  %2103 = vmatprep.subr.mxu0 0.0
  %2104 = vmatpush1.msra.mxu0 0.0
  %2105 = vmatprep.subr.mxu0 0.0
  %2106 = vmatpush1.msra.mxu0 0.0
  %2107 = vmatprep.subr.mxu0 0.0
  %2108 = vmatpush1.msra.mxu0 0.0
  %2109 = vmatprep.subr.mxu0 0.0
  %2110 = vmatpush1.msra.mxu0 0.0
  %2111 = vmatprep.subr.mxu0 0.0
  %2112 = vmatpush1.msra.mxu0 0.0
  %2113 = vmatprep.subr.mxu0 0.0
  %2114 = vmatpush1.msra.mxu0 0.0
  %2115 = vmatprep.subr.mxu0 0.0
  %2116 = vmatpush1.msra.mxu0 0.0
  %2117 = vmatprep.subr.mxu0 0.0
  %2118 = vmatpush1.msra.mxu0 0.0
  %2119 = vmatprep.subr.mxu0 0.0
  %2120 = vmatpush1.msra.mxu0 0.0
  %2121 = vmatprep.subr.mxu0 0.0
  %2122 = vmatpush1.msra.mxu0 0.0
  %2123 = vmatprep.mubr.f32.mxu0 0.0
  %2124 = vmatmul.mubr.f32.gmra.mrb[0].mxu0 %v2057
  %v2125 = vpop.f32.mrb[0].mxu0
  %v2126 = vadd.f32 0.0, %v2125
  %v2127 = vpop.f32.mrb[0].mxu0
  %2128 = vdwg.mxu0
  %v2130 = vsel %vm1295, %v1459, 0
  %2132 = vmatprep.subr.mxu0 0.0
  %2133 = vmatpush1.msra.mxu0 %v55
  %2134 = vmatprep.subr.mxu0 0.0
  %2135 = vmatpush1.msra.mxu0 0.0
  %2136 = vmatprep.subr.mxu0 0.0
  %2137 = vmatpush1.msra.mxu0 0.0
  %2138 = vmatprep.subr.mxu0 0.0
  %2139 = vmatpush1.msra.mxu0 0.0
  %2140 = vmatprep.subr.mxu0 0.0
  %2141 = vmatpush1.msra.mxu0 0.0
  %2142 = vmatprep.subr.mxu0 0.0
  %2143 = vmatpush1.msra.mxu0 0.0
  %2144 = vmatprep.subr.mxu0 0.0
  %2145 = vmatpush1.msra.mxu0 0.0
  %2146 = vmatprep.subr.mxu0 0.0
  %2147 = vmatpush1.msra.mxu0 0.0
  %2148 = vmatprep.subr.mxu0 0.0
  %2149 = vmatpush1.msra.mxu0 0.0
  %2150 = vmatprep.subr.mxu0 0.0
  %2151 = vmatpush1.msra.mxu0 0.0
  %2152 = vmatprep.subr.mxu0 0.0
  %2153 = vmatpush1.msra.mxu0 0.0
  %2154 = vmatprep.subr.mxu0 0.0
  %2155 = vmatpush1.msra.mxu0 0.0
  %2156 = vmatprep.subr.mxu0 0.0
  %2157 = vmatpush1.msra.mxu0 0.0
  %2158 = vmatprep.subr.mxu0 0.0
  %2159 = vmatpush1.msra.mxu0 0.0
  %2160 = vmatprep.subr.mxu0 0.0
  %2161 = vmatpush1.msra.mxu0 0.0
  %2162 = vmatprep.subr.mxu0 0.0
  %2163 = vmatpush1.msra.mxu0 0.0
  %2164 = vmatprep.subr.mxu0 0.0
  %2165 = vmatpush1.msra.mxu0 0.0
  %2166 = vmatprep.subr.mxu0 0.0
  %2167 = vmatpush1.msra.mxu0 0.0
  %2168 = vmatprep.subr.mxu0 0.0
  %2169 = vmatpush1.msra.mxu0 0.0
  %2170 = vmatprep.subr.mxu0 0.0
  %2171 = vmatpush1.msra.mxu0 0.0
  %2172 = vmatprep.subr.mxu0 0.0
  %2173 = vmatpush1.msra.mxu0 0.0
  %2174 = vmatprep.subr.mxu0 0.0
  %2175 = vmatpush1.msra.mxu0 0.0
  %2176 = vmatprep.subr.mxu0 0.0
  %2177 = vmatpush1.msra.mxu0 0.0
  %2178 = vmatprep.subr.mxu0 0.0
  %2179 = vmatpush1.msra.mxu0 0.0
  %2180 = vmatprep.subr.mxu0 0.0
  %2181 = vmatpush1.msra.mxu0 0.0
  %2182 = vmatprep.subr.mxu0 0.0
  %2183 = vmatpush1.msra.mxu0 0.0
  %2184 = vmatprep.subr.mxu0 0.0
  %2185 = vmatpush1.msra.mxu0 0.0
  %2186 = vmatprep.subr.mxu0 0.0
  %2187 = vmatpush1.msra.mxu0 0.0
  %2188 = vmatprep.subr.mxu0 0.0
  %2189 = vmatpush1.msra.mxu0 0.0
  %2190 = vmatprep.subr.mxu0 0.0
  %2191 = vmatpush1.msra.mxu0 0.0
  %2192 = vmatprep.subr.mxu0 0.0
  %2193 = vmatpush1.msra.mxu0 0.0
  %2194 = vmatprep.subr.mxu0 0.0
  %2195 = vmatpush1.msra.mxu0 0.0
  %2196 = vmatprep.mubr.f32.mxu0 0.0
  %2197 = vmatmul.mubr.f32.gmra.mrb[0].mxu0 %v2130
  %v2198 = vpop.f32.mrb[0].mxu0
  %v2199 = vadd.f32 0.0, %v2198
  %v2200 = vpop.f32.mrb[0].mxu0
  %2201 = vdwg.mxu0
  %v2203 = vsel %vm1295, %v1461, 0
  %2205 = vmatprep.subr.mxu0 0.0
  %2206 = vmatpush1.msra.mxu0 %v56
  %2207 = vmatprep.subr.mxu0 0.0
  %2208 = vmatpush1.msra.mxu0 0.0
  %2209 = vmatprep.subr.mxu0 0.0
  %2210 = vmatpush1.msra.mxu0 0.0
  %2211 = vmatprep.subr.mxu0 0.0
  %2212 = vmatpush1.msra.mxu0 0.0
  %2213 = vmatprep.subr.mxu0 0.0
  %2214 = vmatpush1.msra.mxu0 0.0
  %2215 = vmatprep.subr.mxu0 0.0
  %2216 = vmatpush1.msra.mxu0 0.0
  %2217 = vmatprep.subr.mxu0 0.0
  %2218 = vmatpush1.msra.mxu0 0.0
  %2219 = vmatprep.subr.mxu0 0.0
  %2220 = vmatpush1.msra.mxu0 0.0
  %2221 = vmatprep.subr.mxu0 0.0
  %2222 = vmatpush1.msra.mxu0 0.0
  %2223 = vmatprep.subr.mxu0 0.0
  %2224 = vmatpush1.msra.mxu0 0.0
  %2225 = vmatprep.subr.mxu0 0.0
  %2226 = vmatpush1.msra.mxu0 0.0
  %2227 = vmatprep.subr.mxu0 0.0
  %2228 = vmatpush1.msra.mxu0 0.0
  %2229 = vmatprep.subr.mxu0 0.0
  %2230 = vmatpush1.msra.mxu0 0.0
  %2231 = vmatprep.subr.mxu0 0.0
  %2232 = vmatpush1.msra.mxu0 0.0
  %2233 = vmatprep.subr.mxu0 0.0
  %2234 = vmatpush1.msra.mxu0 0.0
  %2235 = vmatprep.subr.mxu0 0.0
  %2236 = vmatpush1.msra.mxu0 0.0
  %2237 = vmatprep.subr.mxu0 0.0
  %2238 = vmatpush1.msra.mxu0 0.0
  %2239 = vmatprep.subr.mxu0 0.0
  %2240 = vmatpush1.msra.mxu0 0.0
  %2241 = vmatprep.subr.mxu0 0.0
  %2242 = vmatpush1.msra.mxu0 0.0
  %2243 = vmatprep.subr.mxu0 0.0
  %2244 = vmatpush1.msra.mxu0 0.0
  %2245 = vmatprep.subr.mxu0 0.0
  %2246 = vmatpush1.msra.mxu0 0.0
  %2247 = vmatprep.subr.mxu0 0.0
  %2248 = vmatpush1.msra.mxu0 0.0
  %2249 = vmatprep.subr.mxu0 0.0
  %2250 = vmatpush1.msra.mxu0 0.0
  %2251 = vmatprep.subr.mxu0 0.0
  %2252 = vmatpush1.msra.mxu0 0.0
  %2253 = vmatprep.subr.mxu0 0.0
  %2254 = vmatpush1.msra.mxu0 0.0
  %2255 = vmatprep.subr.mxu0 0.0
  %2256 = vmatpush1.msra.mxu0 0.0
  %2257 = vmatprep.subr.mxu0 0.0
  %2258 = vmatpush1.msra.mxu0 0.0
  %2259 = vmatprep.subr.mxu0 0.0
  %2260 = vmatpush1.msra.mxu0 0.0
  %2261 = vmatprep.subr.mxu0 0.0
  %2262 = vmatpush1.msra.mxu0 0.0
  %2263 = vmatprep.subr.mxu0 0.0
  %2264 = vmatpush1.msra.mxu0 0.0
  %2265 = vmatprep.subr.mxu0 0.0
  %2266 = vmatpush1.msra.mxu0 0.0
  %2267 = vmatprep.subr.mxu0 0.0
  %2268 = vmatpush1.msra.mxu0 0.0
  %2269 = vmatprep.mubr.f32.mxu0 0.0
  %2270 = vmatmul.mubr.f32.gmra.mrb[0].mxu0 %v2203
  %v2271 = vpop.f32.mrb[0].mxu0
  %v2272 = vadd.f32 0.0, %v2271
  %v2273 = vpop.f32.mrb[0].mxu0
  %2274 = vdwg.mxu0
  %v2276 = vsel %vm1295, %v1463, 0
  %2278 = vmatprep.subr.mxu0 0.0
  %2279 = vmatpush1.msra.mxu0 %v57
  %2280 = vmatprep.subr.mxu0 0.0
  %2281 = vmatpush1.msra.mxu0 0.0
  %2282 = vmatprep.subr.mxu0 0.0
  %2283 = vmatpush1.msra.mxu0 0.0
  %2284 = vmatprep.subr.mxu0 0.0
  %2285 = vmatpush1.msra.mxu0 0.0
  %2286 = vmatprep.subr.mxu0 0.0
  %2287 = vmatpush1.msra.mxu0 0.0
  %2288 = vmatprep.subr.mxu0 0.0
  %2289 = vmatpush1.msra.mxu0 0.0
  %2290 = vmatprep.subr.mxu0 0.0
  %2291 = vmatpush1.msra.mxu0 0.0
  %2292 = vmatprep.subr.mxu0 0.0
  %2293 = vmatpush1.msra.mxu0 0.0
  %2294 = vmatprep.subr.mxu0 0.0
  %2295 = vmatpush1.msra.mxu0 0.0
  %2296 = vmatprep.subr.mxu0 0.0
  %2297 = vmatpush1.msra.mxu0 0.0
  %2298 = vmatprep.subr.mxu0 0.0
  %2299 = vmatpush1.msra.mxu0 0.0
  %2300 = vmatprep.subr.mxu0 0.0
  %2301 = vmatpush1.msra.mxu0 0.0
  %2302 = vmatprep.subr.mxu0 0.0
  %2303 = vmatpush1.msra.mxu0 0.0
  %2304 = vmatprep.subr.mxu0 0.0
  %2305 = vmatpush1.msra.mxu0 0.0
  %2306 = vmatprep.subr.mxu0 0.0
  %2307 = vmatpush1.msra.mxu0 0.0
  %2308 = vmatprep.subr.mxu0 0.0
  %2309 = vmatpush1.msra.mxu0 0.0
  %2310 = vmatprep.subr.mxu0 0.0
  %2311 = vmatpush1.msra.mxu0 0.0
  %2312 = vmatprep.subr.mxu0 0.0
  %2313 = vmatpush1.msra.mxu0 0.0
  %2314 = vmatprep.subr.mxu0 0.0
  %2315 = vmatpush1.msra.mxu0 0.0
  %2316 = vmatprep.subr.mxu0 0.0
  %2317 = vmatpush1.msra.mxu0 0.0
  %2318 = vmatprep.subr.mxu0 0.0
  %2319 = vmatpush1.msra.mxu0 0.0
  %2320 = vmatprep.subr.mxu0 0.0
  %2321 = vmatpush1.msra.mxu0 0.0
  %2322 = vmatprep.subr.mxu0 0.0
  %2323 = vmatpush1.msra.mxu0 0.0
  %2324 = vmatprep.subr.mxu0 0.0
  %2325 = vmatpush1.msra.mxu0 0.0
  %2326 = vmatprep.subr.mxu0 0.0
  %2327 = vmatpush1.msra.mxu0 0.0
  %2328 = vmatprep.subr.mxu0 0.0
  %2329 = vmatpush1.msra.mxu0 0.0
  %2330 = vmatprep.subr.mxu0 0.0
  %2331 = vmatpush1.msra.mxu0 0.0
  %2332 = vmatprep.subr.mxu0 0.0
  %2333 = vmatpush1.msra.mxu0 0.0
  %2334 = vmatprep.subr.mxu0 0.0
  %2335 = vmatpush1.msra.mxu0 0.0
  %2336 = vmatprep.subr.mxu0 0.0
  %2337 = vmatpush1.msra.mxu0 0.0
  %2338 = vmatprep.subr.mxu0 0.0
  %2339 = vmatpush1.msra.mxu0 0.0
  %2340 = vmatprep.subr.mxu0 0.0
  %2341 = vmatpush1.msra.mxu0 0.0
  %2342 = vmatprep.mubr.f32.mxu0 0.0
  %2343 = vmatmul.mubr.f32.gmra.mrb[0].mxu0 %v2276
  %v2344 = vpop.f32.mrb[0].mxu0
  %v2345 = vadd.f32 0.0, %v2344
  %v2346 = vpop.f32.mrb[0].mxu0
  %2347 = vdwg.mxu0
  %v2349 = vsel %vm1295, %v1465, 0
  %2351 = vmatprep.subr.mxu0 0.0
  %2352 = vmatpush1.msra.mxu0 %v58
  %2353 = vmatprep.subr.mxu0 0.0
  %2354 = vmatpush1.msra.mxu0 0.0
  %2355 = vmatprep.subr.mxu0 0.0
  %2356 = vmatpush1.msra.mxu0 0.0
  %2357 = vmatprep.subr.mxu0 0.0
  %2358 = vmatpush1.msra.mxu0 0.0
  %2359 = vmatprep.subr.mxu0 0.0
  %2360 = vmatpush1.msra.mxu0 0.0
  %2361 = vmatprep.subr.mxu0 0.0
  %2362 = vmatpush1.msra.mxu0 0.0
  %2363 = vmatprep.subr.mxu0 0.0
  %2364 = vmatpush1.msra.mxu0 0.0
  %2365 = vmatprep.subr.mxu0 0.0
  %2366 = vmatpush1.msra.mxu0 0.0
  %2367 = vmatprep.subr.mxu0 0.0
  %2368 = vmatpush1.msra.mxu0 0.0
  %2369 = vmatprep.subr.mxu0 0.0
  %2370 = vmatpush1.msra.mxu0 0.0
  %2371 = vmatprep.subr.mxu0 0.0
  %2372 = vmatpush1.msra.mxu0 0.0
  %2373 = vmatprep.subr.mxu0 0.0
  %2374 = vmatpush1.msra.mxu0 0.0
  %2375 = vmatprep.subr.mxu0 0.0
  %2376 = vmatpush1.msra.mxu0 0.0
  %2377 = vmatprep.subr.mxu0 0.0
  %2378 = vmatpush1.msra.mxu0 0.0
  %2379 = vmatprep.subr.mxu0 0.0
  %2380 = vmatpush1.msra.mxu0 0.0
  %2381 = vmatprep.subr.mxu0 0.0
  %2382 = vmatpush1.msra.mxu0 0.0
  %2383 = vmatprep.subr.mxu0 0.0
  %2384 = vmatpush1.msra.mxu0 0.0
  %2385 = vmatprep.subr.mxu0 0.0
  %2386 = vmatpush1.msra.mxu0 0.0
  %2387 = vmatprep.subr.mxu0 0.0
  %2388 = vmatpush1.msra.mxu0 0.0
  %2389 = vmatprep.subr.mxu0 0.0
  %2390 = vmatpush1.msra.mxu0 0.0
  %2391 = vmatprep.subr.mxu0 0.0
  %2392 = vmatpush1.msra.mxu0 0.0
  %2393 = vmatprep.subr.mxu0 0.0
  %2394 = vmatpush1.msra.mxu0 0.0
  %2395 = vmatprep.subr.mxu0 0.0
  %2396 = vmatpush1.msra.mxu0 0.0
  %2397 = vmatprep.subr.mxu0 0.0
  %2398 = vmatpush1.msra.mxu0 0.0
  %2399 = vmatprep.subr.mxu0 0.0
  %2400 = vmatpush1.msra.mxu0 0.0
  %2401 = vmatprep.subr.mxu0 0.0
  %2402 = vmatpush1.msra.mxu0 0.0
  %2403 = vmatprep.subr.mxu0 0.0
  %2404 = vmatpush1.msra.mxu0 0.0
  %2405 = vmatprep.subr.mxu0 0.0
  %2406 = vmatpush1.msra.mxu0 0.0
  %2407 = vmatprep.subr.mxu0 0.0
  %2408 = vmatpush1.msra.mxu0 0.0
  %2409 = vmatprep.subr.mxu0 0.0
  %2410 = vmatpush1.msra.mxu0 0.0
  %2411 = vmatprep.subr.mxu0 0.0
  %2412 = vmatpush1.msra.mxu0 0.0
  %2413 = vmatprep.subr.mxu0 0.0
  %2414 = vmatpush1.msra.mxu0 0.0
  %2415 = vmatprep.mubr.f32.mxu0 0.0
  %2416 = vmatmul.mubr.f32.gmra.mrb[0].mxu0 %v2349
  %v2417 = vpop.f32.mrb[0].mxu0
  %v2418 = vadd.f32 0.0, %v2417
  %v2419 = vpop.f32.mrb[0].mxu0
  %2420 = vdwg.mxu0
  %v2422 = vsel %vm1295, %v1467, 0
  %2424 = vmatprep.subr.mxu0 0.0
  %2425 = vmatpush1.msra.mxu0 %v59
  %2426 = vmatprep.subr.mxu0 0.0
  %2427 = vmatpush1.msra.mxu0 0.0
  %2428 = vmatprep.subr.mxu0 0.0
  %2429 = vmatpush1.msra.mxu0 0.0
  %2430 = vmatprep.subr.mxu0 0.0
  %2431 = vmatpush1.msra.mxu0 0.0
  %2432 = vmatprep.subr.mxu0 0.0
  %2433 = vmatpush1.msra.mxu0 0.0
  %2434 = vmatprep.subr.mxu0 0.0
  %2435 = vmatpush1.msra.mxu0 0.0
  %2436 = vmatprep.subr.mxu0 0.0
  %2437 = vmatpush1.msra.mxu0 0.0
  %2438 = vmatprep.subr.mxu0 0.0
  %2439 = vmatpush1.msra.mxu0 0.0
  %2440 = vmatprep.subr.mxu0 0.0
  %2441 = vmatpush1.msra.mxu0 0.0
  %2442 = vmatprep.subr.mxu0 0.0
  %2443 = vmatpush1.msra.mxu0 0.0
  %2444 = vmatprep.subr.mxu0 0.0
  %2445 = vmatpush1.msra.mxu0 0.0
  %2446 = vmatprep.subr.mxu0 0.0
  %2447 = vmatpush1.msra.mxu0 0.0
  %2448 = vmatprep.subr.mxu0 0.0
  %2449 = vmatpush1.msra.mxu0 0.0
  %2450 = vmatprep.subr.mxu0 0.0
  %2451 = vmatpush1.msra.mxu0 0.0
  %2452 = vmatprep.subr.mxu0 0.0
  %2453 = vmatpush1.msra.mxu0 0.0
  %2454 = vmatprep.subr.mxu0 0.0
  %2455 = vmatpush1.msra.mxu0 0.0
  %2456 = vmatprep.subr.mxu0 0.0
  %2457 = vmatpush1.msra.mxu0 0.0
  %2458 = vmatprep.subr.mxu0 0.0
  %2459 = vmatpush1.msra.mxu0 0.0
  %2460 = vmatprep.subr.mxu0 0.0
  %2461 = vmatpush1.msra.mxu0 0.0
  %2462 = vmatprep.subr.mxu0 0.0
  %2463 = vmatpush1.msra.mxu0 0.0
  %2464 = vmatprep.subr.mxu0 0.0
  %2465 = vmatpush1.msra.mxu0 0.0
  %2466 = vmatprep.subr.mxu0 0.0
  %2467 = vmatpush1.msra.mxu0 0.0
  %2468 = vmatprep.subr.mxu0 0.0
  %2469 = vmatpush1.msra.mxu0 0.0
  %2470 = vmatprep.subr.mxu0 0.0
  %2471 = vmatpush1.msra.mxu0 0.0
  %2472 = vmatprep.subr.mxu0 0.0
  %2473 = vmatpush1.msra.mxu0 0.0
  %2474 = vmatprep.subr.mxu0 0.0
  %2475 = vmatpush1.msra.mxu0 0.0
  %2476 = vmatprep.subr.mxu0 0.0
  %2477 = vmatpush1.msra.mxu0 0.0
  %2478 = vmatprep.subr.mxu0 0.0
  %2479 = vmatpush1.msra.mxu0 0.0
  %2480 = vmatprep.subr.mxu0 0.0
  %2481 = vmatpush1.msra.mxu0 0.0
  %2482 = vmatprep.subr.mxu0 0.0
  %2483 = vmatpush1.msra.mxu0 0.0
  %2484 = vmatprep.subr.mxu0 0.0
  %2485 = vmatpush1.msra.mxu0 0.0
  %2486 = vmatprep.subr.mxu0 0.0
  %2487 = vmatpush1.msra.mxu0 0.0
  %2488 = vmatprep.mubr.f32.mxu0 0.0
  %2489 = vmatmul.mubr.f32.gmra.mrb[0].mxu0 %v2422
  %v2490 = vpop.f32.mrb[0].mxu0
  %v2491 = vadd.f32 0.0, %v2490
  %v2492 = vpop.f32.mrb[0].mxu0
  %2493 = vdwg.mxu0
  %v2495 = vsel %vm1295, %v1469, 0
  %2497 = vmatprep.subr.mxu0 0.0
  %2498 = vmatpush1.msra.mxu0 %v60
  %2499 = vmatprep.subr.mxu0 0.0
  %2500 = vmatpush1.msra.mxu0 0.0
  %2501 = vmatprep.subr.mxu0 0.0
  %2502 = vmatpush1.msra.mxu0 0.0
  %2503 = vmatprep.subr.mxu0 0.0
  %2504 = vmatpush1.msra.mxu0 0.0
  %2505 = vmatprep.subr.mxu0 0.0
  %2506 = vmatpush1.msra.mxu0 0.0
  %2507 = vmatprep.subr.mxu0 0.0
  %2508 = vmatpush1.msra.mxu0 0.0
  %2509 = vmatprep.subr.mxu0 0.0
  %2510 = vmatpush1.msra.mxu0 0.0
  %2511 = vmatprep.subr.mxu0 0.0
  %2512 = vmatpush1.msra.mxu0 0.0
  %2513 = vmatprep.subr.mxu0 0.0
  %2514 = vmatpush1.msra.mxu0 0.0
  %2515 = vmatprep.subr.mxu0 0.0
  %2516 = vmatpush1.msra.mxu0 0.0
  %2517 = vmatprep.subr.mxu0 0.0
  %2518 = vmatpush1.msra.mxu0 0.0
  %2519 = vmatprep.subr.mxu0 0.0
  %2520 = vmatpush1.msra.mxu0 0.0
  %2521 = vmatprep.subr.mxu0 0.0
  %2522 = vmatpush1.msra.mxu0 0.0
  %2523 = vmatprep.subr.mxu0 0.0
  %2524 = vmatpush1.msra.mxu0 0.0
  %2525 = vmatprep.subr.mxu0 0.0
  %2526 = vmatpush1.msra.mxu0 0.0
  %2527 = vmatprep.subr.mxu0 0.0
  %2528 = vmatpush1.msra.mxu0 0.0
  %2529 = vmatprep.subr.mxu0 0.0
  %2530 = vmatpush1.msra.mxu0 0.0
  %2531 = vmatprep.subr.mxu0 0.0
  %2532 = vmatpush1.msra.mxu0 0.0
  %2533 = vmatprep.subr.mxu0 0.0
  %2534 = vmatpush1.msra.mxu0 0.0
  %2535 = vmatprep.subr.mxu0 0.0
  %2536 = vmatpush1.msra.mxu0 0.0
  %2537 = vmatprep.subr.mxu0 0.0
  %2538 = vmatpush1.msra.mxu0 0.0
  %2539 = vmatprep.subr.mxu0 0.0
  %2540 = vmatpush1.msra.mxu0 0.0
  %2541 = vmatprep.subr.mxu0 0.0
  %2542 = vmatpush1.msra.mxu0 0.0
  %2543 = vmatprep.subr.mxu0 0.0
  %2544 = vmatpush1.msra.mxu0 0.0
  %2545 = vmatprep.subr.mxu0 0.0
  %2546 = vmatpush1.msra.mxu0 0.0
  %2547 = vmatprep.subr.mxu0 0.0
  %2548 = vmatpush1.msra.mxu0 0.0
  %2549 = vmatprep.subr.mxu0 0.0
  %2550 = vmatpush1.msra.mxu0 0.0
  %2551 = vmatprep.subr.mxu0 0.0
  %2552 = vmatpush1.msra.mxu0 0.0
  %2553 = vmatprep.subr.mxu0 0.0
  %2554 = vmatpush1.msra.mxu0 0.0
  %2555 = vmatprep.subr.mxu0 0.0
  %2556 = vmatpush1.msra.mxu0 0.0
  %2557 = vmatprep.subr.mxu0 0.0
  %2558 = vmatpush1.msra.mxu0 0.0
  %2559 = vmatprep.subr.mxu0 0.0
  %2560 = vmatpush1.msra.mxu0 0.0
  %2561 = vmatprep.mubr.f32.mxu0 0.0
  %2562 = vmatmul.mubr.f32.gmra.mrb[0].mxu0 %v2495
  %v2563 = vpop.f32.mrb[0].mxu0
  %v2564 = vadd.f32 0.0, %v2563
  %v2565 = vpop.f32.mrb[0].mxu0
  %2566 = vdwg.mxu0
  %v2568 = vsel %vm1295, %v1471, 0
  %2570 = vmatprep.subr.mxu0 0.0
  %2571 = vmatpush1.msra.mxu0 %v61
  %2572 = vmatprep.subr.mxu0 0.0
  %2573 = vmatpush1.msra.mxu0 0.0
  %2574 = vmatprep.subr.mxu0 0.0
  %2575 = vmatpush1.msra.mxu0 0.0
  %2576 = vmatprep.subr.mxu0 0.0
  %2577 = vmatpush1.msra.mxu0 0.0
  %2578 = vmatprep.subr.mxu0 0.0
  %2579 = vmatpush1.msra.mxu0 0.0
  %2580 = vmatprep.subr.mxu0 0.0
  %2581 = vmatpush1.msra.mxu0 0.0
  %2582 = vmatprep.subr.mxu0 0.0
  %2583 = vmatpush1.msra.mxu0 0.0
  %2584 = vmatprep.subr.mxu0 0.0
  %2585 = vmatpush1.msra.mxu0 0.0
  %2586 = vmatprep.subr.mxu0 0.0
  %2587 = vmatpush1.msra.mxu0 0.0
  %2588 = vmatprep.subr.mxu0 0.0
  %2589 = vmatpush1.msra.mxu0 0.0
  %2590 = vmatprep.subr.mxu0 0.0
  %2591 = vmatpush1.msra.mxu0 0.0
  %2592 = vmatprep.subr.mxu0 0.0
  %2593 = vmatpush1.msra.mxu0 0.0
  %2594 = vmatprep.subr.mxu0 0.0
  %2595 = vmatpush1.msra.mxu0 0.0
  %2596 = vmatprep.subr.mxu0 0.0
  %2597 = vmatpush1.msra.mxu0 0.0
  %2598 = vmatprep.subr.mxu0 0.0
  %2599 = vmatpush1.msra.mxu0 0.0
  %2600 = vmatprep.subr.mxu0 0.0
  %2601 = vmatpush1.msra.mxu0 0.0
  %2602 = vmatprep.subr.mxu0 0.0
  %2603 = vmatpush1.msra.mxu0 0.0
  %2604 = vmatprep.subr.mxu0 0.0
  %2605 = vmatpush1.msra.mxu0 0.0
  %2606 = vmatprep.subr.mxu0 0.0
  %2607 = vmatpush1.msra.mxu0 0.0
  %2608 = vmatprep.subr.mxu0 0.0
  %2609 = vmatpush1.msra.mxu0 0.0
  %2610 = vmatprep.subr.mxu0 0.0
  %2611 = vmatpush1.msra.mxu0 0.0
  %2612 = vmatprep.subr.mxu0 0.0
  %2613 = vmatpush1.msra.mxu0 0.0
  %2614 = vmatprep.subr.mxu0 0.0
  %2615 = vmatpush1.msra.mxu0 0.0
  %2616 = vmatprep.subr.mxu0 0.0
  %2617 = vmatpush1.msra.mxu0 0.0
  %2618 = vmatprep.subr.mxu0 0.0
  %2619 = vmatpush1.msra.mxu0 0.0
  %2620 = vmatprep.subr.mxu0 0.0
  %2621 = vmatpush1.msra.mxu0 0.0
  %2622 = vmatprep.subr.mxu0 0.0
  %2623 = vmatpush1.msra.mxu0 0.0
  %2624 = vmatprep.subr.mxu0 0.0
  %2625 = vmatpush1.msra.mxu0 0.0
  %2626 = vmatprep.subr.mxu0 0.0
  %2627 = vmatpush1.msra.mxu0 0.0
  %2628 = vmatprep.subr.mxu0 0.0
  %2629 = vmatpush1.msra.mxu0 0.0
  %2630 = vmatprep.subr.mxu0 0.0
  %2631 = vmatpush1.msra.mxu0 0.0
  %2632 = vmatprep.subr.mxu0 0.0
  %2633 = vmatpush1.msra.mxu0 0.0
  %2634 = vmatprep.mubr.f32.mxu0 0.0
  %2635 = vmatmul.mubr.f32.gmra.mrb[0].mxu0 %v2568
  %v2636 = vpop.f32.mrb[0].mxu0
  %v2637 = vadd.f32 0.0, %v2636
  %v2638 = vpop.f32.mrb[0].mxu0
  %2639 = vdwg.mxu0
  %2640 = vst.msk [vmem:[%s3] sm:$0xff] %vm62, %v1542
  %2641 = vst.msk [vmem:[%s3 + $0x8] sm:$0xff] %vm62, %v1615
  %2642 = vst.msk [vmem:[%s3 + $0x10] sm:$0xff] %vm62, %v1688
  %2643 = vst.msk [vmem:[%s3 + $0x18] sm:$0xff] %vm62, %v1761
  %2644 = vst.msk [vmem:[%s3 + $0x20] sm:$0xff] %vm62, %v1834
  %2645 = vst.msk [vmem:[%s3 + $0x28] sm:$0xff] %vm62, %v1907
  %2646 = vst.msk [vmem:[%s3 + $0x30] sm:$0xff] %vm62, %v1980
  %2647 = vst.msk [vmem:[%s3 + $0x38] sm:$0xff] %vm62, %v2053
  %2648 = vst.msk [vmem:[%s3 + $0x40] sm:$0xff] %vm62, %v2126
  %2649 = vst.msk [vmem:[%s3 + $0x48] sm:$0xff] %vm62, %v2199
  %2650 = vst.msk [vmem:[%s3 + $0x50] sm:$0xff] %vm62, %v2272
  %2651 = vst.msk [vmem:[%s3 + $0x58] sm:$0xff] %vm62, %v2345
  %2652 = vst.msk [vmem:[%s3 + $0x60] sm:$0xff] %vm62, %v2418
  %2653 = vst.msk [vmem:[%s3 + $0x68] sm:$0xff] %vm62, %v2491
  %2654 = vst.msk [vmem:[%s3 + $0x70] sm:$0xff] %vm62, %v2564
  %2655 = vst.msk [vmem:[%s3 + $0x78] sm:$0xff] %vm62, %v2637
  // Predicated region
  $region14: #{encoder_layer_forward.4} parent=0 // pred_check
    _
  $region15: #{encoder_layer_forward.4} parent=0 // pred_check_branch
    %2657 = sbr.rel (0) target = $region17
  $region16: #{encoder_layer_forward.4} parent=0 // pred_region
    _
  $region17: #{encoder_layer_forward.4} parent=0 // pred_fallthru
    _
  // Predicated region
  $region18: #{encoder_layer_forward.4} parent=0 // pred_check
    _
  $region19: #{encoder_layer_forward.4} parent=0 // pred_check_branch
    %2659 = sbr.rel (0) target = $region21
  $region20: #{encoder_layer_forward.4} parent=0 // pred_region
    _
  $region21: #{encoder_layer_forward.4} parent=0 // pred_fallthru
    _

</llo_original>
